<compile_context>
chip_gen: v7x
topology: tpu7x:2x2x1
jax: 0.10.0
libtpu: 0.0.40
codegen_flags: <defaults>
</compile_context>

<pallas_src>
import functools
import math

import jax
import jax.numpy as jnp
from jax import lax
from jax.experimental import pallas as pl
from jax.experimental.pallas import tpu as pltpu

N_EMBD = 1024       # module constant
BLOCK_SIZE = 128    # module constant (max sequence length / tril size)


# ----------------------------------------------------------------------------
# Fused Pallas kernel
# ----------------------------------------------------------------------------
def _head_kernel(x_ref, w_ref, cs_ref, o_ref, *, head_size):
    """Fused QKV projection + RoPE + causal attention for Bb batch elements."""
    H = head_size
    Bb, T, C = x_ref.shape

    # Single wide projection over all Bb*T rows: [q | k | q_sw | k_sw | v].
    x2 = x_ref[...].reshape(Bb * T, C)                       # bf16, layout no-op
    qkv = jnp.dot(x2, w_ref[...],
                  preferred_element_type=jnp.float32)        # (Bb*T, 5H) f32
    qkv = qkv.reshape(Bb, T, 5 * H)

    cos = cs_ref[:, : 2 * H][None]                           # (1, T, 2H) f32
    sin = cs_ref[:, 2 * H :][None]                           # (1, T, 2H) f32

    qk = qkv[..., : 2 * H]                                   # (Bb, T, 2H)
    qk_sw = qkv[..., 2 * H : 4 * H]                          # pre-swapped pairs
    v = qkv[..., 4 * H :].astype(jnp.bfloat16)               # (Bb, T, H)

    # RoPE (interleaved complex-pair convention), fully elementwise; the
    # pair-swap already happened inside the matmul via the permuted columns.
    qk_rot = qk * cos + qk_sw * sin                          # (Bb, T, 2H) f32
    q = qk_rot[..., :H].astype(jnp.bfloat16)                 # 1/sqrt(H) folded in
    k = qk_rot[..., H:].astype(jnp.bfloat16)

    # Scores: batched matmul contracting the last dim (no explicit transpose).
    s = jnp.einsum("bqd,bkd->bqk", q, k,
                   preferred_element_type=jnp.float32)       # (Bb, T, T)

    row = lax.broadcasted_iota(jnp.int32, (Bb, T, T), 1)
    col = lax.broadcasted_iota(jnp.int32, (Bb, T, T), 2)
    s = jnp.where(col <= row, s, -jnp.inf)                   # causal (tril) mask

    m = jnp.max(s, axis=-1, keepdims=True)
    e = jnp.exp(s - m)                                       # (Bb, T, T)
    denom = jnp.sum(e, axis=-1, keepdims=True)               # (Bb, T, 1)

    out_un = jnp.einsum("bqk,bkd->bqd", e.astype(jnp.bfloat16), v,
                        preferred_element_type=jnp.float32)  # (Bb, T, H)
    o_ref[...] = (out_un * pl.reciprocal(denom, approx=True)).astype(o_ref.dtype)


# ----------------------------------------------------------------------------
# Wrapper
# ----------------------------------------------------------------------------
def _pick_batch_block(B):
    """Largest Bb in {8,4,2} dividing B while keeping grid a multiple of 2."""
    for cand in (8, 4, 2):
        if B % cand == 0 and (B // cand) % 2 == 0:
            return cand
    return 1


def head_forward(x, params, head_size, *, batch_block=None):
    B, T, C = x.shape
    H = head_size

    # Accept / convert activations to bf16: halves the dominant x DMA.
    if x.dtype != jnp.bfloat16:
        x = x.astype(jnp.bfloat16)

    if batch_block is None:
        batch_block = _pick_batch_block(B)
    assert B % batch_block == 0
    Bb = batch_block

    w = params["w_packed"]            # (C, 5H) bf16
    cs = params["cos_sin"][:T]        # (T, 4H) f32 = [cos | signed sin]

    return pl.pallas_call(
        functools.partial(_head_kernel, head_size=H),
        grid=(B // Bb,),
        in_specs=[
            # If the x fetch is still exposed on v6e, add
            # pipeline_mode=pl.Buffered(3) to this spec.
            pl.BlockSpec((Bb, T, C), lambda b: (b, 0, 0)),    # x (bf16)
            pl.BlockSpec((C, 5 * H), lambda b: (0, 0)),       # packed weights
            pl.BlockSpec((T, 4 * H), lambda b: (0, 0)),       # cos|sin table
        ],
        out_specs=pl.BlockSpec((Bb, T, H), lambda b: (b, 0, 0)),
        out_shape=jax.ShapeDtypeStruct((B, T, H), jnp.bfloat16),
        compiler_params=pltpu.CompilerParams(
            dimension_semantics=("parallel",)),
    )(x, w, cs)


# ----------------------------------------------------------------------------
# Host-side parameter packing (done once)
# ----------------------------------------------------------------------------
def precompute_rope_tables(head_size, seq_len, theta=10000.0):
    """Packed (S, 4H) table: [cos | cos | signed_sin | signed_sin]."""
    H = head_size
    freqs = jnp.exp(
        jnp.arange(0, H, 2, dtype=jnp.float32) * (-math.log(theta) / H))
    t = jnp.arange(seq_len, dtype=jnp.float32)
    f = jnp.outer(t, freqs)                                        # (S, H//2)
    cos, sin = jnp.cos(f), jnp.sin(f)
    cos_exp = jnp.repeat(cos, 2, axis=1)                           # [c0,c0,c1,c1,..]
    sin_exp = jnp.stack([-sin, sin], axis=-1).reshape(seq_len, H)  # [-s0,+s0,..]
    cos_t = jnp.concatenate([cos_exp, cos_exp], axis=1)            # (S, 2H)
    sin_t = jnp.concatenate([sin_exp, sin_exp], axis=1)            # (S, 2H)
    return jnp.concatenate([cos_t, sin_t], axis=1)                 # (S, 4H)


def prepare_head_params(wq, wk, wv, head_size, seq_len=BLOCK_SIZE):
    """Pack weights as [Wq/sqrt(H) | Wk | swapped(Wq/sqrt(H)) | swapped(Wk) | Wv]."""
    H = head_size
    swap = jnp.arange(H) ^ 1                   # adjacent-pair column swap
    wq_s = wq * (1.0 / math.sqrt(H))           # fold score scale into Q
    w_packed = jnp.concatenate(
        [wq_s, wk, wq_s[:, swap], wk[:, swap], wv], axis=1
    ).astype(jnp.bfloat16)                     # (C, 5H) bf16
    cos_sin = precompute_rope_tables(H, seq_len)
    return {"w_packed": w_packed, "cos_sin": cos_sin}


# ----------------------------------------------------------------------------
# Pure-JAX f32 reference (PyTorch eval-mode semantics)
# ----------------------------------------------------------------------------
def _apply_rope_ref(x, cos, sin):
    B, T, H = x.shape
    xr = x.astype(jnp.float32).reshape(B, T, H // 2, 2)
    xe, xo = xr[..., 0], xr[..., 1]
    oe = xe * cos - xo * sin
    oo = xe * sin + xo * cos
    return jnp.stack([oe, oo], axis=-1).reshape(B, T, H)


def head_reference(x, wq, wk, wv, head_size):
    B, T, C = x.shape
    H = head_size
    q, k, v = x @ wq, x @ wk, x @ wv
    freqs = jnp.exp(
        jnp.arange(0, H, 2, dtype=jnp.float32) * (-math.log(10000.0) / H))
    f = jnp.outer(jnp.arange(T, dtype=jnp.float32), freqs)
    cos, sin = jnp.cos(f), jnp.sin(f)
    q = _apply_rope_ref(q, cos, sin)
    k = _apply_rope_ref(k, cos, sin)
    s = jnp.einsum("btd,bsd->bts", q, k) / math.sqrt(H)
    mask = jnp.tril(jnp.ones((T, T)))
    s = jnp.where(mask == 0, -jnp.inf, s)
    p = jax.nn.softmax(s, axis=-1)
    return jnp.einsum("bts,bsd->btd", p, v)


if __name__ == "__main__":
    B, T, C = 4, BLOCK_SIZE, N_EMBD          # Bb=2 per step, grid=(2,)
    head_size = 64

    key = jax.random.PRNGKey(0)
    kx, kq, kk, kv = jax.random.split(key, 4)
    x = jax.random.normal(kx, (B, T, C), dtype=jnp.float32)

    # nn.Linear(n_embd, head_size, bias=False) weights stored transposed (C, H).
    scale = 1.0 / math.sqrt(C)
    wq = jax.random.normal(kq, (C, head_size), dtype=jnp.float32) * scale
    wk = jax.random.normal(kk, (C, head_size), dtype=jnp.float32) * scale
    wv = jax.random.normal(kv, (C, head_size), dtype=jnp.float32) * scale

    params = prepare_head_params(wq, wk, wv, head_size, BLOCK_SIZE)

    out = head_forward(x, params, head_size)
    out = jax.block_until_ready(out)

    ref = head_reference(x, wq, wk, wv, head_size)
    assert out.shape == (B, T, head_size), out.shape
    out_f32 = out.astype(jnp.float32)
    max_err = float(jnp.max(jnp.abs(out_f32 - ref)))
    # bf16 activations / matmul inputs / output (f32 accumulation) -> loose tol.
    assert jnp.allclose(out_f32, ref, atol=1e-1, rtol=1e-1), max_err
    print("KERNEL_OK")
</pallas_src>

<mosaic_0001>
module attributes {stable_mosaic.version = 11 : i64} {
  func.func @_head_kernel(%arg0: i32, %arg1: memref<2x128x1024xbf16, #tpu.memory_space<vmem>>, %arg2: memref<1024x320xbf16, #tpu.memory_space<vmem>>, %arg3: memref<128x256xf32, #tpu.memory_space<vmem>>, %arg4: memref<2x128x64xbf16, #tpu.memory_space<vmem>>) attributes {dimension_semantics = [#tpu.dimension_semantics<parallel>], iteration_bounds = array<i64: 2>, scalar_prefetch = 0 : i64, scratch_operands = 0 : i64, tpu.core_type = #tpu.core_type<tc>, window_params = [{transform_indices = @transform_0, window_bounds = array<i64: 2, 128, 1024>}, {pipeline_mode = #tpu.pipeline_mode<synchronous>, transform_indices = @transform_1, window_bounds = array<i64: 1024, 320>}, {pipeline_mode = #tpu.pipeline_mode<synchronous>, transform_indices = @transform_2, window_bounds = array<i64: 128, 256>}, {transform_indices = @transform_3, window_bounds = array<i64: 2, 128, 64>}]} {
    %c0 = arith.constant 0 : index
    %c0_0 = arith.constant 0 : index
    %c0_1 = arith.constant 0 : index
    %0 = vector.load %arg1[%c0, %c0_0, %c0_1] : memref<2x128x1024xbf16, #tpu.memory_space<vmem>>, vector<2x128x1024xbf16>
    %1 = vector.shape_cast %0 : vector<2x128x1024xbf16> to vector<256x1024xbf16>
    %c0_2 = arith.constant 0 : index
    %c0_3 = arith.constant 0 : index
    %2 = vector.load %arg2[%c0_2, %c0_3] : memref<1024x320xbf16, #tpu.memory_space<vmem>>, vector<1024x320xbf16>
    %cst = arith.constant dense<0.000000e+00> : vector<256x320xf32>
    %3 = tpu.matmul %1, %2, %cst {dimension_numbers = #tpu.dot_dimension_numbers<[1], [0], [0], [1], [0, 0, 1, 1], [], []>} : vector<256x1024xbf16>, vector<1024x320xbf16>, vector<256x320xf32> -> vector<256x320xf32>
    %4 = vector.shape_cast %3 : vector<256x320xf32> to vector<2x128x320xf32>
    %c0_4 = arith.constant 0 : index
    %c0_5 = arith.constant 0 : index
    %5 = vector.load %arg3[%c0_4, %c0_5] : memref<128x256xf32, #tpu.memory_space<vmem>>, vector<128x128xf32>
    %6 = vector.shape_cast %5 : vector<128x128xf32> to vector<1x128x128xf32>
    %c0_6 = arith.constant 0 : index
    %c128 = arith.constant 128 : index
    %7 = vector.load %arg3[%c0_6, %c128] : memref<128x256xf32, #tpu.memory_space<vmem>>, vector<128x128xf32>
    %8 = vector.shape_cast %7 : vector<128x128xf32> to vector<1x128x128xf32>
    %9 = vector.extract_strided_slice %4 {offsets = [0, 0, 0], sizes = [2, 128, 128], strides = [1, 1, 1]} : vector<2x128x320xf32> to vector<2x128x128xf32>
    %10 = vector.extract_strided_slice %4 {offsets = [0, 0, 128], sizes = [2, 128, 128], strides = [1, 1, 1]} : vector<2x128x320xf32> to vector<2x128x128xf32>
    %11 = vector.extract_strided_slice %4 {offsets = [0, 0, 256], sizes = [2, 128, 64], strides = [1, 1, 1]} : vector<2x128x320xf32> to vector<2x128x64xf32>
    %12 = arith.truncf %11 : vector<2x128x64xf32> to vector<2x128x64xbf16>
    %13 = vector.broadcast %6 : vector<1x128x128xf32> to vector<2x128x128xf32>
    %14 = arith.mulf %9, %13 : vector<2x128x128xf32>
    %15 = vector.broadcast %8 : vector<1x128x128xf32> to vector<2x128x128xf32>
    %16 = arith.mulf %10, %15 : vector<2x128x128xf32>
    %17 = arith.addf %14, %16 : vector<2x128x128xf32>
    %18 = vector.extract_strided_slice %17 {offsets = [0, 0, 0], sizes = [2, 128, 64], strides = [1, 1, 1]} : vector<2x128x128xf32> to vector<2x128x64xf32>
    %19 = arith.truncf %18 : vector<2x128x64xf32> to vector<2x128x64xbf16>
    %20 = vector.extract_strided_slice %17 {offsets = [0, 0, 64], sizes = [2, 128, 64], strides = [1, 1, 1]} : vector<2x128x128xf32> to vector<2x128x64xf32>
    %21 = arith.truncf %20 : vector<2x128x64xf32> to vector<2x128x64xbf16>
    "tpu.trace_start"() <{level = 10 : i32, message = "bqd,bkd->bqk"}> : () -> ()
    %cst_7 = arith.constant dense<0.000000e+00> : vector<2x128x128xf32>
    %22 = tpu.matmul %19, %21, %cst_7 {dimension_numbers = #tpu.dot_dimension_numbers<[2], [2], [1], [1], [0, 0, 0, 1, 1, 1], [0], [0]>} : vector<2x128x64xbf16>, vector<2x128x64xbf16>, vector<2x128x128xf32> -> vector<2x128x128xf32>
    "tpu.trace_stop"() : () -> ()
    %23 = tpu.iota {dimensions = array<i32: 1>} : vector<2x128x128xi32>
    %24 = tpu.iota {dimensions = array<i32: 2>} : vector<2x128x128xi32>
    %25 = arith.cmpi sle, %24, %23 : vector<2x128x128xi32>
    %cst_8 = arith.constant 0xFF800000 : f32
    %26 = vector.broadcast %cst_8 : f32 to vector<2x128x128xf32>
    %27 = arith.select %25, %22, %26 : vector<2x128x128xi1>, vector<2x128x128xf32>
    %cst_9 = arith.constant dense<0xFF800000> : vector<2x128xf32>
    %28 = vector.multi_reduction <maximumf>, %27, %cst_9 [2] : vector<2x128x128xf32> to vector<2x128xf32>
    %29 = vector.shape_cast %28 : vector<2x128xf32> to vector<2x128x1xf32>
    %30 = vector.broadcast %29 : vector<2x128x1xf32> to vector<2x128x128xf32>
    %31 = arith.subf %27, %30 : vector<2x128x128xf32>
    %32 = math.exp %31 : vector<2x128x128xf32>
    %cst_10 = arith.constant dense<0.000000e+00> : vector<2x128xf32>
    %33 = vector.multi_reduction <add>, %32, %cst_10 [2] : vector<2x128x128xf32> to vector<2x128xf32>
    %34 = vector.shape_cast %33 : vector<2x128xf32> to vector<2x128x1xf32>
    %35 = arith.truncf %32 : vector<2x128x128xf32> to vector<2x128x128xbf16>
    "tpu.trace_start"() <{level = 10 : i32, message = "bqk,bkd->bqd"}> : () -> ()
    %cst_11 = arith.constant dense<0.000000e+00> : vector<2x128x64xf32>
    %36 = tpu.matmul %35, %12, %cst_11 {dimension_numbers = #tpu.dot_dimension_numbers<[2], [1], [1], [2], [0, 0, 0, 1, 1, 2], [0], [0]>} : vector<2x128x128xbf16>, vector<2x128x64xbf16>, vector<2x128x64xf32> -> vector<2x128x64xf32>
    "tpu.trace_stop"() : () -> ()
    %37 = tpu.reciprocal %34 {approx = true} : vector<2x128x1xf32> -> vector<2x128x1xf32>
    %38 = vector.broadcast %37 : vector<2x128x1xf32> to vector<2x128x64xf32>
    %39 = arith.mulf %36, %38 : vector<2x128x64xf32>
    %40 = arith.truncf %39 : vector<2x128x64xf32> to vector<2x128x64xbf16>
    %c0_12 = arith.constant 0 : index
    %c0_13 = arith.constant 0 : index
    %c0_14 = arith.constant 0 : index
    %41 = vector.load %arg4[%c0_12, %c0_13, %c0_14] : memref<2x128x64xbf16, #tpu.memory_space<vmem>>, vector<2x128x64xbf16>
    tpu.vector_store %arg4[%c0_12, %c0_13, %c0_14], %40 {strides = array<i32>} : memref<2x128x64xbf16, #tpu.memory_space<vmem>>, vector<2x128x64xbf16>,
    return
  }
  func.func @transform_0(%arg0: i32) -> (i32, i32, i32) {
    %c0_i32 = arith.constant 0 : i32
    %c0_i32_0 = arith.constant 0 : i32
    %c0_i32_1 = arith.constant 0 : i32
    return %arg0, %c0_i32, %c0_i32_0 : i32, i32, i32
  }
  func.func @transform_1(%arg0: i32) -> (i32, i32) {
    %c0_i32 = arith.constant 0 : i32
    %c0_i32_0 = arith.constant 0 : i32
    %c0_i32_1 = arith.constant 0 : i32
    return %c0_i32, %c0_i32_0 : i32, i32
  }
  func.func @transform_2(%arg0: i32) -> (i32, i32) {
    %c0_i32 = arith.constant 0 : i32
    %c0_i32_0 = arith.constant 0 : i32
    %c0_i32_1 = arith.constant 0 : i32
    return %c0_i32, %c0_i32_0 : i32, i32
  }
  func.func @transform_3(%arg0: i32) -> (i32, i32, i32) {
    %c0_i32 = arith.constant 0 : i32
    %c0_i32_0 = arith.constant 0 : i32
    %c0_i32_1 = arith.constant 0 : i32
    return %arg0, %c0_i32, %c0_i32_0 : i32, i32, i32
  }
}

</mosaic_0001>

<llo_original>
// kernel: tpu_custom_call.1
$region0: #{tpu_custom_call.1}
  #allocation0 [shape = 'u32[]', space=smem, size = 0x4, offset = 0x4, fixed_abs, tag = 'smem constant byte address 0x4 - core index']
  #allocation1 [shape = 'u32[144,128]{1,0:T(1,128)}', space=vmem, size = 0x12000, scoped, tag = 'internal scratch']
  %s0 = inlined_call_operand.vmem [shape: bf16[4,128,1024], index: 0, kind: input, shape index: {}]
  %s1 = inlined_call_operand.vmem [shape: bf16[1024,320], index: 1, kind: input, shape index: {}]
  %s2 = inlined_call_operand.vmem [shape: f32[128,256], index: 2, kind: input, shape index: {}]
  %s3 = inlined_call_operand.vmem [shape: bf16[4,128,64], index: 3, kind: output, shape index: {}]
  %s4 = sld [smem:[#allocation0]]
  $region45: #{tpu_custom_call.1} parent=0
    _
  %s6 = ssub.s32 1, %s4
  %s7 = scalar_select 0, %s6, %s4
  loop: start=0, step=1, limit=4
  $region2: #{tpu_custom_call.1} parent=0 // loop_pre_header
    _
  $region3: #{tpu_custom_call.1} parent=0 // loop_header
    %s9 = sphi 0, %s13
    %p10 = scmp.ge.s32.totalorder %s9, 4
    %s19 = sphi 0, %s21
    %s22 = sphi 0, %s19
    %s23 = sphi 0, %s22
    %s39 = sphi 0, %s23
    %s43 = sphi 0, %s43
    %s45 = sphi 0, %s43
    %s46 = sphi 0, %s45
    %s60 = sphi 0, %s46
    %s64 = sphi 0, %s64
    %s66 = sphi 0, %s64
    %s67 = sphi 0, %s66
    %s81 = sphi 0, %s67
    %s87 = sphi 0, %s89
    %s90 = sphi 0, %s87
    %s91 = sphi 0, %s90
    %s107 = sphi 0, %s91
  $region4: #{tpu_custom_call.1} parent=0 // loop_header_branch
    %12 = sbr.rel (%p10) target = $region8
  $region5: #{tpu_custom_call.1} parent=0 // loop_body
    %s14 = ssub.s32 %s9, 1
    %s15 = ssub.s32 %s9, 2
    %s16 = sadd.s32 %s9, 1
    %s17 = ssub.s32 %s9, %s16
    %p18 = scmp.eq.s32.totalorder %s17, 0
    %s20 = sadd.s32 %s19, 1
    %s21 = scalar_select %p18, %s19, %s20
    %p24 = pneg %p18
    %p25 = scmp.eq.s32.totalorder %s9, 1
    %p26 = por %p24, %p25
    %p27 = scmp.ne.s32.totalorder %s19, %s22
    %p28 = scmp.eq.s32.totalorder %s9, 0
    %p29 = por %p27, %p28
    %p30 = scmp.ne.s32.totalorder %s19, %s22
    %p31 = scmp.eq.s32.totalorder %s14, 1
    %p32 = por %p30, %p31
    %p33 = scmp.ne.s32.totalorder %s22, %s23
    %p34 = scmp.eq.s32.totalorder %s14, 0
    %p35 = por %p33, %p34
    %p36 = scmp.ne.s32.totalorder %s22, %s23
    %p37 = scmp.eq.s32.totalorder %s15, 1
    %p38 = por %p36, %p37
    %p40 = scmp.ne.s32.totalorder %s23, %s39
    %p41 = scmp.eq.s32.totalorder %s15, 0
    %p42 = por %p40, %p41
    %s44 = sadd.s32 %s43, 1
    %p47 = scmp.eq.s32.totalorder %s9, 1
    %p48 = scmp.ne.s32.totalorder %s43, %s45
    %p49 = scmp.eq.s32.totalorder %s9, 0
    %p50 = por %p48, %p49
    %p51 = scmp.ne.s32.totalorder %s43, %s45
    %p52 = scmp.eq.s32.totalorder %s14, 1
    %p53 = por %p51, %p52
    %p54 = scmp.ne.s32.totalorder %s45, %s46
    %p55 = scmp.eq.s32.totalorder %s14, 0
    %p56 = por %p54, %p55
    %p57 = scmp.ne.s32.totalorder %s45, %s46
    %p58 = scmp.eq.s32.totalorder %s15, 1
    %p59 = por %p57, %p58
    %p61 = scmp.ne.s32.totalorder %s46, %s60
    %p62 = scmp.eq.s32.totalorder %s15, 0
    %p63 = por %p61, %p62
    %s65 = sadd.s32 %s64, 1
    %p68 = scmp.eq.s32.totalorder %s9, 1
    %p69 = scmp.ne.s32.totalorder %s64, %s66
    %p70 = scmp.eq.s32.totalorder %s9, 0
    %p71 = por %p69, %p70
    %p72 = scmp.ne.s32.totalorder %s64, %s66
    %p73 = scmp.eq.s32.totalorder %s14, 1
    %p74 = por %p72, %p73
    %p75 = scmp.ne.s32.totalorder %s66, %s67
    %p76 = scmp.eq.s32.totalorder %s14, 0
    %p77 = por %p75, %p76
    %p78 = scmp.ne.s32.totalorder %s66, %s67
    %p79 = scmp.eq.s32.totalorder %s15, 1
    %p80 = por %p78, %p79
    %p82 = scmp.ne.s32.totalorder %s67, %s81
    %p83 = scmp.eq.s32.totalorder %s15, 0
    %p84 = por %p82, %p83
    %s85 = ssub.s32 %s9, %s16
    %p86 = scmp.eq.s32.totalorder %s85, 0
    %s88 = sadd.s32 %s87, 1
    %s89 = scalar_select %p86, %s87, %s88
    %p92 = pneg %p86
    %p93 = scmp.eq.s32.totalorder %s9, 1
    %p94 = por %p92, %p93
    %p95 = scmp.ne.s32.totalorder %s87, %s90
    %p96 = scmp.eq.s32.totalorder %s9, 0
    %p97 = por %p95, %p96
    %p98 = scmp.ne.s32.totalorder %s87, %s90
    %p99 = scmp.eq.s32.totalorder %s14, 1
    %p100 = por %p98, %p99
    %p101 = scmp.ne.s32.totalorder %s90, %s91
    %p102 = scmp.eq.s32.totalorder %s14, 0
    %p103 = por %p101, %p102
    %p104 = scmp.ne.s32.totalorder %s90, %s91
    %p105 = scmp.eq.s32.totalorder %s15, 1
    %p106 = por %p104, %p105
    %p108 = scmp.ne.s32.totalorder %s91, %s107
    %p109 = scmp.eq.s32.totalorder %s15, 0
    %p110 = por %p108, %p109
    %p111 = scmp.le.s32.totalorder 1, %s9
    %p112 = scmp.lt.s32.totalorder %s9, 3
    %p113 = pnand %p111, %p112
    %p114 = pneg %p113
    // Predicated region
    $region9: #{tpu_custom_call.1} parent=5 // pred_check
      _
    $region10: #{tpu_custom_call.1} parent=5 // pred_check_branch
      %116 = sbr.rel (%p113) target = $region12
    $region11: #{tpu_custom_call.1} parent=5 // pred_region
      %s117 = ssub.s32 %s9, 1
      // Predicated region
      $region13: #{tpu_custom_call.1} parent=11 // pred_check
        %p118 = pneg %p56
      $region14: #{tpu_custom_call.1} parent=11 // pred_check_branch
        %120 = sbr.rel (%p118) target = $region16
      $region15: #{tpu_custom_call.1} parent=11 // pred_region
        _
      $region16: #{tpu_custom_call.1} parent=11 // pred_fallthru
        _
      // Predicated region
      $region17: #{tpu_custom_call.1} parent=11 // pred_check
        %p121 = pneg %p77
      $region18: #{tpu_custom_call.1} parent=11 // pred_check_branch
        %123 = sbr.rel (%p121) target = $region20
      $region19: #{tpu_custom_call.1} parent=11 // pred_region
        _
      $region20: #{tpu_custom_call.1} parent=11 // pred_fallthru
        _
    $region12: #{tpu_custom_call.1} parent=5 // pred_fallthru
      _
    %p124 = scmp.lt.s32.totalorder %s9, 2
    // Predicated region
    $region21: #{tpu_custom_call.1} parent=5 // pred_check
      %p125 = pneg %p124
    $region22: #{tpu_custom_call.1} parent=5 // pred_check_branch
      %127 = sbr.rel (%p125) target = $region24
    $region23: #{tpu_custom_call.1} parent=5 // pred_region
      // Predicated region
      $region25: #{tpu_custom_call.1} parent=23 // pred_check
        %p128 = pneg %p29
      $region26: #{tpu_custom_call.1} parent=23 // pred_check_branch
        %130 = sbr.rel (%p128) target = $region28
      $region27: #{tpu_custom_call.1} parent=23 // pred_region
        %s131 = smul.u32 2, %s9
        %p132 = scmp.lt.s32.totalorder %s131, 3
        %s133 = scalar_select %p132, %s131, 3
        %s134 = smul.addr %s133, 128
        %s135 = smul.addr %s134, 4
        %s136 = scalar_lea.vmem %s0, %s135
        %s137 = smul.u32 2, %s9
      $region28: #{tpu_custom_call.1} parent=23 // pred_fallthru
        _
    $region24: #{tpu_custom_call.1} parent=5 // pred_fallthru
      _
    %p138 = scmp.le.s32.totalorder 1, %s9
    %p139 = scmp.lt.s32.totalorder %s9, 3
    %p140 = pnand %p138, %p139
    %p141 = pneg %p140
    // Predicated region
    $region29: #{tpu_custom_call.1} parent=5 // pred_check
      _
    $region30: #{tpu_custom_call.1} parent=5 // pred_check_branch
      %143 = sbr.rel (%p140) target = $region32
    $region31: #{tpu_custom_call.1} parent=5 // pred_region
      %s144 = ssub.s32 %s9, 1
      %s145 = smul.u32 2, %s14
      %p146 = scmp.lt.s32.totalorder %s145, 3
      %s147 = scalar_select %p146, %s145, 3
      %s148 = smul.addr %s147, 128
      %s149 = smul.addr %s148, 4
      %s150 = scalar_lea.vmem %s0, %s149
      %p151 = pneg %p35
      %p152 = pneg %p32
      %p153 = pneg %p56
      %p154 = pneg %p53
      %p155 = pneg %p77
      %p156 = pneg %p74
      %p157 = pneg %p103
      %p158 = pneg %p100
      %s159 = smul.u32 2, %s14
      %p160 = scmp.lt.s32.totalorder %s159, 3
      %s161 = scalar_select %p160, %s159, 3
      %s162 = smul.addr %s161, 16
      %s163 = smul.addr %s162, 4
      %s164 = scalar_lea.vmem %s3, %s163
      %s165 = smul.u32 2, %s14
      %p166 = scmp.lt.s32.totalorder %s165, 3
      %s167 = scalar_select %p166, %s165, 3
      %s168 = smul.addr %s167, 128
      %s169 = smul.addr %s168, 4
      %s170 = scalar_lea.vmem %s0, %s169
      %s171 = smul.u32 2, %s14
      %s172 = smul.u32 2, %s14
      %p173 = scmp.lt.s32.totalorder %s172, 3
      %s174 = scalar_select %p173, %s172, 3
      %s175 = smul.addr %s174, 16
      %s176 = smul.addr %s175, 4
      %s177 = scalar_lea.vmem %s3, %s176
      %s178 = smul.u32 2, %s14
      %v180 = vld [vmem:[%s170] sm:$0xff]
      %v181 = vld [vmem:[%s170 + $0x8] sm:$0xff]
      %v182 = vld [vmem:[%s170 + $0x10] sm:$0xff]
      %v183 = vld [vmem:[%s170 + $0x18] sm:$0xff]
      %v184 = vld [vmem:[%s170 + $0x20] sm:$0xff]
      %v185 = vld [vmem:[%s170 + $0x28] sm:$0xff]
      %v186 = vld [vmem:[%s170 + $0x30] sm:$0xff]
      %v187 = vld [vmem:[%s170 + $0x38] sm:$0xff]
      %v188 = vld [vmem:[%s170 + $0x40] sm:$0xff]
      %v189 = vld [vmem:[%s170 + $0x48] sm:$0xff]
      %v190 = vld [vmem:[%s170 + $0x50] sm:$0xff]
      %v191 = vld [vmem:[%s170 + $0x58] sm:$0xff]
      %v192 = vld [vmem:[%s170 + $0x60] sm:$0xff]
      %v193 = vld [vmem:[%s170 + $0x68] sm:$0xff]
      %v194 = vld [vmem:[%s170 + $0x70] sm:$0xff]
      %v195 = vld [vmem:[%s170 + $0x78] sm:$0xff]
      %v196 = vld [vmem:[%s170 + $0x80] sm:$0xff]
      %v197 = vld [vmem:[%s170 + $0x88] sm:$0xff]
      %v198 = vld [vmem:[%s170 + $0x90] sm:$0xff]
      %v199 = vld [vmem:[%s170 + $0x98] sm:$0xff]
      %v200 = vld [vmem:[%s170 + $0xa0] sm:$0xff]
      %v201 = vld [vmem:[%s170 + $0xa8] sm:$0xff]
      %v202 = vld [vmem:[%s170 + $0xb0] sm:$0xff]
      %v203 = vld [vmem:[%s170 + $0xb8] sm:$0xff]
      %v204 = vld [vmem:[%s170 + $0xc0] sm:$0xff]
      %v205 = vld [vmem:[%s170 + $0xc8] sm:$0xff]
      %v206 = vld [vmem:[%s170 + $0xd0] sm:$0xff]
      %v207 = vld [vmem:[%s170 + $0xd8] sm:$0xff]
      %v208 = vld [vmem:[%s170 + $0xe0] sm:$0xff]
      %v209 = vld [vmem:[%s170 + $0xe8] sm:$0xff]
      %v210 = vld [vmem:[%s170 + $0xf0] sm:$0xff]
      %v211 = vld [vmem:[%s170 + $0xf8] sm:$0xff]
      %v212 = vld [vmem:[%s170 + $0x100] sm:$0xff]
      %v213 = vld [vmem:[%s170 + $0x108] sm:$0xff]
      %v214 = vld [vmem:[%s170 + $0x110] sm:$0xff]
      %v215 = vld [vmem:[%s170 + $0x118] sm:$0xff]
      %v216 = vld [vmem:[%s170 + $0x120] sm:$0xff]
      %v217 = vld [vmem:[%s170 + $0x128] sm:$0xff]
      %v218 = vld [vmem:[%s170 + $0x130] sm:$0xff]
      %v219 = vld [vmem:[%s170 + $0x138] sm:$0xff]
      %v220 = vld [vmem:[%s170 + $0x140] sm:$0xff]
      %v221 = vld [vmem:[%s170 + $0x148] sm:$0xff]
      %v222 = vld [vmem:[%s170 + $0x150] sm:$0xff]
      %v223 = vld [vmem:[%s170 + $0x158] sm:$0xff]
      %v224 = vld [vmem:[%s170 + $0x160] sm:$0xff]
      %v225 = vld [vmem:[%s170 + $0x168] sm:$0xff]
      %v226 = vld [vmem:[%s170 + $0x170] sm:$0xff]
      %v227 = vld [vmem:[%s170 + $0x178] sm:$0xff]
      %v228 = vld [vmem:[%s170 + $0x180] sm:$0xff]
      %v229 = vld [vmem:[%s170 + $0x188] sm:$0xff]
      %v230 = vld [vmem:[%s170 + $0x190] sm:$0xff]
      %v231 = vld [vmem:[%s170 + $0x198] sm:$0xff]
      %v232 = vld [vmem:[%s170 + $0x1a0] sm:$0xff]
      %v233 = vld [vmem:[%s170 + $0x1a8] sm:$0xff]
      %v234 = vld [vmem:[%s170 + $0x1b0] sm:$0xff]
      %v235 = vld [vmem:[%s170 + $0x1b8] sm:$0xff]
      %v236 = vld [vmem:[%s170 + $0x1c0] sm:$0xff]
      %v237 = vld [vmem:[%s170 + $0x1c8] sm:$0xff]
      %v238 = vld [vmem:[%s170 + $0x1d0] sm:$0xff]
      %v239 = vld [vmem:[%s170 + $0x1d8] sm:$0xff]
      %v240 = vld [vmem:[%s170 + $0x1e0] sm:$0xff]
      %v241 = vld [vmem:[%s170 + $0x1e8] sm:$0xff]
      %v242 = vld [vmem:[%s170 + $0x1f0] sm:$0xff]
      %v243 = vld [vmem:[%s170 + $0x1f8] sm:$0xff]
      %v244 = vld [vmem:[%s170 + $0x200] sm:$0xff]
      %v245 = vld [vmem:[%s170 + $0x208] sm:$0xff]
      %v246 = vld [vmem:[%s170 + $0x210] sm:$0xff]
      %v247 = vld [vmem:[%s170 + $0x218] sm:$0xff]
      %v248 = vld [vmem:[%s170 + $0x220] sm:$0xff]
      %v249 = vld [vmem:[%s170 + $0x228] sm:$0xff]
      %v250 = vld [vmem:[%s170 + $0x230] sm:$0xff]
      %v251 = vld [vmem:[%s170 + $0x238] sm:$0xff]
      %v252 = vld [vmem:[%s170 + $0x240] sm:$0xff]
      %v253 = vld [vmem:[%s170 + $0x248] sm:$0xff]
      %v254 = vld [vmem:[%s170 + $0x250] sm:$0xff]
      %v255 = vld [vmem:[%s170 + $0x258] sm:$0xff]
      %v256 = vld [vmem:[%s170 + $0x260] sm:$0xff]
      %v257 = vld [vmem:[%s170 + $0x268] sm:$0xff]
      %v258 = vld [vmem:[%s170 + $0x270] sm:$0xff]
      %v259 = vld [vmem:[%s170 + $0x278] sm:$0xff]
      %v260 = vld [vmem:[%s170 + $0x280] sm:$0xff]
      %v261 = vld [vmem:[%s170 + $0x288] sm:$0xff]
      %v262 = vld [vmem:[%s170 + $0x290] sm:$0xff]
      %v263 = vld [vmem:[%s170 + $0x298] sm:$0xff]
      %v264 = vld [vmem:[%s170 + $0x2a0] sm:$0xff]
      %v265 = vld [vmem:[%s170 + $0x2a8] sm:$0xff]
      %v266 = vld [vmem:[%s170 + $0x2b0] sm:$0xff]
      %v267 = vld [vmem:[%s170 + $0x2b8] sm:$0xff]
      %v268 = vld [vmem:[%s170 + $0x2c0] sm:$0xff]
      %v269 = vld [vmem:[%s170 + $0x2c8] sm:$0xff]
      %v270 = vld [vmem:[%s170 + $0x2d0] sm:$0xff]
      %v271 = vld [vmem:[%s170 + $0x2d8] sm:$0xff]
      %v272 = vld [vmem:[%s170 + $0x2e0] sm:$0xff]
      %v273 = vld [vmem:[%s170 + $0x2e8] sm:$0xff]
      %v274 = vld [vmem:[%s170 + $0x2f0] sm:$0xff]
      %v275 = vld [vmem:[%s170 + $0x2f8] sm:$0xff]
      %v276 = vld [vmem:[%s170 + $0x300] sm:$0xff]
      %v277 = vld [vmem:[%s170 + $0x308] sm:$0xff]
      %v278 = vld [vmem:[%s170 + $0x310] sm:$0xff]
      %v279 = vld [vmem:[%s170 + $0x318] sm:$0xff]
      %v280 = vld [vmem:[%s170 + $0x320] sm:$0xff]
      %v281 = vld [vmem:[%s170 + $0x328] sm:$0xff]
      %v282 = vld [vmem:[%s170 + $0x330] sm:$0xff]
      %v283 = vld [vmem:[%s170 + $0x338] sm:$0xff]
      %v284 = vld [vmem:[%s170 + $0x340] sm:$0xff]
      %v285 = vld [vmem:[%s170 + $0x348] sm:$0xff]
      %v286 = vld [vmem:[%s170 + $0x350] sm:$0xff]
      %v287 = vld [vmem:[%s170 + $0x358] sm:$0xff]
      %v288 = vld [vmem:[%s170 + $0x360] sm:$0xff]
      %v289 = vld [vmem:[%s170 + $0x368] sm:$0xff]
      %v290 = vld [vmem:[%s170 + $0x370] sm:$0xff]
      %v291 = vld [vmem:[%s170 + $0x378] sm:$0xff]
      %v292 = vld [vmem:[%s170 + $0x380] sm:$0xff]
      %v293 = vld [vmem:[%s170 + $0x388] sm:$0xff]
      %v294 = vld [vmem:[%s170 + $0x390] sm:$0xff]
      %v295 = vld [vmem:[%s170 + $0x398] sm:$0xff]
      %v296 = vld [vmem:[%s170 + $0x3a0] sm:$0xff]
      %v297 = vld [vmem:[%s170 + $0x3a8] sm:$0xff]
      %v298 = vld [vmem:[%s170 + $0x3b0] sm:$0xff]
      %v299 = vld [vmem:[%s170 + $0x3b8] sm:$0xff]
      %v300 = vld [vmem:[%s170 + $0x3c0] sm:$0xff]
      %v301 = vld [vmem:[%s170 + $0x3c8] sm:$0xff]
      %v302 = vld [vmem:[%s170 + $0x3d0] sm:$0xff]
      %v303 = vld [vmem:[%s170 + $0x3d8] sm:$0xff]
      %v304 = vld [vmem:[%s170 + $0x3e0] sm:$0xff]
      %v305 = vld [vmem:[%s170 + $0x3e8] sm:$0xff]
      %v306 = vld [vmem:[%s170 + $0x3f0] sm:$0xff]
      %v307 = vld [vmem:[%s170 + $0x3f8] sm:$0xff]
      %v308 = vld [vmem:[%s1] sm:$0xff]
      %v309 = vld [vmem:[%s1 + $0x8] sm:$0xf]
      %v310 = vld [vmem:[%s1 + $0xc] sm:$0xff]
      %v311 = vld [vmem:[%s1 + $0x14] sm:$0xf]
      %v312 = vld [vmem:[%s1 + $0x18] sm:$0xff]
      %v313 = vld [vmem:[%s1 + $0x20] sm:$0xf]
      %v314 = vld [vmem:[%s1 + $0x24] sm:$0xff]
      %v315 = vld [vmem:[%s1 + $0x2c] sm:$0xf]
      %v316 = vld [vmem:[%s1 + $0x30] sm:$0xff]
      %v317 = vld [vmem:[%s1 + $0x38] sm:$0xf]
      %v318 = vld [vmem:[%s1 + $0x3c] sm:$0xff]
      %v319 = vld [vmem:[%s1 + $0x44] sm:$0xf]
      %v320 = vld [vmem:[%s1 + $0x48] sm:$0xff]
      %v321 = vld [vmem:[%s1 + $0x50] sm:$0xf]
      %v322 = vld [vmem:[%s1 + $0x54] sm:$0xff]
      %v323 = vld [vmem:[%s1 + $0x5c] sm:$0xf]
      %v324 = vld [vmem:[%s1 + $0x60] sm:$0xff]
      %v325 = vld [vmem:[%s1 + $0x68] sm:$0xf]
      %v326 = vld [vmem:[%s1 + $0x6c] sm:$0xff]
      %v327 = vld [vmem:[%s1 + $0x74] sm:$0xf]
      %v328 = vld [vmem:[%s1 + $0x78] sm:$0xff]
      %v329 = vld [vmem:[%s1 + $0x80] sm:$0xf]
      %v330 = vld [vmem:[%s1 + $0x84] sm:$0xff]
      %v331 = vld [vmem:[%s1 + $0x8c] sm:$0xf]
      %v332 = vld [vmem:[%s1 + $0x90] sm:$0xff]
      %v333 = vld [vmem:[%s1 + $0x98] sm:$0xf]
      %v334 = vld [vmem:[%s1 + $0x9c] sm:$0xff]
      %v335 = vld [vmem:[%s1 + $0xa4] sm:$0xf]
      %v336 = vld [vmem:[%s1 + $0xa8] sm:$0xff]
      %v337 = vld [vmem:[%s1 + $0xb0] sm:$0xf]
      %v338 = vld [vmem:[%s1 + $0xb4] sm:$0xff]
      %v339 = vld [vmem:[%s1 + $0xbc] sm:$0xf]
      %v340 = vld [vmem:[%s1 + $0xc0] sm:$0xff]
      %v341 = vld [vmem:[%s1 + $0xc8] sm:$0xf]
      %v342 = vld [vmem:[%s1 + $0xcc] sm:$0xff]
      %v343 = vld [vmem:[%s1 + $0xd4] sm:$0xf]
      %v344 = vld [vmem:[%s1 + $0xd8] sm:$0xff]
      %v345 = vld [vmem:[%s1 + $0xe0] sm:$0xf]
      %v346 = vld [vmem:[%s1 + $0xe4] sm:$0xff]
      %v347 = vld [vmem:[%s1 + $0xec] sm:$0xf]
      %v348 = vld [vmem:[%s1 + $0xf0] sm:$0xff]
      %v349 = vld [vmem:[%s1 + $0xf8] sm:$0xf]
      %v350 = vld [vmem:[%s1 + $0xfc] sm:$0xff]
      %v351 = vld [vmem:[%s1 + $0x104] sm:$0xf]
      %v352 = vld [vmem:[%s1 + $0x108] sm:$0xff]
      %v353 = vld [vmem:[%s1 + $0x110] sm:$0xf]
      %v354 = vld [vmem:[%s1 + $0x114] sm:$0xff]
      %v355 = vld [vmem:[%s1 + $0x11c] sm:$0xf]
      %v356 = vld [vmem:[%s1 + $0x120] sm:$0xff]
      %v357 = vld [vmem:[%s1 + $0x128] sm:$0xf]
      %v358 = vld [vmem:[%s1 + $0x12c] sm:$0xff]
      %v359 = vld [vmem:[%s1 + $0x134] sm:$0xf]
      %v360 = vld [vmem:[%s1 + $0x138] sm:$0xff]
      %v361 = vld [vmem:[%s1 + $0x140] sm:$0xf]
      %v362 = vld [vmem:[%s1 + $0x144] sm:$0xff]
      %v363 = vld [vmem:[%s1 + $0x14c] sm:$0xf]
      %v364 = vld [vmem:[%s1 + $0x150] sm:$0xff]
      %v365 = vld [vmem:[%s1 + $0x158] sm:$0xf]
      %v366 = vld [vmem:[%s1 + $0x15c] sm:$0xff]
      %v367 = vld [vmem:[%s1 + $0x164] sm:$0xf]
      %v368 = vld [vmem:[%s1 + $0x168] sm:$0xff]
      %v369 = vld [vmem:[%s1 + $0x170] sm:$0xf]
      %v370 = vld [vmem:[%s1 + $0x174] sm:$0xff]
      %v371 = vld [vmem:[%s1 + $0x17c] sm:$0xf]
      %v372 = vld [vmem:[%s1 + $0x180] sm:$0xff]
      %v373 = vld [vmem:[%s1 + $0x188] sm:$0xf]
      %v374 = vld [vmem:[%s1 + $0x18c] sm:$0xff]
      %v375 = vld [vmem:[%s1 + $0x194] sm:$0xf]
      %v376 = vld [vmem:[%s1 + $0x198] sm:$0xff]
      %v377 = vld [vmem:[%s1 + $0x1a0] sm:$0xf]
      %v378 = vld [vmem:[%s1 + $0x1a4] sm:$0xff]
      %v379 = vld [vmem:[%s1 + $0x1ac] sm:$0xf]
      %v380 = vld [vmem:[%s1 + $0x1b0] sm:$0xff]
      %v381 = vld [vmem:[%s1 + $0x1b8] sm:$0xf]
      %v382 = vld [vmem:[%s1 + $0x1bc] sm:$0xff]
      %v383 = vld [vmem:[%s1 + $0x1c4] sm:$0xf]
      %v384 = vld [vmem:[%s1 + $0x1c8] sm:$0xff]
      %v385 = vld [vmem:[%s1 + $0x1d0] sm:$0xf]
      %v386 = vld [vmem:[%s1 + $0x1d4] sm:$0xff]
      %v387 = vld [vmem:[%s1 + $0x1dc] sm:$0xf]
      %v388 = vld [vmem:[%s1 + $0x1e0] sm:$0xff]
      %v389 = vld [vmem:[%s1 + $0x1e8] sm:$0xf]
      %v390 = vld [vmem:[%s1 + $0x1ec] sm:$0xff]
      %v391 = vld [vmem:[%s1 + $0x1f4] sm:$0xf]
      %v392 = vld [vmem:[%s1 + $0x1f8] sm:$0xff]
      %v393 = vld [vmem:[%s1 + $0x200] sm:$0xf]
      %v394 = vld [vmem:[%s1 + $0x204] sm:$0xff]
      %v395 = vld [vmem:[%s1 + $0x20c] sm:$0xf]
      %v396 = vld [vmem:[%s1 + $0x210] sm:$0xff]
      %v397 = vld [vmem:[%s1 + $0x218] sm:$0xf]
      %v398 = vld [vmem:[%s1 + $0x21c] sm:$0xff]
      %v399 = vld [vmem:[%s1 + $0x224] sm:$0xf]
      %v400 = vld [vmem:[%s1 + $0x228] sm:$0xff]
      %v401 = vld [vmem:[%s1 + $0x230] sm:$0xf]
      %v402 = vld [vmem:[%s1 + $0x234] sm:$0xff]
      %v403 = vld [vmem:[%s1 + $0x23c] sm:$0xf]
      %v404 = vld [vmem:[%s1 + $0x240] sm:$0xff]
      %v405 = vld [vmem:[%s1 + $0x248] sm:$0xf]
      %v406 = vld [vmem:[%s1 + $0x24c] sm:$0xff]
      %v407 = vld [vmem:[%s1 + $0x254] sm:$0xf]
      %v408 = vld [vmem:[%s1 + $0x258] sm:$0xff]
      %v409 = vld [vmem:[%s1 + $0x260] sm:$0xf]
      %v410 = vld [vmem:[%s1 + $0x264] sm:$0xff]
      %v411 = vld [vmem:[%s1 + $0x26c] sm:$0xf]
      %v412 = vld [vmem:[%s1 + $0x270] sm:$0xff]
      %v413 = vld [vmem:[%s1 + $0x278] sm:$0xf]
      %v414 = vld [vmem:[%s1 + $0x27c] sm:$0xff]
      %v415 = vld [vmem:[%s1 + $0x284] sm:$0xf]
      %v416 = vld [vmem:[%s1 + $0x288] sm:$0xff]
      %v417 = vld [vmem:[%s1 + $0x290] sm:$0xf]
      %v418 = vld [vmem:[%s1 + $0x294] sm:$0xff]
      %v419 = vld [vmem:[%s1 + $0x29c] sm:$0xf]
      %v420 = vld [vmem:[%s1 + $0x2a0] sm:$0xff]
      %v421 = vld [vmem:[%s1 + $0x2a8] sm:$0xf]
      %v422 = vld [vmem:[%s1 + $0x2ac] sm:$0xff]
      %v423 = vld [vmem:[%s1 + $0x2b4] sm:$0xf]
      %v424 = vld [vmem:[%s1 + $0x2b8] sm:$0xff]
      %v425 = vld [vmem:[%s1 + $0x2c0] sm:$0xf]
      %v426 = vld [vmem:[%s1 + $0x2c4] sm:$0xff]
      %v427 = vld [vmem:[%s1 + $0x2cc] sm:$0xf]
      %v428 = vld [vmem:[%s1 + $0x2d0] sm:$0xff]
      %v429 = vld [vmem:[%s1 + $0x2d8] sm:$0xf]
      %v430 = vld [vmem:[%s1 + $0x2dc] sm:$0xff]
      %v431 = vld [vmem:[%s1 + $0x2e4] sm:$0xf]
      %v432 = vld [vmem:[%s1 + $0x2e8] sm:$0xff]
      %v433 = vld [vmem:[%s1 + $0x2f0] sm:$0xf]
      %v434 = vld [vmem:[%s1 + $0x2f4] sm:$0xff]
      %v435 = vld [vmem:[%s1 + $0x2fc] sm:$0xf]
      %v436 = vld [vmem:[%s1 + $0x300] sm:$0xff]
      %v437 = vld [vmem:[%s1 + $0x308] sm:$0xf]
      %v438 = vld [vmem:[%s1 + $0x30c] sm:$0xff]
      %v439 = vld [vmem:[%s1 + $0x314] sm:$0xf]
      %v440 = vld [vmem:[%s1 + $0x318] sm:$0xff]
      %v441 = vld [vmem:[%s1 + $0x320] sm:$0xf]
      %v442 = vld [vmem:[%s1 + $0x324] sm:$0xff]
      %v443 = vld [vmem:[%s1 + $0x32c] sm:$0xf]
      %v444 = vld [vmem:[%s1 + $0x330] sm:$0xff]
      %v445 = vld [vmem:[%s1 + $0x338] sm:$0xf]
      %v446 = vld [vmem:[%s1 + $0x33c] sm:$0xff]
      %v447 = vld [vmem:[%s1 + $0x344] sm:$0xf]
      %v448 = vld [vmem:[%s1 + $0x348] sm:$0xff]
      %v449 = vld [vmem:[%s1 + $0x350] sm:$0xf]
      %v450 = vld [vmem:[%s1 + $0x354] sm:$0xff]
      %v451 = vld [vmem:[%s1 + $0x35c] sm:$0xf]
      %v452 = vld [vmem:[%s1 + $0x360] sm:$0xff]
      %v453 = vld [vmem:[%s1 + $0x368] sm:$0xf]
      %v454 = vld [vmem:[%s1 + $0x36c] sm:$0xff]
      %v455 = vld [vmem:[%s1 + $0x374] sm:$0xf]
      %v456 = vld [vmem:[%s1 + $0x378] sm:$0xff]
      %v457 = vld [vmem:[%s1 + $0x380] sm:$0xf]
      %v458 = vld [vmem:[%s1 + $0x384] sm:$0xff]
      %v459 = vld [vmem:[%s1 + $0x38c] sm:$0xf]
      %v460 = vld [vmem:[%s1 + $0x390] sm:$0xff]
      %v461 = vld [vmem:[%s1 + $0x398] sm:$0xf]
      %v462 = vld [vmem:[%s1 + $0x39c] sm:$0xff]
      %v463 = vld [vmem:[%s1 + $0x3a4] sm:$0xf]
      %v464 = vld [vmem:[%s1 + $0x3a8] sm:$0xff]
      %v465 = vld [vmem:[%s1 + $0x3b0] sm:$0xf]
      %v466 = vld [vmem:[%s1 + $0x3b4] sm:$0xff]
      %v467 = vld [vmem:[%s1 + $0x3bc] sm:$0xf]
      %v468 = vld [vmem:[%s1 + $0x3c0] sm:$0xff]
      %v469 = vld [vmem:[%s1 + $0x3c8] sm:$0xf]
      %v470 = vld [vmem:[%s1 + $0x3cc] sm:$0xff]
      %v471 = vld [vmem:[%s1 + $0x3d4] sm:$0xf]
      %v472 = vld [vmem:[%s1 + $0x3d8] sm:$0xff]
      %v473 = vld [vmem:[%s1 + $0x3e0] sm:$0xf]
      %v474 = vld [vmem:[%s1 + $0x3e4] sm:$0xff]
      %v475 = vld [vmem:[%s1 + $0x3ec] sm:$0xf]
      %v476 = vld [vmem:[%s1 + $0x3f0] sm:$0xff]
      %v477 = vld [vmem:[%s1 + $0x3f8] sm:$0xf]
      %v478 = vld [vmem:[%s1 + $0x3fc] sm:$0xff]
      %v479 = vld [vmem:[%s1 + $0x404] sm:$0xf]
      %v480 = vld [vmem:[%s1 + $0x408] sm:$0xff]
      %v481 = vld [vmem:[%s1 + $0x410] sm:$0xf]
      %v482 = vld [vmem:[%s1 + $0x414] sm:$0xff]
      %v483 = vld [vmem:[%s1 + $0x41c] sm:$0xf]
      %v484 = vld [vmem:[%s1 + $0x420] sm:$0xff]
      %v485 = vld [vmem:[%s1 + $0x428] sm:$0xf]
      %v486 = vld [vmem:[%s1 + $0x42c] sm:$0xff]
      %v487 = vld [vmem:[%s1 + $0x434] sm:$0xf]
      %v488 = vld [vmem:[%s1 + $0x438] sm:$0xff]
      %v489 = vld [vmem:[%s1 + $0x440] sm:$0xf]
      %v490 = vld [vmem:[%s1 + $0x444] sm:$0xff]
      %v491 = vld [vmem:[%s1 + $0x44c] sm:$0xf]
      %v492 = vld [vmem:[%s1 + $0x450] sm:$0xff]
      %v493 = vld [vmem:[%s1 + $0x458] sm:$0xf]
      %v494 = vld [vmem:[%s1 + $0x45c] sm:$0xff]
      %v495 = vld [vmem:[%s1 + $0x464] sm:$0xf]
      %v496 = vld [vmem:[%s1 + $0x468] sm:$0xff]
      %v497 = vld [vmem:[%s1 + $0x470] sm:$0xf]
      %v498 = vld [vmem:[%s1 + $0x474] sm:$0xff]
      %v499 = vld [vmem:[%s1 + $0x47c] sm:$0xf]
      %v500 = vld [vmem:[%s1 + $0x480] sm:$0xff]
      %v501 = vld [vmem:[%s1 + $0x488] sm:$0xf]
      %v502 = vld [vmem:[%s1 + $0x48c] sm:$0xff]
      %v503 = vld [vmem:[%s1 + $0x494] sm:$0xf]
      %v504 = vld [vmem:[%s1 + $0x498] sm:$0xff]
      %v505 = vld [vmem:[%s1 + $0x4a0] sm:$0xf]
      %v506 = vld [vmem:[%s1 + $0x4a4] sm:$0xff]
      %v507 = vld [vmem:[%s1 + $0x4ac] sm:$0xf]
      %v508 = vld [vmem:[%s1 + $0x4b0] sm:$0xff]
      %v509 = vld [vmem:[%s1 + $0x4b8] sm:$0xf]
      %v510 = vld [vmem:[%s1 + $0x4bc] sm:$0xff]
      %v511 = vld [vmem:[%s1 + $0x4c4] sm:$0xf]
      %v512 = vld [vmem:[%s1 + $0x4c8] sm:$0xff]
      %v513 = vld [vmem:[%s1 + $0x4d0] sm:$0xf]
      %v514 = vld [vmem:[%s1 + $0x4d4] sm:$0xff]
      %v515 = vld [vmem:[%s1 + $0x4dc] sm:$0xf]
      %v516 = vld [vmem:[%s1 + $0x4e0] sm:$0xff]
      %v517 = vld [vmem:[%s1 + $0x4e8] sm:$0xf]
      %v518 = vld [vmem:[%s1 + $0x4ec] sm:$0xff]
      %v519 = vld [vmem:[%s1 + $0x4f4] sm:$0xf]
      %v520 = vld [vmem:[%s1 + $0x4f8] sm:$0xff]
      %v521 = vld [vmem:[%s1 + $0x500] sm:$0xf]
      %v522 = vld [vmem:[%s1 + $0x504] sm:$0xff]
      %v523 = vld [vmem:[%s1 + $0x50c] sm:$0xf]
      %v524 = vld [vmem:[%s1 + $0x510] sm:$0xff]
      %v525 = vld [vmem:[%s1 + $0x518] sm:$0xf]
      %v526 = vld [vmem:[%s1 + $0x51c] sm:$0xff]
      %v527 = vld [vmem:[%s1 + $0x524] sm:$0xf]
      %v528 = vld [vmem:[%s1 + $0x528] sm:$0xff]
      %v529 = vld [vmem:[%s1 + $0x530] sm:$0xf]
      %v530 = vld [vmem:[%s1 + $0x534] sm:$0xff]
      %v531 = vld [vmem:[%s1 + $0x53c] sm:$0xf]
      %v532 = vld [vmem:[%s1 + $0x540] sm:$0xff]
      %v533 = vld [vmem:[%s1 + $0x548] sm:$0xf]
      %v534 = vld [vmem:[%s1 + $0x54c] sm:$0xff]
      %v535 = vld [vmem:[%s1 + $0x554] sm:$0xf]
      %v536 = vld [vmem:[%s1 + $0x558] sm:$0xff]
      %v537 = vld [vmem:[%s1 + $0x560] sm:$0xf]
      %v538 = vld [vmem:[%s1 + $0x564] sm:$0xff]
      %v539 = vld [vmem:[%s1 + $0x56c] sm:$0xf]
      %v540 = vld [vmem:[%s1 + $0x570] sm:$0xff]
      %v541 = vld [vmem:[%s1 + $0x578] sm:$0xf]
      %v542 = vld [vmem:[%s1 + $0x57c] sm:$0xff]
      %v543 = vld [vmem:[%s1 + $0x584] sm:$0xf]
      %v544 = vld [vmem:[%s1 + $0x588] sm:$0xff]
      %v545 = vld [vmem:[%s1 + $0x590] sm:$0xf]
      %v546 = vld [vmem:[%s1 + $0x594] sm:$0xff]
      %v547 = vld [vmem:[%s1 + $0x59c] sm:$0xf]
      %v548 = vld [vmem:[%s1 + $0x5a0] sm:$0xff]
      %v549 = vld [vmem:[%s1 + $0x5a8] sm:$0xf]
      %v550 = vld [vmem:[%s1 + $0x5ac] sm:$0xff]
      %v551 = vld [vmem:[%s1 + $0x5b4] sm:$0xf]
      %v552 = vld [vmem:[%s1 + $0x5b8] sm:$0xff]
      %v553 = vld [vmem:[%s1 + $0x5c0] sm:$0xf]
      %v554 = vld [vmem:[%s1 + $0x5c4] sm:$0xff]
      %v555 = vld [vmem:[%s1 + $0x5cc] sm:$0xf]
      %v556 = vld [vmem:[%s1 + $0x5d0] sm:$0xff]
      %v557 = vld [vmem:[%s1 + $0x5d8] sm:$0xf]
      %v558 = vld [vmem:[%s1 + $0x5dc] sm:$0xff]
      %v559 = vld [vmem:[%s1 + $0x5e4] sm:$0xf]
      %v560 = vld [vmem:[%s1 + $0x5e8] sm:$0xff]
      %v561 = vld [vmem:[%s1 + $0x5f0] sm:$0xf]
      %v562 = vld [vmem:[%s1 + $0x5f4] sm:$0xff]
      %v563 = vld [vmem:[%s1 + $0x5fc] sm:$0xf]
      %v692 = vunpack.c.l.b16 %v180
      %v693 = vunpack.c.h.b16 %v180
      %v694 = vunpack.c.l.b16 %v181
      %v695 = vunpack.c.h.b16 %v181
      %v696 = vunpack.c.l.b16 %v182
      %v697 = vunpack.c.h.b16 %v182
      %v698 = vunpack.c.l.b16 %v183
      %v699 = vunpack.c.h.b16 %v183
      %v700 = vunpack.c.l.b16 %v184
      %v701 = vunpack.c.h.b16 %v184
      %v702 = vunpack.c.l.b16 %v185
      %v703 = vunpack.c.h.b16 %v185
      %v704 = vunpack.c.l.b16 %v186
      %v705 = vunpack.c.h.b16 %v186
      %v706 = vunpack.c.l.b16 %v187
      %v707 = vunpack.c.h.b16 %v187
      %v708 = vunpack.c.l.b16 %v188
      %v709 = vunpack.c.h.b16 %v188
      %v710 = vunpack.c.l.b16 %v189
      %v711 = vunpack.c.h.b16 %v189
      %v712 = vunpack.c.l.b16 %v190
      %v713 = vunpack.c.h.b16 %v190
      %v714 = vunpack.c.l.b16 %v191
      %v715 = vunpack.c.h.b16 %v191
      %v716 = vunpack.c.l.b16 %v192
      %v717 = vunpack.c.h.b16 %v192
      %v718 = vunpack.c.l.b16 %v193
      %v719 = vunpack.c.h.b16 %v193
      %v720 = vunpack.c.l.b16 %v194
      %v721 = vunpack.c.h.b16 %v194
      %v722 = vunpack.c.l.b16 %v195
      %v723 = vunpack.c.h.b16 %v195
      %v724 = vunpack.c.l.b16 %v196
      %v725 = vunpack.c.h.b16 %v196
      %v726 = vunpack.c.l.b16 %v197
      %v727 = vunpack.c.h.b16 %v197
      %v728 = vunpack.c.l.b16 %v198
      %v729 = vunpack.c.h.b16 %v198
      %v730 = vunpack.c.l.b16 %v199
      %v731 = vunpack.c.h.b16 %v199
      %v732 = vunpack.c.l.b16 %v200
      %v733 = vunpack.c.h.b16 %v200
      %v734 = vunpack.c.l.b16 %v201
      %v735 = vunpack.c.h.b16 %v201
      %v736 = vunpack.c.l.b16 %v202
      %v737 = vunpack.c.h.b16 %v202
      %v738 = vunpack.c.l.b16 %v203
      %v739 = vunpack.c.h.b16 %v203
      %v740 = vunpack.c.l.b16 %v204
      %v741 = vunpack.c.h.b16 %v204
      %v742 = vunpack.c.l.b16 %v205
      %v743 = vunpack.c.h.b16 %v205
      %v744 = vunpack.c.l.b16 %v206
      %v745 = vunpack.c.h.b16 %v206
      %v746 = vunpack.c.l.b16 %v207
      %v747 = vunpack.c.h.b16 %v207
      %v748 = vunpack.c.l.b16 %v208
      %v749 = vunpack.c.h.b16 %v208
      %v750 = vunpack.c.l.b16 %v209
      %v751 = vunpack.c.h.b16 %v209
      %v752 = vunpack.c.l.b16 %v210
      %v753 = vunpack.c.h.b16 %v210
      %v754 = vunpack.c.l.b16 %v211
      %v755 = vunpack.c.h.b16 %v211
      %v756 = vunpack.c.l.b16 %v212
      %v757 = vunpack.c.h.b16 %v212
      %v758 = vunpack.c.l.b16 %v213
      %v759 = vunpack.c.h.b16 %v213
      %v760 = vunpack.c.l.b16 %v214
      %v761 = vunpack.c.h.b16 %v214
      %v762 = vunpack.c.l.b16 %v215
      %v763 = vunpack.c.h.b16 %v215
      %v764 = vunpack.c.l.b16 %v216
      %v765 = vunpack.c.h.b16 %v216
      %v766 = vunpack.c.l.b16 %v217
      %v767 = vunpack.c.h.b16 %v217
      %v768 = vunpack.c.l.b16 %v218
      %v769 = vunpack.c.h.b16 %v218
      %v770 = vunpack.c.l.b16 %v219
      %v771 = vunpack.c.h.b16 %v219
      %v772 = vunpack.c.l.b16 %v220
      %v773 = vunpack.c.h.b16 %v220
      %v774 = vunpack.c.l.b16 %v221
      %v775 = vunpack.c.h.b16 %v221
      %v776 = vunpack.c.l.b16 %v222
      %v777 = vunpack.c.h.b16 %v222
      %v778 = vunpack.c.l.b16 %v223
      %v779 = vunpack.c.h.b16 %v223
      %v780 = vunpack.c.l.b16 %v224
      %v781 = vunpack.c.h.b16 %v224
      %v782 = vunpack.c.l.b16 %v225
      %v783 = vunpack.c.h.b16 %v225
      %v784 = vunpack.c.l.b16 %v226
      %v785 = vunpack.c.h.b16 %v226
      %v786 = vunpack.c.l.b16 %v227
      %v787 = vunpack.c.h.b16 %v227
      %v788 = vunpack.c.l.b16 %v228
      %v789 = vunpack.c.h.b16 %v228
      %v790 = vunpack.c.l.b16 %v229
      %v791 = vunpack.c.h.b16 %v229
      %v792 = vunpack.c.l.b16 %v230
      %v793 = vunpack.c.h.b16 %v230
      %v794 = vunpack.c.l.b16 %v231
      %v795 = vunpack.c.h.b16 %v231
      %v796 = vunpack.c.l.b16 %v232
      %v797 = vunpack.c.h.b16 %v232
      %v798 = vunpack.c.l.b16 %v233
      %v799 = vunpack.c.h.b16 %v233
      %v800 = vunpack.c.l.b16 %v234
      %v801 = vunpack.c.h.b16 %v234
      %v802 = vunpack.c.l.b16 %v235
      %v803 = vunpack.c.h.b16 %v235
      %v804 = vunpack.c.l.b16 %v236
      %v805 = vunpack.c.h.b16 %v236
      %v806 = vunpack.c.l.b16 %v237
      %v807 = vunpack.c.h.b16 %v237
      %v808 = vunpack.c.l.b16 %v238
      %v809 = vunpack.c.h.b16 %v238
      %v810 = vunpack.c.l.b16 %v239
      %v811 = vunpack.c.h.b16 %v239
      %v812 = vunpack.c.l.b16 %v240
      %v813 = vunpack.c.h.b16 %v240
      %v814 = vunpack.c.l.b16 %v241
      %v815 = vunpack.c.h.b16 %v241
      %v816 = vunpack.c.l.b16 %v242
      %v817 = vunpack.c.h.b16 %v242
      %v818 = vunpack.c.l.b16 %v243
      %v819 = vunpack.c.h.b16 %v243
      %v820 = vunpack.c.l.b16 %v244
      %v821 = vunpack.c.h.b16 %v244
      %v822 = vunpack.c.l.b16 %v245
      %v823 = vunpack.c.h.b16 %v245
      %v824 = vunpack.c.l.b16 %v246
      %v825 = vunpack.c.h.b16 %v246
      %v826 = vunpack.c.l.b16 %v247
      %v827 = vunpack.c.h.b16 %v247
      %v828 = vunpack.c.l.b16 %v248
      %v829 = vunpack.c.h.b16 %v248
      %v830 = vunpack.c.l.b16 %v249
      %v831 = vunpack.c.h.b16 %v249
      %v832 = vunpack.c.l.b16 %v250
      %v833 = vunpack.c.h.b16 %v250
      %v834 = vunpack.c.l.b16 %v251
      %v835 = vunpack.c.h.b16 %v251
      %v836 = vunpack.c.l.b16 %v252
      %v837 = vunpack.c.h.b16 %v252
      %v838 = vunpack.c.l.b16 %v253
      %v839 = vunpack.c.h.b16 %v253
      %v840 = vunpack.c.l.b16 %v254
      %v841 = vunpack.c.h.b16 %v254
      %v842 = vunpack.c.l.b16 %v255
      %v843 = vunpack.c.h.b16 %v255
      %v844 = vunpack.c.l.b16 %v256
      %v845 = vunpack.c.h.b16 %v256
      %v846 = vunpack.c.l.b16 %v257
      %v847 = vunpack.c.h.b16 %v257
      %v848 = vunpack.c.l.b16 %v258
      %v849 = vunpack.c.h.b16 %v258
      %v850 = vunpack.c.l.b16 %v259
      %v851 = vunpack.c.h.b16 %v259
      %v852 = vunpack.c.l.b16 %v260
      %v853 = vunpack.c.h.b16 %v260
      %v854 = vunpack.c.l.b16 %v261
      %v855 = vunpack.c.h.b16 %v261
      %v856 = vunpack.c.l.b16 %v262
      %v857 = vunpack.c.h.b16 %v262
      %v858 = vunpack.c.l.b16 %v263
      %v859 = vunpack.c.h.b16 %v263
      %v860 = vunpack.c.l.b16 %v264
      %v861 = vunpack.c.h.b16 %v264
      %v862 = vunpack.c.l.b16 %v265
      %v863 = vunpack.c.h.b16 %v265
      %v864 = vunpack.c.l.b16 %v266
      %v865 = vunpack.c.h.b16 %v266
      %v866 = vunpack.c.l.b16 %v267
      %v867 = vunpack.c.h.b16 %v267
      %v868 = vunpack.c.l.b16 %v268
      %v869 = vunpack.c.h.b16 %v268
      %v870 = vunpack.c.l.b16 %v269
      %v871 = vunpack.c.h.b16 %v269
      %v872 = vunpack.c.l.b16 %v270
      %v873 = vunpack.c.h.b16 %v270
      %v874 = vunpack.c.l.b16 %v271
      %v875 = vunpack.c.h.b16 %v271
      %v876 = vunpack.c.l.b16 %v272
      %v877 = vunpack.c.h.b16 %v272
      %v878 = vunpack.c.l.b16 %v273
      %v879 = vunpack.c.h.b16 %v273
      %v880 = vunpack.c.l.b16 %v274
      %v881 = vunpack.c.h.b16 %v274
      %v882 = vunpack.c.l.b16 %v275
      %v883 = vunpack.c.h.b16 %v275
      %v884 = vunpack.c.l.b16 %v276
      %v885 = vunpack.c.h.b16 %v276
      %v886 = vunpack.c.l.b16 %v277
      %v887 = vunpack.c.h.b16 %v277
      %v888 = vunpack.c.l.b16 %v278
      %v889 = vunpack.c.h.b16 %v278
      %v890 = vunpack.c.l.b16 %v279
      %v891 = vunpack.c.h.b16 %v279
      %v892 = vunpack.c.l.b16 %v280
      %v893 = vunpack.c.h.b16 %v280
      %v894 = vunpack.c.l.b16 %v281
      %v895 = vunpack.c.h.b16 %v281
      %v896 = vunpack.c.l.b16 %v282
      %v897 = vunpack.c.h.b16 %v282
      %v898 = vunpack.c.l.b16 %v283
      %v899 = vunpack.c.h.b16 %v283
      %v900 = vunpack.c.l.b16 %v284
      %v901 = vunpack.c.h.b16 %v284
      %v902 = vunpack.c.l.b16 %v285
      %v903 = vunpack.c.h.b16 %v285
      %v904 = vunpack.c.l.b16 %v286
      %v905 = vunpack.c.h.b16 %v286
      %v906 = vunpack.c.l.b16 %v287
      %v907 = vunpack.c.h.b16 %v287
      %v908 = vunpack.c.l.b16 %v288
      %v909 = vunpack.c.h.b16 %v288
      %v910 = vunpack.c.l.b16 %v289
      %v911 = vunpack.c.h.b16 %v289
      %v912 = vunpack.c.l.b16 %v290
      %v913 = vunpack.c.h.b16 %v290
      %v914 = vunpack.c.l.b16 %v291
      %v915 = vunpack.c.h.b16 %v291
      %v916 = vunpack.c.l.b16 %v292
      %v917 = vunpack.c.h.b16 %v292
      %v918 = vunpack.c.l.b16 %v293
      %v919 = vunpack.c.h.b16 %v293
      %v920 = vunpack.c.l.b16 %v294
      %v921 = vunpack.c.h.b16 %v294
      %v922 = vunpack.c.l.b16 %v295
      %v923 = vunpack.c.h.b16 %v295
      %v924 = vunpack.c.l.b16 %v296
      %v925 = vunpack.c.h.b16 %v296
      %v926 = vunpack.c.l.b16 %v297
      %v927 = vunpack.c.h.b16 %v297
      %v928 = vunpack.c.l.b16 %v298
      %v929 = vunpack.c.h.b16 %v298
      %v930 = vunpack.c.l.b16 %v299
      %v931 = vunpack.c.h.b16 %v299
      %v932 = vunpack.c.l.b16 %v300
      %v933 = vunpack.c.h.b16 %v300
      %v934 = vunpack.c.l.b16 %v301
      %v935 = vunpack.c.h.b16 %v301
      %v936 = vunpack.c.l.b16 %v302
      %v937 = vunpack.c.h.b16 %v302
      %v938 = vunpack.c.l.b16 %v303
      %v939 = vunpack.c.h.b16 %v303
      %v940 = vunpack.c.l.b16 %v304
      %v941 = vunpack.c.h.b16 %v304
      %v942 = vunpack.c.l.b16 %v305
      %v943 = vunpack.c.h.b16 %v305
      %v944 = vunpack.c.l.b16 %v306
      %v945 = vunpack.c.h.b16 %v306
      %v946 = vunpack.c.l.b16 %v307
      %v947 = vunpack.c.h.b16 %v307
      %v948 = vpack.c.b16 %v700, %v692
      %v949 = vpack.c.b16 %v701, %v693
      %v950 = vpack.c.b16 %v702, %v694
      %v951 = vpack.c.b16 %v703, %v695
      %v952 = vpack.c.b16 %v704, %v696
      %v953 = vpack.c.b16 %v705, %v697
      %v954 = vpack.c.b16 %v706, %v698
      %v955 = vpack.c.b16 %v707, %v699
      %v956 = vpack.c.b16 %v716, %v708
      %v957 = vpack.c.b16 %v717, %v709
      %v958 = vpack.c.b16 %v718, %v710
      %v959 = vpack.c.b16 %v719, %v711
      %v960 = vpack.c.b16 %v720, %v712
      %v961 = vpack.c.b16 %v721, %v713
      %v962 = vpack.c.b16 %v722, %v714
      %v963 = vpack.c.b16 %v723, %v715
      %v964 = vpack.c.b16 %v732, %v724
      %v965 = vpack.c.b16 %v733, %v725
      %v966 = vpack.c.b16 %v734, %v726
      %v967 = vpack.c.b16 %v735, %v727
      %v968 = vpack.c.b16 %v736, %v728
      %v969 = vpack.c.b16 %v737, %v729
      %v970 = vpack.c.b16 %v738, %v730
      %v971 = vpack.c.b16 %v739, %v731
      %v972 = vpack.c.b16 %v748, %v740
      %v973 = vpack.c.b16 %v749, %v741
      %v974 = vpack.c.b16 %v750, %v742
      %v975 = vpack.c.b16 %v751, %v743
      %v976 = vpack.c.b16 %v752, %v744
      %v977 = vpack.c.b16 %v753, %v745
      %v978 = vpack.c.b16 %v754, %v746
      %v979 = vpack.c.b16 %v755, %v747
      %v980 = vpack.c.b16 %v764, %v756
      %v981 = vpack.c.b16 %v765, %v757
      %v982 = vpack.c.b16 %v766, %v758
      %v983 = vpack.c.b16 %v767, %v759
      %v984 = vpack.c.b16 %v768, %v760
      %v985 = vpack.c.b16 %v769, %v761
      %v986 = vpack.c.b16 %v770, %v762
      %v987 = vpack.c.b16 %v771, %v763
      %v988 = vpack.c.b16 %v780, %v772
      %v989 = vpack.c.b16 %v781, %v773
      %v990 = vpack.c.b16 %v782, %v774
      %v991 = vpack.c.b16 %v783, %v775
      %v992 = vpack.c.b16 %v784, %v776
      %v993 = vpack.c.b16 %v785, %v777
      %v994 = vpack.c.b16 %v786, %v778
      %v995 = vpack.c.b16 %v787, %v779
      %v996 = vpack.c.b16 %v796, %v788
      %v997 = vpack.c.b16 %v797, %v789
      %v998 = vpack.c.b16 %v798, %v790
      %v999 = vpack.c.b16 %v799, %v791
      %v1000 = vpack.c.b16 %v800, %v792
      %v1001 = vpack.c.b16 %v801, %v793
      %v1002 = vpack.c.b16 %v802, %v794
      %v1003 = vpack.c.b16 %v803, %v795
      %v1004 = vpack.c.b16 %v812, %v804
      %v1005 = vpack.c.b16 %v813, %v805
      %v1006 = vpack.c.b16 %v814, %v806
      %v1007 = vpack.c.b16 %v815, %v807
      %v1008 = vpack.c.b16 %v816, %v808
      %v1009 = vpack.c.b16 %v817, %v809
      %v1010 = vpack.c.b16 %v818, %v810
      %v1011 = vpack.c.b16 %v819, %v811
      %v1012 = vpack.c.b16 %v828, %v820
      %v1013 = vpack.c.b16 %v829, %v821
      %v1014 = vpack.c.b16 %v830, %v822
      %v1015 = vpack.c.b16 %v831, %v823
      %v1016 = vpack.c.b16 %v832, %v824
      %v1017 = vpack.c.b16 %v833, %v825
      %v1018 = vpack.c.b16 %v834, %v826
      %v1019 = vpack.c.b16 %v835, %v827
      %v1020 = vpack.c.b16 %v844, %v836
      %v1021 = vpack.c.b16 %v845, %v837
      %v1022 = vpack.c.b16 %v846, %v838
      %v1023 = vpack.c.b16 %v847, %v839
      %v1024 = vpack.c.b16 %v848, %v840
      %v1025 = vpack.c.b16 %v849, %v841
      %v1026 = vpack.c.b16 %v850, %v842
      %v1027 = vpack.c.b16 %v851, %v843
      %v1028 = vpack.c.b16 %v860, %v852
      %v1029 = vpack.c.b16 %v861, %v853
      %v1030 = vpack.c.b16 %v862, %v854
      %v1031 = vpack.c.b16 %v863, %v855
      %v1032 = vpack.c.b16 %v864, %v856
      %v1033 = vpack.c.b16 %v865, %v857
      %v1034 = vpack.c.b16 %v866, %v858
      %v1035 = vpack.c.b16 %v867, %v859
      %v1036 = vpack.c.b16 %v876, %v868
      %v1037 = vpack.c.b16 %v877, %v869
      %v1038 = vpack.c.b16 %v878, %v870
      %v1039 = vpack.c.b16 %v879, %v871
      %v1040 = vpack.c.b16 %v880, %v872
      %v1041 = vpack.c.b16 %v881, %v873
      %v1042 = vpack.c.b16 %v882, %v874
      %v1043 = vpack.c.b16 %v883, %v875
      %v1044 = vpack.c.b16 %v892, %v884
      %v1045 = vpack.c.b16 %v893, %v885
      %v1046 = vpack.c.b16 %v894, %v886
      %v1047 = vpack.c.b16 %v895, %v887
      %v1048 = vpack.c.b16 %v896, %v888
      %v1049 = vpack.c.b16 %v897, %v889
      %v1050 = vpack.c.b16 %v898, %v890
      %v1051 = vpack.c.b16 %v899, %v891
      %v1052 = vpack.c.b16 %v908, %v900
      %v1053 = vpack.c.b16 %v909, %v901
      %v1054 = vpack.c.b16 %v910, %v902
      %v1055 = vpack.c.b16 %v911, %v903
      %v1056 = vpack.c.b16 %v912, %v904
      %v1057 = vpack.c.b16 %v913, %v905
      %v1058 = vpack.c.b16 %v914, %v906
      %v1059 = vpack.c.b16 %v915, %v907
      %v1060 = vpack.c.b16 %v924, %v916
      %v1061 = vpack.c.b16 %v925, %v917
      %v1062 = vpack.c.b16 %v926, %v918
      %v1063 = vpack.c.b16 %v927, %v919
      %v1064 = vpack.c.b16 %v928, %v920
      %v1065 = vpack.c.b16 %v929, %v921
      %v1066 = vpack.c.b16 %v930, %v922
      %v1067 = vpack.c.b16 %v931, %v923
      %v1068 = vpack.c.b16 %v940, %v932
      %v1069 = vpack.c.b16 %v941, %v933
      %v1070 = vpack.c.b16 %v942, %v934
      %v1071 = vpack.c.b16 %v943, %v935
      %v1072 = vpack.c.b16 %v944, %v936
      %v1073 = vpack.c.b16 %v945, %v937
      %v1074 = vpack.c.b16 %v946, %v938
      %v1075 = vpack.c.b16 %v947, %v939
      %v1460 = vunpack.c.l.b16 %v308
      %v1461 = vunpack.c.h.b16 %v308
      %v1462 = vunpack.c.l.b16 %v309
      %v1463 = vunpack.c.l.b16 %v310
      %v1464 = vunpack.c.h.b16 %v310
      %v1465 = vunpack.c.l.b16 %v311
      %v1466 = vunpack.c.l.b16 %v312
      %v1467 = vunpack.c.h.b16 %v312
      %v1468 = vunpack.c.l.b16 %v313
      %v1469 = vunpack.c.l.b16 %v314
      %v1470 = vunpack.c.h.b16 %v314
      %v1471 = vunpack.c.l.b16 %v315
      %v1472 = vunpack.c.l.b16 %v316
      %v1473 = vunpack.c.h.b16 %v316
      %v1474 = vunpack.c.l.b16 %v317
      %v1475 = vunpack.c.l.b16 %v318
      %v1476 = vunpack.c.h.b16 %v318
      %v1477 = vunpack.c.l.b16 %v319
      %v1478 = vunpack.c.l.b16 %v320
      %v1479 = vunpack.c.h.b16 %v320
      %v1480 = vunpack.c.l.b16 %v321
      %v1481 = vunpack.c.l.b16 %v322
      %v1482 = vunpack.c.h.b16 %v322
      %v1483 = vunpack.c.l.b16 %v323
      %v1484 = vunpack.c.l.b16 %v324
      %v1485 = vunpack.c.h.b16 %v324
      %v1486 = vunpack.c.l.b16 %v325
      %v1487 = vunpack.c.l.b16 %v326
      %v1488 = vunpack.c.h.b16 %v326
      %v1489 = vunpack.c.l.b16 %v327
      %v1490 = vunpack.c.l.b16 %v328
      %v1491 = vunpack.c.h.b16 %v328
      %v1492 = vunpack.c.l.b16 %v329
      %v1493 = vunpack.c.l.b16 %v330
      %v1494 = vunpack.c.h.b16 %v330
      %v1495 = vunpack.c.l.b16 %v331
      %v1496 = vunpack.c.l.b16 %v332
      %v1497 = vunpack.c.h.b16 %v332
      %v1498 = vunpack.c.l.b16 %v333
      %v1499 = vunpack.c.l.b16 %v334
      %v1500 = vunpack.c.h.b16 %v334
      %v1501 = vunpack.c.l.b16 %v335
      %v1502 = vunpack.c.l.b16 %v336
      %v1503 = vunpack.c.h.b16 %v336
      %v1504 = vunpack.c.l.b16 %v337
      %v1505 = vunpack.c.l.b16 %v338
      %v1506 = vunpack.c.h.b16 %v338
      %v1507 = vunpack.c.l.b16 %v339
      %v1508 = vunpack.c.l.b16 %v340
      %v1509 = vunpack.c.h.b16 %v340
      %v1510 = vunpack.c.l.b16 %v341
      %v1511 = vunpack.c.l.b16 %v342
      %v1512 = vunpack.c.h.b16 %v342
      %v1513 = vunpack.c.l.b16 %v343
      %v1514 = vunpack.c.l.b16 %v344
      %v1515 = vunpack.c.h.b16 %v344
      %v1516 = vunpack.c.l.b16 %v345
      %v1517 = vunpack.c.l.b16 %v346
      %v1518 = vunpack.c.h.b16 %v346
      %v1519 = vunpack.c.l.b16 %v347
      %v1520 = vunpack.c.l.b16 %v348
      %v1521 = vunpack.c.h.b16 %v348
      %v1522 = vunpack.c.l.b16 %v349
      %v1523 = vunpack.c.l.b16 %v350
      %v1524 = vunpack.c.h.b16 %v350
      %v1525 = vunpack.c.l.b16 %v351
      %v1526 = vunpack.c.l.b16 %v352
      %v1527 = vunpack.c.h.b16 %v352
      %v1528 = vunpack.c.l.b16 %v353
      %v1529 = vunpack.c.l.b16 %v354
      %v1530 = vunpack.c.h.b16 %v354
      %v1531 = vunpack.c.l.b16 %v355
      %v1532 = vunpack.c.l.b16 %v356
      %v1533 = vunpack.c.h.b16 %v356
      %v1534 = vunpack.c.l.b16 %v357
      %v1535 = vunpack.c.l.b16 %v358
      %v1536 = vunpack.c.h.b16 %v358
      %v1537 = vunpack.c.l.b16 %v359
      %v1538 = vunpack.c.l.b16 %v360
      %v1539 = vunpack.c.h.b16 %v360
      %v1540 = vunpack.c.l.b16 %v361
      %v1541 = vunpack.c.l.b16 %v362
      %v1542 = vunpack.c.h.b16 %v362
      %v1543 = vunpack.c.l.b16 %v363
      %v1544 = vunpack.c.l.b16 %v364
      %v1545 = vunpack.c.h.b16 %v364
      %v1546 = vunpack.c.l.b16 %v365
      %v1547 = vunpack.c.l.b16 %v366
      %v1548 = vunpack.c.h.b16 %v366
      %v1549 = vunpack.c.l.b16 %v367
      %v1550 = vunpack.c.l.b16 %v368
      %v1551 = vunpack.c.h.b16 %v368
      %v1552 = vunpack.c.l.b16 %v369
      %v1553 = vunpack.c.l.b16 %v370
      %v1554 = vunpack.c.h.b16 %v370
      %v1555 = vunpack.c.l.b16 %v371
      %v1556 = vunpack.c.l.b16 %v372
      %v1557 = vunpack.c.h.b16 %v372
      %v1558 = vunpack.c.l.b16 %v373
      %v1559 = vunpack.c.l.b16 %v374
      %v1560 = vunpack.c.h.b16 %v374
      %v1561 = vunpack.c.l.b16 %v375
      %v1562 = vunpack.c.l.b16 %v376
      %v1563 = vunpack.c.h.b16 %v376
      %v1564 = vunpack.c.l.b16 %v377
      %v1565 = vunpack.c.l.b16 %v378
      %v1566 = vunpack.c.h.b16 %v378
      %v1567 = vunpack.c.l.b16 %v379
      %v1568 = vunpack.c.l.b16 %v380
      %v1569 = vunpack.c.h.b16 %v380
      %v1570 = vunpack.c.l.b16 %v381
      %v1571 = vunpack.c.l.b16 %v382
      %v1572 = vunpack.c.h.b16 %v382
      %v1573 = vunpack.c.l.b16 %v383
      %v1574 = vunpack.c.l.b16 %v384
      %v1575 = vunpack.c.h.b16 %v384
      %v1576 = vunpack.c.l.b16 %v385
      %v1577 = vunpack.c.l.b16 %v386
      %v1578 = vunpack.c.h.b16 %v386
      %v1579 = vunpack.c.l.b16 %v387
      %v1580 = vunpack.c.l.b16 %v388
      %v1581 = vunpack.c.h.b16 %v388
      %v1582 = vunpack.c.l.b16 %v389
      %v1583 = vunpack.c.l.b16 %v390
      %v1584 = vunpack.c.h.b16 %v390
      %v1585 = vunpack.c.l.b16 %v391
      %v1586 = vunpack.c.l.b16 %v392
      %v1587 = vunpack.c.h.b16 %v392
      %v1588 = vunpack.c.l.b16 %v393
      %v1589 = vunpack.c.l.b16 %v394
      %v1590 = vunpack.c.h.b16 %v394
      %v1591 = vunpack.c.l.b16 %v395
      %v1592 = vunpack.c.l.b16 %v396
      %v1593 = vunpack.c.h.b16 %v396
      %v1594 = vunpack.c.l.b16 %v397
      %v1595 = vunpack.c.l.b16 %v398
      %v1596 = vunpack.c.h.b16 %v398
      %v1597 = vunpack.c.l.b16 %v399
      %v1598 = vunpack.c.l.b16 %v400
      %v1599 = vunpack.c.h.b16 %v400
      %v1600 = vunpack.c.l.b16 %v401
      %v1601 = vunpack.c.l.b16 %v402
      %v1602 = vunpack.c.h.b16 %v402
      %v1603 = vunpack.c.l.b16 %v403
      %v1604 = vunpack.c.l.b16 %v404
      %v1605 = vunpack.c.h.b16 %v404
      %v1606 = vunpack.c.l.b16 %v405
      %v1607 = vunpack.c.l.b16 %v406
      %v1608 = vunpack.c.h.b16 %v406
      %v1609 = vunpack.c.l.b16 %v407
      %v1610 = vunpack.c.l.b16 %v408
      %v1611 = vunpack.c.h.b16 %v408
      %v1612 = vunpack.c.l.b16 %v409
      %v1613 = vunpack.c.l.b16 %v410
      %v1614 = vunpack.c.h.b16 %v410
      %v1615 = vunpack.c.l.b16 %v411
      %v1616 = vunpack.c.l.b16 %v412
      %v1617 = vunpack.c.h.b16 %v412
      %v1618 = vunpack.c.l.b16 %v413
      %v1619 = vunpack.c.l.b16 %v414
      %v1620 = vunpack.c.h.b16 %v414
      %v1621 = vunpack.c.l.b16 %v415
      %v1622 = vunpack.c.l.b16 %v416
      %v1623 = vunpack.c.h.b16 %v416
      %v1624 = vunpack.c.l.b16 %v417
      %v1625 = vunpack.c.l.b16 %v418
      %v1626 = vunpack.c.h.b16 %v418
      %v1627 = vunpack.c.l.b16 %v419
      %v1628 = vunpack.c.l.b16 %v420
      %v1629 = vunpack.c.h.b16 %v420
      %v1630 = vunpack.c.l.b16 %v421
      %v1631 = vunpack.c.l.b16 %v422
      %v1632 = vunpack.c.h.b16 %v422
      %v1633 = vunpack.c.l.b16 %v423
      %v1634 = vunpack.c.l.b16 %v424
      %v1635 = vunpack.c.h.b16 %v424
      %v1636 = vunpack.c.l.b16 %v425
      %v1637 = vunpack.c.l.b16 %v426
      %v1638 = vunpack.c.h.b16 %v426
      %v1639 = vunpack.c.l.b16 %v427
      %v1640 = vunpack.c.l.b16 %v428
      %v1641 = vunpack.c.h.b16 %v428
      %v1642 = vunpack.c.l.b16 %v429
      %v1643 = vunpack.c.l.b16 %v430
      %v1644 = vunpack.c.h.b16 %v430
      %v1645 = vunpack.c.l.b16 %v431
      %v1646 = vunpack.c.l.b16 %v432
      %v1647 = vunpack.c.h.b16 %v432
      %v1648 = vunpack.c.l.b16 %v433
      %v1649 = vunpack.c.l.b16 %v434
      %v1650 = vunpack.c.h.b16 %v434
      %v1651 = vunpack.c.l.b16 %v435
      %v1652 = vunpack.c.l.b16 %v436
      %v1653 = vunpack.c.h.b16 %v436
      %v1654 = vunpack.c.l.b16 %v437
      %v1655 = vunpack.c.l.b16 %v438
      %v1656 = vunpack.c.h.b16 %v438
      %v1657 = vunpack.c.l.b16 %v439
      %v1658 = vunpack.c.l.b16 %v440
      %v1659 = vunpack.c.h.b16 %v440
      %v1660 = vunpack.c.l.b16 %v441
      %v1661 = vunpack.c.l.b16 %v442
      %v1662 = vunpack.c.h.b16 %v442
      %v1663 = vunpack.c.l.b16 %v443
      %v1664 = vunpack.c.l.b16 %v444
      %v1665 = vunpack.c.h.b16 %v444
      %v1666 = vunpack.c.l.b16 %v445
      %v1667 = vunpack.c.l.b16 %v446
      %v1668 = vunpack.c.h.b16 %v446
      %v1669 = vunpack.c.l.b16 %v447
      %v1670 = vunpack.c.l.b16 %v448
      %v1671 = vunpack.c.h.b16 %v448
      %v1672 = vunpack.c.l.b16 %v449
      %v1673 = vunpack.c.l.b16 %v450
      %v1674 = vunpack.c.h.b16 %v450
      %v1675 = vunpack.c.l.b16 %v451
      %v1676 = vunpack.c.l.b16 %v452
      %v1677 = vunpack.c.h.b16 %v452
      %v1678 = vunpack.c.l.b16 %v453
      %v1679 = vunpack.c.l.b16 %v454
      %v1680 = vunpack.c.h.b16 %v454
      %v1681 = vunpack.c.l.b16 %v455
      %v1682 = vunpack.c.l.b16 %v456
      %v1683 = vunpack.c.h.b16 %v456
      %v1684 = vunpack.c.l.b16 %v457
      %v1685 = vunpack.c.l.b16 %v458
      %v1686 = vunpack.c.h.b16 %v458
      %v1687 = vunpack.c.l.b16 %v459
      %v1688 = vunpack.c.l.b16 %v460
      %v1689 = vunpack.c.h.b16 %v460
      %v1690 = vunpack.c.l.b16 %v461
      %v1691 = vunpack.c.l.b16 %v462
      %v1692 = vunpack.c.h.b16 %v462
      %v1693 = vunpack.c.l.b16 %v463
      %v1694 = vunpack.c.l.b16 %v464
      %v1695 = vunpack.c.h.b16 %v464
      %v1696 = vunpack.c.l.b16 %v465
      %v1697 = vunpack.c.l.b16 %v466
      %v1698 = vunpack.c.h.b16 %v466
      %v1699 = vunpack.c.l.b16 %v467
      %v1700 = vunpack.c.l.b16 %v468
      %v1701 = vunpack.c.h.b16 %v468
      %v1702 = vunpack.c.l.b16 %v469
      %v1703 = vunpack.c.l.b16 %v470
      %v1704 = vunpack.c.h.b16 %v470
      %v1705 = vunpack.c.l.b16 %v471
      %v1706 = vunpack.c.l.b16 %v472
      %v1707 = vunpack.c.h.b16 %v472
      %v1708 = vunpack.c.l.b16 %v473
      %v1709 = vunpack.c.l.b16 %v474
      %v1710 = vunpack.c.h.b16 %v474
      %v1711 = vunpack.c.l.b16 %v475
      %v1712 = vunpack.c.l.b16 %v476
      %v1713 = vunpack.c.h.b16 %v476
      %v1714 = vunpack.c.l.b16 %v477
      %v1715 = vunpack.c.l.b16 %v478
      %v1716 = vunpack.c.h.b16 %v478
      %v1717 = vunpack.c.l.b16 %v479
      %v1718 = vunpack.c.l.b16 %v480
      %v1719 = vunpack.c.h.b16 %v480
      %v1720 = vunpack.c.l.b16 %v481
      %v1721 = vunpack.c.l.b16 %v482
      %v1722 = vunpack.c.h.b16 %v482
      %v1723 = vunpack.c.l.b16 %v483
      %v1724 = vunpack.c.l.b16 %v484
      %v1725 = vunpack.c.h.b16 %v484
      %v1726 = vunpack.c.l.b16 %v485
      %v1727 = vunpack.c.l.b16 %v486
      %v1728 = vunpack.c.h.b16 %v486
      %v1729 = vunpack.c.l.b16 %v487
      %v1730 = vunpack.c.l.b16 %v488
      %v1731 = vunpack.c.h.b16 %v488
      %v1732 = vunpack.c.l.b16 %v489
      %v1733 = vunpack.c.l.b16 %v490
      %v1734 = vunpack.c.h.b16 %v490
      %v1735 = vunpack.c.l.b16 %v491
      %v1736 = vunpack.c.l.b16 %v492
      %v1737 = vunpack.c.h.b16 %v492
      %v1738 = vunpack.c.l.b16 %v493
      %v1739 = vunpack.c.l.b16 %v494
      %v1740 = vunpack.c.h.b16 %v494
      %v1741 = vunpack.c.l.b16 %v495
      %v1742 = vunpack.c.l.b16 %v496
      %v1743 = vunpack.c.h.b16 %v496
      %v1744 = vunpack.c.l.b16 %v497
      %v1745 = vunpack.c.l.b16 %v498
      %v1746 = vunpack.c.h.b16 %v498
      %v1747 = vunpack.c.l.b16 %v499
      %v1748 = vunpack.c.l.b16 %v500
      %v1749 = vunpack.c.h.b16 %v500
      %v1750 = vunpack.c.l.b16 %v501
      %v1751 = vunpack.c.l.b16 %v502
      %v1752 = vunpack.c.h.b16 %v502
      %v1753 = vunpack.c.l.b16 %v503
      %v1754 = vunpack.c.l.b16 %v504
      %v1755 = vunpack.c.h.b16 %v504
      %v1756 = vunpack.c.l.b16 %v505
      %v1757 = vunpack.c.l.b16 %v506
      %v1758 = vunpack.c.h.b16 %v506
      %v1759 = vunpack.c.l.b16 %v507
      %v1760 = vunpack.c.l.b16 %v508
      %v1761 = vunpack.c.h.b16 %v508
      %v1762 = vunpack.c.l.b16 %v509
      %v1763 = vunpack.c.l.b16 %v510
      %v1764 = vunpack.c.h.b16 %v510
      %v1765 = vunpack.c.l.b16 %v511
      %v1766 = vunpack.c.l.b16 %v512
      %v1767 = vunpack.c.h.b16 %v512
      %v1768 = vunpack.c.l.b16 %v513
      %v1769 = vunpack.c.l.b16 %v514
      %v1770 = vunpack.c.h.b16 %v514
      %v1771 = vunpack.c.l.b16 %v515
      %v1772 = vunpack.c.l.b16 %v516
      %v1773 = vunpack.c.h.b16 %v516
      %v1774 = vunpack.c.l.b16 %v517
      %v1775 = vunpack.c.l.b16 %v518
      %v1776 = vunpack.c.h.b16 %v518
      %v1777 = vunpack.c.l.b16 %v519
      %v1778 = vunpack.c.l.b16 %v520
      %v1779 = vunpack.c.h.b16 %v520
      %v1780 = vunpack.c.l.b16 %v521
      %v1781 = vunpack.c.l.b16 %v522
      %v1782 = vunpack.c.h.b16 %v522
      %v1783 = vunpack.c.l.b16 %v523
      %v1784 = vunpack.c.l.b16 %v524
      %v1785 = vunpack.c.h.b16 %v524
      %v1786 = vunpack.c.l.b16 %v525
      %v1787 = vunpack.c.l.b16 %v526
      %v1788 = vunpack.c.h.b16 %v526
      %v1789 = vunpack.c.l.b16 %v527
      %v1790 = vunpack.c.l.b16 %v528
      %v1791 = vunpack.c.h.b16 %v528
      %v1792 = vunpack.c.l.b16 %v529
      %v1793 = vunpack.c.l.b16 %v530
      %v1794 = vunpack.c.h.b16 %v530
      %v1795 = vunpack.c.l.b16 %v531
      %v1796 = vunpack.c.l.b16 %v532
      %v1797 = vunpack.c.h.b16 %v532
      %v1798 = vunpack.c.l.b16 %v533
      %v1799 = vunpack.c.l.b16 %v534
      %v1800 = vunpack.c.h.b16 %v534
      %v1801 = vunpack.c.l.b16 %v535
      %v1802 = vunpack.c.l.b16 %v536
      %v1803 = vunpack.c.h.b16 %v536
      %v1804 = vunpack.c.l.b16 %v537
      %v1805 = vunpack.c.l.b16 %v538
      %v1806 = vunpack.c.h.b16 %v538
      %v1807 = vunpack.c.l.b16 %v539
      %v1808 = vunpack.c.l.b16 %v540
      %v1809 = vunpack.c.h.b16 %v540
      %v1810 = vunpack.c.l.b16 %v541
      %v1811 = vunpack.c.l.b16 %v542
      %v1812 = vunpack.c.h.b16 %v542
      %v1813 = vunpack.c.l.b16 %v543
      %v1814 = vunpack.c.l.b16 %v544
      %v1815 = vunpack.c.h.b16 %v544
      %v1816 = vunpack.c.l.b16 %v545
      %v1817 = vunpack.c.l.b16 %v546
      %v1818 = vunpack.c.h.b16 %v546
      %v1819 = vunpack.c.l.b16 %v547
      %v1820 = vunpack.c.l.b16 %v548
      %v1821 = vunpack.c.h.b16 %v548
      %v1822 = vunpack.c.l.b16 %v549
      %v1823 = vunpack.c.l.b16 %v550
      %v1824 = vunpack.c.h.b16 %v550
      %v1825 = vunpack.c.l.b16 %v551
      %v1826 = vunpack.c.l.b16 %v552
      %v1827 = vunpack.c.h.b16 %v552
      %v1828 = vunpack.c.l.b16 %v553
      %v1829 = vunpack.c.l.b16 %v554
      %v1830 = vunpack.c.h.b16 %v554
      %v1831 = vunpack.c.l.b16 %v555
      %v1832 = vunpack.c.l.b16 %v556
      %v1833 = vunpack.c.h.b16 %v556
      %v1834 = vunpack.c.l.b16 %v557
      %v1835 = vunpack.c.l.b16 %v558
      %v1836 = vunpack.c.h.b16 %v558
      %v1837 = vunpack.c.l.b16 %v559
      %v1838 = vunpack.c.l.b16 %v560
      %v1839 = vunpack.c.h.b16 %v560
      %v1840 = vunpack.c.l.b16 %v561
      %v1841 = vunpack.c.l.b16 %v562
      %v1842 = vunpack.c.h.b16 %v562
      %v1843 = vunpack.c.l.b16 %v563
      %v1844 = vpack.c.b16 %v1463, %v1460
      %v1845 = vpack.c.b16 %v1464, %v1461
      %v1846 = vpack.c.b16 %v1465, %v1462
      %v1847 = vpack.c.b16 %v1469, %v1466
      %v1848 = vpack.c.b16 %v1470, %v1467
      %v1849 = vpack.c.b16 %v1471, %v1468
      %v1850 = vpack.c.b16 %v1475, %v1472
      %v1851 = vpack.c.b16 %v1476, %v1473
      %v1852 = vpack.c.b16 %v1477, %v1474
      %v1853 = vpack.c.b16 %v1481, %v1478
      %v1854 = vpack.c.b16 %v1482, %v1479
      %v1855 = vpack.c.b16 %v1483, %v1480
      %v1856 = vpack.c.b16 %v1487, %v1484
      %v1857 = vpack.c.b16 %v1488, %v1485
      %v1858 = vpack.c.b16 %v1489, %v1486
      %v1859 = vpack.c.b16 %v1493, %v1490
      %v1860 = vpack.c.b16 %v1494, %v1491
      %v1861 = vpack.c.b16 %v1495, %v1492
      %v1862 = vpack.c.b16 %v1499, %v1496
      %v1863 = vpack.c.b16 %v1500, %v1497
      %v1864 = vpack.c.b16 %v1501, %v1498
      %v1865 = vpack.c.b16 %v1505, %v1502
      %v1866 = vpack.c.b16 %v1506, %v1503
      %v1867 = vpack.c.b16 %v1507, %v1504
      %v1868 = vpack.c.b16 %v1511, %v1508
      %v1869 = vpack.c.b16 %v1512, %v1509
      %v1870 = vpack.c.b16 %v1513, %v1510
      %v1871 = vpack.c.b16 %v1517, %v1514
      %v1872 = vpack.c.b16 %v1518, %v1515
      %v1873 = vpack.c.b16 %v1519, %v1516
      %v1874 = vpack.c.b16 %v1523, %v1520
      %v1875 = vpack.c.b16 %v1524, %v1521
      %v1876 = vpack.c.b16 %v1525, %v1522
      %v1877 = vpack.c.b16 %v1529, %v1526
      %v1878 = vpack.c.b16 %v1530, %v1527
      %v1879 = vpack.c.b16 %v1531, %v1528
      %v1880 = vpack.c.b16 %v1535, %v1532
      %v1881 = vpack.c.b16 %v1536, %v1533
      %v1882 = vpack.c.b16 %v1537, %v1534
      %v1883 = vpack.c.b16 %v1541, %v1538
      %v1884 = vpack.c.b16 %v1542, %v1539
      %v1885 = vpack.c.b16 %v1543, %v1540
      %v1886 = vpack.c.b16 %v1547, %v1544
      %v1887 = vpack.c.b16 %v1548, %v1545
      %v1888 = vpack.c.b16 %v1549, %v1546
      %v1889 = vpack.c.b16 %v1553, %v1550
      %v1890 = vpack.c.b16 %v1554, %v1551
      %v1891 = vpack.c.b16 %v1555, %v1552
      %v1892 = vpack.c.b16 %v1559, %v1556
      %v1893 = vpack.c.b16 %v1560, %v1557
      %v1894 = vpack.c.b16 %v1561, %v1558
      %v1895 = vpack.c.b16 %v1565, %v1562
      %v1896 = vpack.c.b16 %v1566, %v1563
      %v1897 = vpack.c.b16 %v1567, %v1564
      %v1898 = vpack.c.b16 %v1571, %v1568
      %v1899 = vpack.c.b16 %v1572, %v1569
      %v1900 = vpack.c.b16 %v1573, %v1570
      %v1901 = vpack.c.b16 %v1577, %v1574
      %v1902 = vpack.c.b16 %v1578, %v1575
      %v1903 = vpack.c.b16 %v1579, %v1576
      %v1904 = vpack.c.b16 %v1583, %v1580
      %v1905 = vpack.c.b16 %v1584, %v1581
      %v1906 = vpack.c.b16 %v1585, %v1582
      %v1907 = vpack.c.b16 %v1589, %v1586
      %v1908 = vpack.c.b16 %v1590, %v1587
      %v1909 = vpack.c.b16 %v1591, %v1588
      %v1910 = vpack.c.b16 %v1595, %v1592
      %v1911 = vpack.c.b16 %v1596, %v1593
      %v1912 = vpack.c.b16 %v1597, %v1594
      %v1913 = vpack.c.b16 %v1601, %v1598
      %v1914 = vpack.c.b16 %v1602, %v1599
      %v1915 = vpack.c.b16 %v1603, %v1600
      %v1916 = vpack.c.b16 %v1607, %v1604
      %v1917 = vpack.c.b16 %v1608, %v1605
      %v1918 = vpack.c.b16 %v1609, %v1606
      %v1919 = vpack.c.b16 %v1613, %v1610
      %v1920 = vpack.c.b16 %v1614, %v1611
      %v1921 = vpack.c.b16 %v1615, %v1612
      %v1922 = vpack.c.b16 %v1619, %v1616
      %v1923 = vpack.c.b16 %v1620, %v1617
      %v1924 = vpack.c.b16 %v1621, %v1618
      %v1925 = vpack.c.b16 %v1625, %v1622
      %v1926 = vpack.c.b16 %v1626, %v1623
      %v1927 = vpack.c.b16 %v1627, %v1624
      %v1928 = vpack.c.b16 %v1631, %v1628
      %v1929 = vpack.c.b16 %v1632, %v1629
      %v1930 = vpack.c.b16 %v1633, %v1630
      %v1931 = vpack.c.b16 %v1637, %v1634
      %v1932 = vpack.c.b16 %v1638, %v1635
      %v1933 = vpack.c.b16 %v1639, %v1636
      %v1934 = vpack.c.b16 %v1643, %v1640
      %v1935 = vpack.c.b16 %v1644, %v1641
      %v1936 = vpack.c.b16 %v1645, %v1642
      %v1937 = vpack.c.b16 %v1649, %v1646
      %v1938 = vpack.c.b16 %v1650, %v1647
      %v1939 = vpack.c.b16 %v1651, %v1648
      %v1940 = vpack.c.b16 %v1655, %v1652
      %v1941 = vpack.c.b16 %v1656, %v1653
      %v1942 = vpack.c.b16 %v1657, %v1654
      %v1943 = vpack.c.b16 %v1661, %v1658
      %v1944 = vpack.c.b16 %v1662, %v1659
      %v1945 = vpack.c.b16 %v1663, %v1660
      %v1946 = vpack.c.b16 %v1667, %v1664
      %v1947 = vpack.c.b16 %v1668, %v1665
      %v1948 = vpack.c.b16 %v1669, %v1666
      %v1949 = vpack.c.b16 %v1673, %v1670
      %v1950 = vpack.c.b16 %v1674, %v1671
      %v1951 = vpack.c.b16 %v1675, %v1672
      %v1952 = vpack.c.b16 %v1679, %v1676
      %v1953 = vpack.c.b16 %v1680, %v1677
      %v1954 = vpack.c.b16 %v1681, %v1678
      %v1955 = vpack.c.b16 %v1685, %v1682
      %v1956 = vpack.c.b16 %v1686, %v1683
      %v1957 = vpack.c.b16 %v1687, %v1684
      %v1958 = vpack.c.b16 %v1691, %v1688
      %v1959 = vpack.c.b16 %v1692, %v1689
      %v1960 = vpack.c.b16 %v1693, %v1690
      %v1961 = vpack.c.b16 %v1697, %v1694
      %v1962 = vpack.c.b16 %v1698, %v1695
      %v1963 = vpack.c.b16 %v1699, %v1696
      %v1964 = vpack.c.b16 %v1703, %v1700
      %v1965 = vpack.c.b16 %v1704, %v1701
      %v1966 = vpack.c.b16 %v1705, %v1702
      %v1967 = vpack.c.b16 %v1709, %v1706
      %v1968 = vpack.c.b16 %v1710, %v1707
      %v1969 = vpack.c.b16 %v1711, %v1708
      %v1970 = vpack.c.b16 %v1715, %v1712
      %v1971 = vpack.c.b16 %v1716, %v1713
      %v1972 = vpack.c.b16 %v1717, %v1714
      %v1973 = vpack.c.b16 %v1721, %v1718
      %v1974 = vpack.c.b16 %v1722, %v1719
      %v1975 = vpack.c.b16 %v1723, %v1720
      %v1976 = vpack.c.b16 %v1727, %v1724
      %v1977 = vpack.c.b16 %v1728, %v1725
      %v1978 = vpack.c.b16 %v1729, %v1726
      %v1979 = vpack.c.b16 %v1733, %v1730
      %v1980 = vpack.c.b16 %v1734, %v1731
      %v1981 = vpack.c.b16 %v1735, %v1732
      %v1982 = vpack.c.b16 %v1739, %v1736
      %v1983 = vpack.c.b16 %v1740, %v1737
      %v1984 = vpack.c.b16 %v1741, %v1738
      %v1985 = vpack.c.b16 %v1745, %v1742
      %v1986 = vpack.c.b16 %v1746, %v1743
      %v1987 = vpack.c.b16 %v1747, %v1744
      %v1988 = vpack.c.b16 %v1751, %v1748
      %v1989 = vpack.c.b16 %v1752, %v1749
      %v1990 = vpack.c.b16 %v1753, %v1750
      %v1991 = vpack.c.b16 %v1757, %v1754
      %v1992 = vpack.c.b16 %v1758, %v1755
      %v1993 = vpack.c.b16 %v1759, %v1756
      %v1994 = vpack.c.b16 %v1763, %v1760
      %v1995 = vpack.c.b16 %v1764, %v1761
      %v1996 = vpack.c.b16 %v1765, %v1762
      %v1997 = vpack.c.b16 %v1769, %v1766
      %v1998 = vpack.c.b16 %v1770, %v1767
      %v1999 = vpack.c.b16 %v1771, %v1768
      %v2000 = vpack.c.b16 %v1775, %v1772
      %v2001 = vpack.c.b16 %v1776, %v1773
      %v2002 = vpack.c.b16 %v1777, %v1774
      %v2003 = vpack.c.b16 %v1781, %v1778
      %v2004 = vpack.c.b16 %v1782, %v1779
      %v2005 = vpack.c.b16 %v1783, %v1780
      %v2006 = vpack.c.b16 %v1787, %v1784
      %v2007 = vpack.c.b16 %v1788, %v1785
      %v2008 = vpack.c.b16 %v1789, %v1786
      %v2009 = vpack.c.b16 %v1793, %v1790
      %v2010 = vpack.c.b16 %v1794, %v1791
      %v2011 = vpack.c.b16 %v1795, %v1792
      %v2012 = vpack.c.b16 %v1799, %v1796
      %v2013 = vpack.c.b16 %v1800, %v1797
      %v2014 = vpack.c.b16 %v1801, %v1798
      %v2015 = vpack.c.b16 %v1805, %v1802
      %v2016 = vpack.c.b16 %v1806, %v1803
      %v2017 = vpack.c.b16 %v1807, %v1804
      %v2018 = vpack.c.b16 %v1811, %v1808
      %v2019 = vpack.c.b16 %v1812, %v1809
      %v2020 = vpack.c.b16 %v1813, %v1810
      %v2021 = vpack.c.b16 %v1817, %v1814
      %v2022 = vpack.c.b16 %v1818, %v1815
      %v2023 = vpack.c.b16 %v1819, %v1816
      %v2024 = vpack.c.b16 %v1823, %v1820
      %v2025 = vpack.c.b16 %v1824, %v1821
      %v2026 = vpack.c.b16 %v1825, %v1822
      %v2027 = vpack.c.b16 %v1829, %v1826
      %v2028 = vpack.c.b16 %v1830, %v1827
      %v2029 = vpack.c.b16 %v1831, %v1828
      %v2030 = vpack.c.b16 %v1835, %v1832
      %v2031 = vpack.c.b16 %v1836, %v1833
      %v2032 = vpack.c.b16 %v1837, %v1834
      %v2033 = vpack.c.b16 %v1841, %v1838
      %v2034 = vpack.c.b16 %v1842, %v1839
      %v2035 = vpack.c.b16 %v1843, %v1840
      %2228 = vmatprep.subr.bf16.mxu0 %v1845
      %2229 = vmatpush1.bf16.msra.mxu0 %v1844
      %2230 = vmatprep.subr.bf16.mxu0 %v1848
      %2231 = vmatpush1.bf16.msra.mxu0 %v1847
      %2232 = vmatprep.subr.bf16.mxu0 %v1851
      %2233 = vmatpush1.bf16.msra.mxu0 %v1850
      %2234 = vmatprep.subr.bf16.mxu0 %v1854
      %2235 = vmatpush1.bf16.msra.mxu0 %v1853
      %2236 = vmatprep.subr.bf16.mxu0 %v1857
      %2237 = vmatpush1.bf16.msra.mxu0 %v1856
      %2238 = vmatprep.subr.bf16.mxu0 %v1860
      %2239 = vmatpush1.bf16.msra.mxu0 %v1859
      %2240 = vmatprep.subr.bf16.mxu0 %v1863
      %2241 = vmatpush1.bf16.msra.mxu0 %v1862
      %2242 = vmatprep.subr.bf16.mxu0 %v1866
      %2243 = vmatpush1.bf16.msra.mxu0 %v1865
      %2244 = vmatprep.subr.bf16.mxu0 %v1869
      %2245 = vmatpush1.bf16.msra.mxu0 %v1868
      %2246 = vmatprep.subr.bf16.mxu0 %v1872
      %2247 = vmatpush1.bf16.msra.mxu0 %v1871
      %2248 = vmatprep.subr.bf16.mxu0 %v1875
      %2249 = vmatpush1.bf16.msra.mxu0 %v1874
      %2250 = vmatprep.subr.bf16.mxu0 %v1878
      %2251 = vmatpush1.bf16.msra.mxu0 %v1877
      %2252 = vmatprep.subr.bf16.mxu0 %v1881
      %2253 = vmatpush1.bf16.msra.mxu0 %v1880
      %2254 = vmatprep.subr.bf16.mxu0 %v1884
      %2255 = vmatpush1.bf16.msra.mxu0 %v1883
      %2256 = vmatprep.subr.bf16.mxu0 %v1887
      %2257 = vmatpush1.bf16.msra.mxu0 %v1886
      %2258 = vmatprep.subr.bf16.mxu0 %v1890
      %2259 = vmatpush1.bf16.msra.mxu0 %v1889
      %2260 = vmatprep.mubr.bf16.mxu0 %v949
      %2261 = vmatmul.mubr.bf16.gmra.mrb[0].mxu0 %v948
      %v2262 = vpop.f32.mrb[0].mxu0
      %v2263 = vadd.f32 0.0, %v2262
      %v2264 = vpop.f32.mrb[0].mxu0
      %v2265 = vadd.f32 0.0, %v2264
      %v2266 = vpop.f32.mrb[0].mxu0
      %v2267 = vadd.f32 0.0, %v2266
      %v2268 = vpop.f32.mrb[0].mxu0
      %v2269 = vadd.f32 0.0, %v2268
      %2270 = vmatprep.mubr.bf16.mxu0 %v957
      %2271 = vmatmul.mubr.bf16.gmra.mrb[0].mxu0 %v956
      %v2272 = vpop.f32.mrb[0].mxu0
      %v2273 = vadd.f32 0.0, %v2272
      %v2274 = vpop.f32.mrb[0].mxu0
      %v2275 = vadd.f32 0.0, %v2274
      %v2276 = vpop.f32.mrb[0].mxu0
      %v2277 = vadd.f32 0.0, %v2276
      %v2278 = vpop.f32.mrb[0].mxu0
      %v2279 = vadd.f32 0.0, %v2278
      %2280 = vmatprep.mubr.bf16.mxu0 %v965
      %2281 = vmatmul.mubr.bf16.gmra.mrb[0].mxu0 %v964
      %v2282 = vpop.f32.mrb[0].mxu0
      %v2283 = vadd.f32 0.0, %v2282
      %v2284 = vpop.f32.mrb[0].mxu0
      %v2285 = vadd.f32 0.0, %v2284
      %v2286 = vpop.f32.mrb[0].mxu0
      %v2287 = vadd.f32 0.0, %v2286
      %v2288 = vpop.f32.mrb[0].mxu0
      %v2289 = vadd.f32 0.0, %v2288
      %2290 = vmatprep.mubr.bf16.mxu0 %v973
      %2291 = vmatmul.mubr.bf16.gmra.mrb[0].mxu0 %v972
      %v2292 = vpop.f32.mrb[0].mxu0
      %v2293 = vadd.f32 0.0, %v2292
      %v2294 = vpop.f32.mrb[0].mxu0
      %v2295 = vadd.f32 0.0, %v2294
      %v2296 = vpop.f32.mrb[0].mxu0
      %v2297 = vadd.f32 0.0, %v2296
      %v2298 = vpop.f32.mrb[0].mxu0
      %v2299 = vadd.f32 0.0, %v2298
      %2300 = vmatprep.mubr.bf16.mxu0 %v981
      %2301 = vmatmul.mubr.bf16.gmra.mrb[0].mxu0 %v980
      %v2302 = vpop.f32.mrb[0].mxu0
      %v2303 = vadd.f32 0.0, %v2302
      %v2304 = vpop.f32.mrb[0].mxu0
      %v2305 = vadd.f32 0.0, %v2304
      %v2306 = vpop.f32.mrb[0].mxu0
      %v2307 = vadd.f32 0.0, %v2306
      %v2308 = vpop.f32.mrb[0].mxu0
      %v2309 = vadd.f32 0.0, %v2308
      %2310 = vmatprep.mubr.bf16.mxu0 %v989
      %2311 = vmatmul.mubr.bf16.gmra.mrb[0].mxu0 %v988
      %v2312 = vpop.f32.mrb[0].mxu0
      %v2313 = vadd.f32 0.0, %v2312
      %v2314 = vpop.f32.mrb[0].mxu0
      %v2315 = vadd.f32 0.0, %v2314
      %v2316 = vpop.f32.mrb[0].mxu0
      %v2317 = vadd.f32 0.0, %v2316
      %v2318 = vpop.f32.mrb[0].mxu0
      %v2319 = vadd.f32 0.0, %v2318
      %2320 = vmatprep.mubr.bf16.mxu0 %v997
      %2321 = vmatmul.mubr.bf16.gmra.mrb[0].mxu0 %v996
      %v2322 = vpop.f32.mrb[0].mxu0
      %v2323 = vadd.f32 0.0, %v2322
      %v2324 = vpop.f32.mrb[0].mxu0
      %v2325 = vadd.f32 0.0, %v2324
      %v2326 = vpop.f32.mrb[0].mxu0
      %v2327 = vadd.f32 0.0, %v2326
      %v2328 = vpop.f32.mrb[0].mxu0
      %v2329 = vadd.f32 0.0, %v2328
      %2330 = vmatprep.mubr.bf16.mxu0 %v1005
      %2331 = vmatmul.mubr.bf16.gmra.mrb[0].mxu0 %v1004
      %v2332 = vpop.f32.mrb[0].mxu0
      %v2333 = vadd.f32 0.0, %v2332
      %v2334 = vpop.f32.mrb[0].mxu0
      %v2335 = vadd.f32 0.0, %v2334
      %v2336 = vpop.f32.mrb[0].mxu0
      %v2337 = vadd.f32 0.0, %v2336
      %v2338 = vpop.f32.mrb[0].mxu0
      %v2339 = vadd.f32 0.0, %v2338
      %2340 = vmatprep.mubr.bf16.mxu0 %v1013
      %2341 = vmatmul.mubr.bf16.gmra.mrb[0].mxu0 %v1012
      %v2342 = vpop.f32.mrb[0].mxu0
      %v2343 = vadd.f32 0.0, %v2342
      %v2344 = vpop.f32.mrb[0].mxu0
      %v2345 = vadd.f32 0.0, %v2344
      %v2346 = vpop.f32.mrb[0].mxu0
      %v2347 = vadd.f32 0.0, %v2346
      %v2348 = vpop.f32.mrb[0].mxu0
      %v2349 = vadd.f32 0.0, %v2348
      %2350 = vmatprep.mubr.bf16.mxu0 %v1021
      %2351 = vmatmul.mubr.bf16.gmra.mrb[0].mxu0 %v1020
      %v2352 = vpop.f32.mrb[0].mxu0
      %v2353 = vadd.f32 0.0, %v2352
      %v2354 = vpop.f32.mrb[0].mxu0
      %v2355 = vadd.f32 0.0, %v2354
      %v2356 = vpop.f32.mrb[0].mxu0
      %v2357 = vadd.f32 0.0, %v2356
      %v2358 = vpop.f32.mrb[0].mxu0
      %v2359 = vadd.f32 0.0, %v2358
      %2360 = vmatprep.mubr.bf16.mxu0 %v1029
      %2361 = vmatmul.mubr.bf16.gmra.mrb[0].mxu0 %v1028
      %v2362 = vpop.f32.mrb[0].mxu0
      %v2363 = vadd.f32 0.0, %v2362
      %v2364 = vpop.f32.mrb[0].mxu0
      %v2365 = vadd.f32 0.0, %v2364
      %v2366 = vpop.f32.mrb[0].mxu0
      %v2367 = vadd.f32 0.0, %v2366
      %v2368 = vpop.f32.mrb[0].mxu0
      %v2369 = vadd.f32 0.0, %v2368
      %2370 = vmatprep.mubr.bf16.mxu0 %v1037
      %2371 = vmatmul.mubr.bf16.gmra.mrb[0].mxu0 %v1036
      %v2372 = vpop.f32.mrb[0].mxu0
      %v2373 = vadd.f32 0.0, %v2372
      %v2374 = vpop.f32.mrb[0].mxu0
      %v2375 = vadd.f32 0.0, %v2374
      %v2376 = vpop.f32.mrb[0].mxu0
      %v2377 = vadd.f32 0.0, %v2376
      %v2378 = vpop.f32.mrb[0].mxu0
      %v2379 = vadd.f32 0.0, %v2378
      %2380 = vmatprep.mubr.bf16.mxu0 %v1045
      %2381 = vmatmul.mubr.bf16.gmra.mrb[0].mxu0 %v1044
      %v2382 = vpop.f32.mrb[0].mxu0
      %v2383 = vadd.f32 0.0, %v2382
      %v2384 = vpop.f32.mrb[0].mxu0
      %v2385 = vadd.f32 0.0, %v2384
      %v2386 = vpop.f32.mrb[0].mxu0
      %v2387 = vadd.f32 0.0, %v2386
      %v2388 = vpop.f32.mrb[0].mxu0
      %v2389 = vadd.f32 0.0, %v2388
      %2390 = vmatprep.mubr.bf16.mxu0 %v1053
      %2391 = vmatmul.mubr.bf16.gmra.mrb[0].mxu0 %v1052
      %v2392 = vpop.f32.mrb[0].mxu0
      %v2393 = vadd.f32 0.0, %v2392
      %v2394 = vpop.f32.mrb[0].mxu0
      %v2395 = vadd.f32 0.0, %v2394
      %v2396 = vpop.f32.mrb[0].mxu0
      %v2397 = vadd.f32 0.0, %v2396
      %v2398 = vpop.f32.mrb[0].mxu0
      %v2399 = vadd.f32 0.0, %v2398
      %2400 = vmatprep.mubr.bf16.mxu0 %v1061
      %2401 = vmatmul.mubr.bf16.gmra.mrb[0].mxu0 %v1060
      %v2402 = vpop.f32.mrb[0].mxu0
      %v2403 = vadd.f32 0.0, %v2402
      %v2404 = vpop.f32.mrb[0].mxu0
      %v2405 = vadd.f32 0.0, %v2404
      %v2406 = vpop.f32.mrb[0].mxu0
      %v2407 = vadd.f32 0.0, %v2406
      %v2408 = vpop.f32.mrb[0].mxu0
      %v2409 = vadd.f32 0.0, %v2408
      %2410 = vmatprep.mubr.bf16.mxu0 %v1069
      %2411 = vmatmul.mubr.bf16.gmra.mrb[0].mxu0 %v1068
      %v2412 = vpop.f32.mrb[0].mxu0
      %v2413 = vadd.f32 0.0, %v2412
      %v2414 = vpop.f32.mrb[0].mxu0
      %v2415 = vadd.f32 0.0, %v2414
      %v2416 = vpop.f32.mrb[0].mxu0
      %v2417 = vadd.f32 0.0, %v2416
      %v2418 = vpop.f32.mrb[0].mxu0
      %v2419 = vadd.f32 0.0, %v2418
      %2420 = vdwg.mxu0
      %2421 = vmatprep.subr.bf16.mxu0 %v1893
      %2422 = vmatpush1.bf16.msra.mxu0 %v1892
      %2423 = vmatprep.subr.bf16.mxu0 %v1896
      %2424 = vmatpush1.bf16.msra.mxu0 %v1895
      %2425 = vmatprep.subr.bf16.mxu0 %v1899
      %2426 = vmatpush1.bf16.msra.mxu0 %v1898
      %2427 = vmatprep.subr.bf16.mxu0 %v1902
      %2428 = vmatpush1.bf16.msra.mxu0 %v1901
      %2429 = vmatprep.subr.bf16.mxu0 %v1905
      %2430 = vmatpush1.bf16.msra.mxu0 %v1904
      %2431 = vmatprep.subr.bf16.mxu0 %v1908
      %2432 = vmatpush1.bf16.msra.mxu0 %v1907
      %2433 = vmatprep.subr.bf16.mxu0 %v1911
      %2434 = vmatpush1.bf16.msra.mxu0 %v1910
      %2435 = vmatprep.subr.bf16.mxu0 %v1914
      %2436 = vmatpush1.bf16.msra.mxu0 %v1913
      %2437 = vmatprep.subr.bf16.mxu0 %v1917
      %2438 = vmatpush1.bf16.msra.mxu0 %v1916
      %2439 = vmatprep.subr.bf16.mxu0 %v1920
      %2440 = vmatpush1.bf16.msra.mxu0 %v1919
      %2441 = vmatprep.subr.bf16.mxu0 %v1923
      %2442 = vmatpush1.bf16.msra.mxu0 %v1922
      %2443 = vmatprep.subr.bf16.mxu0 %v1926
      %2444 = vmatpush1.bf16.msra.mxu0 %v1925
      %2445 = vmatprep.subr.bf16.mxu0 %v1929
      %2446 = vmatpush1.bf16.msra.mxu0 %v1928
      %2447 = vmatprep.subr.bf16.mxu0 %v1932
      %2448 = vmatpush1.bf16.msra.mxu0 %v1931
      %2449 = vmatprep.subr.bf16.mxu0 %v1935
      %2450 = vmatpush1.bf16.msra.mxu0 %v1934
      %2451 = vmatprep.subr.bf16.mxu0 %v1938
      %2452 = vmatpush1.bf16.msra.mxu0 %v1937
      %2453 = vmatprep.mubr.bf16.mxu0 %v951
      %2454 = vmatmul.mubr.bf16.gmra.mrb[0].mxu0 %v950
      %v2455 = vpop.f32.mrb[0].mxu0
      %v2456 = vadd.f32 %v2263, %v2455
      %v2457 = vpop.f32.mrb[0].mxu0
      %v2458 = vadd.f32 %v2265, %v2457
      %v2459 = vpop.f32.mrb[0].mxu0
      %v2460 = vadd.f32 %v2267, %v2459
      %v2461 = vpop.f32.mrb[0].mxu0
      %v2462 = vadd.f32 %v2269, %v2461
      %2463 = vmatprep.mubr.bf16.mxu0 %v959
      %2464 = vmatmul.mubr.bf16.gmra.mrb[0].mxu0 %v958
      %v2465 = vpop.f32.mrb[0].mxu0
      %v2466 = vadd.f32 %v2273, %v2465
      %v2467 = vpop.f32.mrb[0].mxu0
      %v2468 = vadd.f32 %v2275, %v2467
      %v2469 = vpop.f32.mrb[0].mxu0
      %v2470 = vadd.f32 %v2277, %v2469
      %v2471 = vpop.f32.mrb[0].mxu0
      %v2472 = vadd.f32 %v2279, %v2471
      %2473 = vmatprep.mubr.bf16.mxu0 %v967
      %2474 = vmatmul.mubr.bf16.gmra.mrb[0].mxu0 %v966
      %v2475 = vpop.f32.mrb[0].mxu0
      %v2476 = vadd.f32 %v2283, %v2475
      %v2477 = vpop.f32.mrb[0].mxu0
      %v2478 = vadd.f32 %v2285, %v2477
      %v2479 = vpop.f32.mrb[0].mxu0
      %v2480 = vadd.f32 %v2287, %v2479
      %v2481 = vpop.f32.mrb[0].mxu0
      %v2482 = vadd.f32 %v2289, %v2481
      %2483 = vmatprep.mubr.bf16.mxu0 %v975
      %2484 = vmatmul.mubr.bf16.gmra.mrb[0].mxu0 %v974
      %v2485 = vpop.f32.mrb[0].mxu0
      %v2486 = vadd.f32 %v2293, %v2485
      %v2487 = vpop.f32.mrb[0].mxu0
      %v2488 = vadd.f32 %v2295, %v2487
      %v2489 = vpop.f32.mrb[0].mxu0
      %v2490 = vadd.f32 %v2297, %v2489
      %v2491 = vpop.f32.mrb[0].mxu0
      %v2492 = vadd.f32 %v2299, %v2491
      %2493 = vmatprep.mubr.bf16.mxu0 %v983
      %2494 = vmatmul.mubr.bf16.gmra.mrb[0].mxu0 %v982
      %v2495 = vpop.f32.mrb[0].mxu0
      %v2496 = vadd.f32 %v2303, %v2495
      %v2497 = vpop.f32.mrb[0].mxu0
      %v2498 = vadd.f32 %v2305, %v2497
      %v2499 = vpop.f32.mrb[0].mxu0
      %v2500 = vadd.f32 %v2307, %v2499
      %v2501 = vpop.f32.mrb[0].mxu0
      %v2502 = vadd.f32 %v2309, %v2501
      %2503 = vmatprep.mubr.bf16.mxu0 %v991
      %2504 = vmatmul.mubr.bf16.gmra.mrb[0].mxu0 %v990
      %v2505 = vpop.f32.mrb[0].mxu0
      %v2506 = vadd.f32 %v2313, %v2505
      %v2507 = vpop.f32.mrb[0].mxu0
      %v2508 = vadd.f32 %v2315, %v2507
      %v2509 = vpop.f32.mrb[0].mxu0
      %v2510 = vadd.f32 %v2317, %v2509
      %v2511 = vpop.f32.mrb[0].mxu0
      %v2512 = vadd.f32 %v2319, %v2511
      %2513 = vmatprep.mubr.bf16.mxu0 %v999
      %2514 = vmatmul.mubr.bf16.gmra.mrb[0].mxu0 %v998
      %v2515 = vpop.f32.mrb[0].mxu0
      %v2516 = vadd.f32 %v2323, %v2515
      %v2517 = vpop.f32.mrb[0].mxu0
      %v2518 = vadd.f32 %v2325, %v2517
      %v2519 = vpop.f32.mrb[0].mxu0
      %v2520 = vadd.f32 %v2327, %v2519
      %v2521 = vpop.f32.mrb[0].mxu0
      %v2522 = vadd.f32 %v2329, %v2521
      %2523 = vmatprep.mubr.bf16.mxu0 %v1007
      %2524 = vmatmul.mubr.bf16.gmra.mrb[0].mxu0 %v1006
      %v2525 = vpop.f32.mrb[0].mxu0
      %v2526 = vadd.f32 %v2333, %v2525
      %v2527 = vpop.f32.mrb[0].mxu0
      %v2528 = vadd.f32 %v2335, %v2527
      %v2529 = vpop.f32.mrb[0].mxu0
      %v2530 = vadd.f32 %v2337, %v2529
      %v2531 = vpop.f32.mrb[0].mxu0
      %v2532 = vadd.f32 %v2339, %v2531
      %2533 = vmatprep.mubr.bf16.mxu0 %v1015
      %2534 = vmatmul.mubr.bf16.gmra.mrb[0].mxu0 %v1014
      %v2535 = vpop.f32.mrb[0].mxu0
      %v2536 = vadd.f32 %v2343, %v2535
      %v2537 = vpop.f32.mrb[0].mxu0
      %v2538 = vadd.f32 %v2345, %v2537
      %v2539 = vpop.f32.mrb[0].mxu0
      %v2540 = vadd.f32 %v2347, %v2539
      %v2541 = vpop.f32.mrb[0].mxu0
      %v2542 = vadd.f32 %v2349, %v2541
      %2543 = vmatprep.mubr.bf16.mxu0 %v1023
      %2544 = vmatmul.mubr.bf16.gmra.mrb[0].mxu0 %v1022
      %v2545 = vpop.f32.mrb[0].mxu0
      %v2546 = vadd.f32 %v2353, %v2545
      %v2547 = vpop.f32.mrb[0].mxu0
      %v2548 = vadd.f32 %v2355, %v2547
      %v2549 = vpop.f32.mrb[0].mxu0
      %v2550 = vadd.f32 %v2357, %v2549
      %v2551 = vpop.f32.mrb[0].mxu0
      %v2552 = vadd.f32 %v2359, %v2551
      %2553 = vmatprep.mubr.bf16.mxu0 %v1031
      %2554 = vmatmul.mubr.bf16.gmra.mrb[0].mxu0 %v1030
      %v2555 = vpop.f32.mrb[0].mxu0
      %v2556 = vadd.f32 %v2363, %v2555
      %v2557 = vpop.f32.mrb[0].mxu0
      %v2558 = vadd.f32 %v2365, %v2557
      %v2559 = vpop.f32.mrb[0].mxu0
      %v2560 = vadd.f32 %v2367, %v2559
      %v2561 = vpop.f32.mrb[0].mxu0
      %v2562 = vadd.f32 %v2369, %v2561
      %2563 = vmatprep.mubr.bf16.mxu0 %v1039
      %2564 = vmatmul.mubr.bf16.gmra.mrb[0].mxu0 %v1038
      %v2565 = vpop.f32.mrb[0].mxu0
      %v2566 = vadd.f32 %v2373, %v2565
      %v2567 = vpop.f32.mrb[0].mxu0
      %v2568 = vadd.f32 %v2375, %v2567
      %v2569 = vpop.f32.mrb[0].mxu0
      %v2570 = vadd.f32 %v2377, %v2569
      %v2571 = vpop.f32.mrb[0].mxu0
      %v2572 = vadd.f32 %v2379, %v2571
      %2573 = vmatprep.mubr.bf16.mxu0 %v1047
      %2574 = vmatmul.mubr.bf16.gmra.mrb[0].mxu0 %v1046
      %v2575 = vpop.f32.mrb[0].mxu0
      %v2576 = vadd.f32 %v2383, %v2575
      %v2577 = vpop.f32.mrb[0].mxu0
      %v2578 = vadd.f32 %v2385, %v2577
      %v2579 = vpop.f32.mrb[0].mxu0
      %v2580 = vadd.f32 %v2387, %v2579
      %v2581 = vpop.f32.mrb[0].mxu0
      %v2582 = vadd.f32 %v2389, %v2581
      %2583 = vmatprep.mubr.bf16.mxu0 %v1055
      %2584 = vmatmul.mubr.bf16.gmra.mrb[0].mxu0 %v1054
      %v2585 = vpop.f32.mrb[0].mxu0
      %v2586 = vadd.f32 %v2393, %v2585
      %v2587 = vpop.f32.mrb[0].mxu0
      %v2588 = vadd.f32 %v2395, %v2587
      %v2589 = vpop.f32.mrb[0].mxu0
      %v2590 = vadd.f32 %v2397, %v2589
      %v2591 = vpop.f32.mrb[0].mxu0
      %v2592 = vadd.f32 %v2399, %v2591
      %2593 = vmatprep.mubr.bf16.mxu0 %v1063
      %2594 = vmatmul.mubr.bf16.gmra.mrb[0].mxu0 %v1062
      %v2595 = vpop.f32.mrb[0].mxu0
      %v2596 = vadd.f32 %v2403, %v2595
      %v2597 = vpop.f32.mrb[0].mxu0
      %v2598 = vadd.f32 %v2405, %v2597
      %v2599 = vpop.f32.mrb[0].mxu0
      %v2600 = vadd.f32 %v2407, %v2599
      %v2601 = vpop.f32.mrb[0].mxu0
      %v2602 = vadd.f32 %v2409, %v2601
      %2603 = vmatprep.mubr.bf16.mxu0 %v1071
      %2604 = vmatmul.mubr.bf16.gmra.mrb[0].mxu0 %v1070
      %v2605 = vpop.f32.mrb[0].mxu0
      %v2606 = vadd.f32 %v2413, %v2605
      %v2607 = vpop.f32.mrb[0].mxu0
      %v2608 = vadd.f32 %v2415, %v2607
      %v2609 = vpop.f32.mrb[0].mxu0
      %v2610 = vadd.f32 %v2417, %v2609
      %v2611 = vpop.f32.mrb[0].mxu0
      %v2612 = vadd.f32 %v2419, %v2611
      %2613 = vdwg.mxu0
      %2614 = vmatprep.subr.bf16.mxu0 %v1941
      %2615 = vmatpush1.bf16.msra.mxu0 %v1940
      %2616 = vmatprep.subr.bf16.mxu0 %v1944
      %2617 = vmatpush1.bf16.msra.mxu0 %v1943
      %2618 = vmatprep.subr.bf16.mxu0 %v1947
      %2619 = vmatpush1.bf16.msra.mxu0 %v1946
      %2620 = vmatprep.subr.bf16.mxu0 %v1950
      %2621 = vmatpush1.bf16.msra.mxu0 %v1949
      %2622 = vmatprep.subr.bf16.mxu0 %v1953
      %2623 = vmatpush1.bf16.msra.mxu0 %v1952
      %2624 = vmatprep.subr.bf16.mxu0 %v1956
      %2625 = vmatpush1.bf16.msra.mxu0 %v1955
      %2626 = vmatprep.subr.bf16.mxu0 %v1959
      %2627 = vmatpush1.bf16.msra.mxu0 %v1958
      %2628 = vmatprep.subr.bf16.mxu0 %v1962
      %2629 = vmatpush1.bf16.msra.mxu0 %v1961
      %2630 = vmatprep.subr.bf16.mxu0 %v1965
      %2631 = vmatpush1.bf16.msra.mxu0 %v1964
      %2632 = vmatprep.subr.bf16.mxu0 %v1968
      %2633 = vmatpush1.bf16.msra.mxu0 %v1967
      %2634 = vmatprep.subr.bf16.mxu0 %v1971
      %2635 = vmatpush1.bf16.msra.mxu0 %v1970
      %2636 = vmatprep.subr.bf16.mxu0 %v1974
      %2637 = vmatpush1.bf16.msra.mxu0 %v1973
      %2638 = vmatprep.subr.bf16.mxu0 %v1977
      %2639 = vmatpush1.bf16.msra.mxu0 %v1976
      %2640 = vmatprep.subr.bf16.mxu0 %v1980
      %2641 = vmatpush1.bf16.msra.mxu0 %v1979
      %2642 = vmatprep.subr.bf16.mxu0 %v1983
      %2643 = vmatpush1.bf16.msra.mxu0 %v1982
      %2644 = vmatprep.subr.bf16.mxu0 %v1986
      %2645 = vmatpush1.bf16.msra.mxu0 %v1985
      %2646 = vmatprep.mubr.bf16.mxu0 %v953
      %2647 = vmatmul.mubr.bf16.gmra.mrb[0].mxu0 %v952
      %v2648 = vpop.f32.mrb[0].mxu0
      %v2649 = vadd.f32 %v2456, %v2648
      %v2650 = vpop.f32.mrb[0].mxu0
      %v2651 = vadd.f32 %v2458, %v2650
      %v2652 = vpop.f32.mrb[0].mxu0
      %v2653 = vadd.f32 %v2460, %v2652
      %v2654 = vpop.f32.mrb[0].mxu0
      %v2655 = vadd.f32 %v2462, %v2654
      %2656 = vmatprep.mubr.bf16.mxu0 %v961
      %2657 = vmatmul.mubr.bf16.gmra.mrb[0].mxu0 %v960
      %v2658 = vpop.f32.mrb[0].mxu0
      %v2659 = vadd.f32 %v2466, %v2658
      %v2660 = vpop.f32.mrb[0].mxu0
      %v2661 = vadd.f32 %v2468, %v2660
      %v2662 = vpop.f32.mrb[0].mxu0
      %v2663 = vadd.f32 %v2470, %v2662
      %v2664 = vpop.f32.mrb[0].mxu0
      %v2665 = vadd.f32 %v2472, %v2664
      %2666 = vmatprep.mubr.bf16.mxu0 %v969
      %2667 = vmatmul.mubr.bf16.gmra.mrb[0].mxu0 %v968
      %v2668 = vpop.f32.mrb[0].mxu0
      %v2669 = vadd.f32 %v2476, %v2668
      %v2670 = vpop.f32.mrb[0].mxu0
      %v2671 = vadd.f32 %v2478, %v2670
      %v2672 = vpop.f32.mrb[0].mxu0
      %v2673 = vadd.f32 %v2480, %v2672
      %v2674 = vpop.f32.mrb[0].mxu0
      %v2675 = vadd.f32 %v2482, %v2674
      %2676 = vmatprep.mubr.bf16.mxu0 %v977
      %2677 = vmatmul.mubr.bf16.gmra.mrb[0].mxu0 %v976
      %v2678 = vpop.f32.mrb[0].mxu0
      %v2679 = vadd.f32 %v2486, %v2678
      %v2680 = vpop.f32.mrb[0].mxu0
      %v2681 = vadd.f32 %v2488, %v2680
      %v2682 = vpop.f32.mrb[0].mxu0
      %v2683 = vadd.f32 %v2490, %v2682
      %v2684 = vpop.f32.mrb[0].mxu0
      %v2685 = vadd.f32 %v2492, %v2684
      %2686 = vmatprep.mubr.bf16.mxu0 %v985
      %2687 = vmatmul.mubr.bf16.gmra.mrb[0].mxu0 %v984
      %v2688 = vpop.f32.mrb[0].mxu0
      %v2689 = vadd.f32 %v2496, %v2688
      %v2690 = vpop.f32.mrb[0].mxu0
      %v2691 = vadd.f32 %v2498, %v2690
      %v2692 = vpop.f32.mrb[0].mxu0
      %v2693 = vadd.f32 %v2500, %v2692
      %v2694 = vpop.f32.mrb[0].mxu0
      %v2695 = vadd.f32 %v2502, %v2694
      %2696 = vmatprep.mubr.bf16.mxu0 %v993
      %2697 = vmatmul.mubr.bf16.gmra.mrb[0].mxu0 %v992
      %v2698 = vpop.f32.mrb[0].mxu0
      %v2699 = vadd.f32 %v2506, %v2698
      %v2700 = vpop.f32.mrb[0].mxu0
      %v2701 = vadd.f32 %v2508, %v2700
      %v2702 = vpop.f32.mrb[0].mxu0
      %v2703 = vadd.f32 %v2510, %v2702
      %v2704 = vpop.f32.mrb[0].mxu0
      %v2705 = vadd.f32 %v2512, %v2704
      %2706 = vmatprep.mubr.bf16.mxu0 %v1001
      %2707 = vmatmul.mubr.bf16.gmra.mrb[0].mxu0 %v1000
      %v2708 = vpop.f32.mrb[0].mxu0
      %v2709 = vadd.f32 %v2516, %v2708
      %v2710 = vpop.f32.mrb[0].mxu0
      %v2711 = vadd.f32 %v2518, %v2710
      %v2712 = vpop.f32.mrb[0].mxu0
      %v2713 = vadd.f32 %v2520, %v2712
      %v2714 = vpop.f32.mrb[0].mxu0
      %v2715 = vadd.f32 %v2522, %v2714
      %2716 = vmatprep.mubr.bf16.mxu0 %v1009
      %2717 = vmatmul.mubr.bf16.gmra.mrb[0].mxu0 %v1008
      %v2718 = vpop.f32.mrb[0].mxu0
      %v2719 = vadd.f32 %v2526, %v2718
      %v2720 = vpop.f32.mrb[0].mxu0
      %v2721 = vadd.f32 %v2528, %v2720
      %v2722 = vpop.f32.mrb[0].mxu0
      %v2723 = vadd.f32 %v2530, %v2722
      %v2724 = vpop.f32.mrb[0].mxu0
      %v2725 = vadd.f32 %v2532, %v2724
      %2726 = vmatprep.mubr.bf16.mxu0 %v1017
      %2727 = vmatmul.mubr.bf16.gmra.mrb[0].mxu0 %v1016
      %v2728 = vpop.f32.mrb[0].mxu0
      %v2729 = vadd.f32 %v2536, %v2728
      %v2730 = vpop.f32.mrb[0].mxu0
      %v2731 = vadd.f32 %v2538, %v2730
      %v2732 = vpop.f32.mrb[0].mxu0
      %v2733 = vadd.f32 %v2540, %v2732
      %v2734 = vpop.f32.mrb[0].mxu0
      %v2735 = vadd.f32 %v2542, %v2734
      %2736 = vmatprep.mubr.bf16.mxu0 %v1025
      %2737 = vmatmul.mubr.bf16.gmra.mrb[0].mxu0 %v1024
      %v2738 = vpop.f32.mrb[0].mxu0
      %v2739 = vadd.f32 %v2546, %v2738
      %v2740 = vpop.f32.mrb[0].mxu0
      %v2741 = vadd.f32 %v2548, %v2740
      %v2742 = vpop.f32.mrb[0].mxu0
      %v2743 = vadd.f32 %v2550, %v2742
      %v2744 = vpop.f32.mrb[0].mxu0
      %v2745 = vadd.f32 %v2552, %v2744
      %2746 = vmatprep.mubr.bf16.mxu0 %v1033
      %2747 = vmatmul.mubr.bf16.gmra.mrb[0].mxu0 %v1032
      %v2748 = vpop.f32.mrb[0].mxu0
      %v2749 = vadd.f32 %v2556, %v2748
      %v2750 = vpop.f32.mrb[0].mxu0
      %v2751 = vadd.f32 %v2558, %v2750
      %v2752 = vpop.f32.mrb[0].mxu0
      %v2753 = vadd.f32 %v2560, %v2752
      %v2754 = vpop.f32.mrb[0].mxu0
      %v2755 = vadd.f32 %v2562, %v2754
      %2756 = vmatprep.mubr.bf16.mxu0 %v1041
      %2757 = vmatmul.mubr.bf16.gmra.mrb[0].mxu0 %v1040
      %v2758 = vpop.f32.mrb[0].mxu0
      %v2759 = vadd.f32 %v2566, %v2758
      %v2760 = vpop.f32.mrb[0].mxu0
      %v2761 = vadd.f32 %v2568, %v2760
      %v2762 = vpop.f32.mrb[0].mxu0
      %v2763 = vadd.f32 %v2570, %v2762
      %v2764 = vpop.f32.mrb[0].mxu0
      %v2765 = vadd.f32 %v2572, %v2764
      %2766 = vmatprep.mubr.bf16.mxu0 %v1049
      %2767 = vmatmul.mubr.bf16.gmra.mrb[0].mxu0 %v1048
      %v2768 = vpop.f32.mrb[0].mxu0
      %v2769 = vadd.f32 %v2576, %v2768
      %v2770 = vpop.f32.mrb[0].mxu0
      %v2771 = vadd.f32 %v2578, %v2770
      %v2772 = vpop.f32.mrb[0].mxu0
      %v2773 = vadd.f32 %v2580, %v2772
      %v2774 = vpop.f32.mrb[0].mxu0
      %v2775 = vadd.f32 %v2582, %v2774
      %2776 = vmatprep.mubr.bf16.mxu0 %v1057
      %2777 = vmatmul.mubr.bf16.gmra.mrb[0].mxu0 %v1056
      %v2778 = vpop.f32.mrb[0].mxu0
      %v2779 = vadd.f32 %v2586, %v2778
      %v2780 = vpop.f32.mrb[0].mxu0
      %v2781 = vadd.f32 %v2588, %v2780
      %v2782 = vpop.f32.mrb[0].mxu0
      %v2783 = vadd.f32 %v2590, %v2782
      %v2784 = vpop.f32.mrb[0].mxu0
      %v2785 = vadd.f32 %v2592, %v2784
      %2786 = vmatprep.mubr.bf16.mxu0 %v1065
      %2787 = vmatmul.mubr.bf16.gmra.mrb[0].mxu0 %v1064
      %v2788 = vpop.f32.mrb[0].mxu0
      %v2789 = vadd.f32 %v2596, %v2788
      %v2790 = vpop.f32.mrb[0].mxu0
      %v2791 = vadd.f32 %v2598, %v2790
      %v2792 = vpop.f32.mrb[0].mxu0
      %v2793 = vadd.f32 %v2600, %v2792
      %v2794 = vpop.f32.mrb[0].mxu0
      %v2795 = vadd.f32 %v2602, %v2794
      %2796 = vmatprep.mubr.bf16.mxu0 %v1073
      %2797 = vmatmul.mubr.bf16.gmra.mrb[0].mxu0 %v1072
      %v2798 = vpop.f32.mrb[0].mxu0
      %v2799 = vadd.f32 %v2606, %v2798
      %v2800 = vpop.f32.mrb[0].mxu0
      %v2801 = vadd.f32 %v2608, %v2800
      %v2802 = vpop.f32.mrb[0].mxu0
      %v2803 = vadd.f32 %v2610, %v2802
      %v2804 = vpop.f32.mrb[0].mxu0
      %v2805 = vadd.f32 %v2612, %v2804
      %2806 = vdwg.mxu0
      %2807 = vmatprep.subr.bf16.mxu0 %v1989
      %2808 = vmatpush1.bf16.msra.mxu0 %v1988
      %2809 = vmatprep.subr.bf16.mxu0 %v1992
      %2810 = vmatpush1.bf16.msra.mxu0 %v1991
      %2811 = vmatprep.subr.bf16.mxu0 %v1995
      %2812 = vmatpush1.bf16.msra.mxu0 %v1994
      %2813 = vmatprep.subr.bf16.mxu0 %v1998
      %2814 = vmatpush1.bf16.msra.mxu0 %v1997
      %2815 = vmatprep.subr.bf16.mxu0 %v2001
      %2816 = vmatpush1.bf16.msra.mxu0 %v2000
      %2817 = vmatprep.subr.bf16.mxu0 %v2004
      %2818 = vmatpush1.bf16.msra.mxu0 %v2003
      %2819 = vmatprep.subr.bf16.mxu0 %v2007
      %2820 = vmatpush1.bf16.msra.mxu0 %v2006
      %2821 = vmatprep.subr.bf16.mxu0 %v2010
      %2822 = vmatpush1.bf16.msra.mxu0 %v2009
      %2823 = vmatprep.subr.bf16.mxu0 %v2013
      %2824 = vmatpush1.bf16.msra.mxu0 %v2012
      %2825 = vmatprep.subr.bf16.mxu0 %v2016
      %2826 = vmatpush1.bf16.msra.mxu0 %v2015
      %2827 = vmatprep.subr.bf16.mxu0 %v2019
      %2828 = vmatpush1.bf16.msra.mxu0 %v2018
      %2829 = vmatprep.subr.bf16.mxu0 %v2022
      %2830 = vmatpush1.bf16.msra.mxu0 %v2021
      %2831 = vmatprep.subr.bf16.mxu0 %v2025
      %2832 = vmatpush1.bf16.msra.mxu0 %v2024
      %2833 = vmatprep.subr.bf16.mxu0 %v2028
      %2834 = vmatpush1.bf16.msra.mxu0 %v2027
      %2835 = vmatprep.subr.bf16.mxu0 %v2031
      %2836 = vmatpush1.bf16.msra.mxu0 %v2030
      %2837 = vmatprep.subr.bf16.mxu0 %v2034
      %2838 = vmatpush1.bf16.msra.mxu0 %v2033
      %2839 = vmatprep.mubr.bf16.mxu0 %v955
      %2840 = vmatmul.mubr.bf16.gmra.mrb[0].mxu0 %v954
      %v2841 = vpop.f32.mrb[0].mxu0
      %v2842 = vadd.f32 %v2649, %v2841
      %v2843 = vpop.f32.mrb[0].mxu0
      %v2844 = vadd.f32 %v2651, %v2843
      %v2845 = vpop.f32.mrb[0].mxu0
      %v2846 = vadd.f32 %v2653, %v2845
      %v2847 = vpop.f32.mrb[0].mxu0
      %v2848 = vadd.f32 %v2655, %v2847
      %2849 = vmatprep.mubr.bf16.mxu0 %v963
      %2850 = vmatmul.mubr.bf16.gmra.mrb[0].mxu0 %v962
      %v2851 = vpop.f32.mrb[0].mxu0
      %v2852 = vadd.f32 %v2659, %v2851
      %v2853 = vpop.f32.mrb[0].mxu0
      %v2854 = vadd.f32 %v2661, %v2853
      %v2855 = vpop.f32.mrb[0].mxu0
      %v2856 = vadd.f32 %v2663, %v2855
      %v2857 = vpop.f32.mrb[0].mxu0
      %v2858 = vadd.f32 %v2665, %v2857
      %2859 = vmatprep.mubr.bf16.mxu0 %v971
      %2860 = vmatmul.mubr.bf16.gmra.mrb[0].mxu0 %v970
      %v2861 = vpop.f32.mrb[0].mxu0
      %v2862 = vadd.f32 %v2669, %v2861
      %v2863 = vpop.f32.mrb[0].mxu0
      %v2864 = vadd.f32 %v2671, %v2863
      %v2865 = vpop.f32.mrb[0].mxu0
      %v2866 = vadd.f32 %v2673, %v2865
      %v2867 = vpop.f32.mrb[0].mxu0
      %v2868 = vadd.f32 %v2675, %v2867
      %2869 = vmatprep.mubr.bf16.mxu0 %v979
      %2870 = vmatmul.mubr.bf16.gmra.mrb[0].mxu0 %v978
      %v2871 = vpop.f32.mrb[0].mxu0
      %v2872 = vadd.f32 %v2679, %v2871
      %v2873 = vpop.f32.mrb[0].mxu0
      %v2874 = vadd.f32 %v2681, %v2873
      %v2875 = vpop.f32.mrb[0].mxu0
      %v2876 = vadd.f32 %v2683, %v2875
      %v2877 = vpop.f32.mrb[0].mxu0
      %v2878 = vadd.f32 %v2685, %v2877
      %2879 = vmatprep.mubr.bf16.mxu0 %v987
      %2880 = vmatmul.mubr.bf16.gmra.mrb[0].mxu0 %v986
      %v2881 = vpop.f32.mrb[0].mxu0
      %v2882 = vadd.f32 %v2689, %v2881
      %v2883 = vpop.f32.mrb[0].mxu0
      %v2884 = vadd.f32 %v2691, %v2883
      %v2885 = vpop.f32.mrb[0].mxu0
      %v2886 = vadd.f32 %v2693, %v2885
      %v2887 = vpop.f32.mrb[0].mxu0
      %v2888 = vadd.f32 %v2695, %v2887
      %2889 = vmatprep.mubr.bf16.mxu0 %v995
      %2890 = vmatmul.mubr.bf16.gmra.mrb[0].mxu0 %v994
      %v2891 = vpop.f32.mrb[0].mxu0
      %v2892 = vadd.f32 %v2699, %v2891
      %v2893 = vpop.f32.mrb[0].mxu0
      %v2894 = vadd.f32 %v2701, %v2893
      %v2895 = vpop.f32.mrb[0].mxu0
      %v2896 = vadd.f32 %v2703, %v2895
      %v2897 = vpop.f32.mrb[0].mxu0
      %v2898 = vadd.f32 %v2705, %v2897
      %2899 = vmatprep.mubr.bf16.mxu0 %v1003
      %2900 = vmatmul.mubr.bf16.gmra.mrb[0].mxu0 %v1002
      %v2901 = vpop.f32.mrb[0].mxu0
      %v2902 = vadd.f32 %v2709, %v2901
      %v2903 = vpop.f32.mrb[0].mxu0
      %v2904 = vadd.f32 %v2711, %v2903
      %v2905 = vpop.f32.mrb[0].mxu0
      %v2906 = vadd.f32 %v2713, %v2905
      %v2907 = vpop.f32.mrb[0].mxu0
      %v2908 = vadd.f32 %v2715, %v2907
      %2909 = vmatprep.mubr.bf16.mxu0 %v1011
      %2910 = vmatmul.mubr.bf16.gmra.mrb[0].mxu0 %v1010
      %v2911 = vpop.f32.mrb[0].mxu0
      %v2912 = vadd.f32 %v2719, %v2911
      %v2913 = vpop.f32.mrb[0].mxu0
      %v2914 = vadd.f32 %v2721, %v2913
      %v2915 = vpop.f32.mrb[0].mxu0
      %v2916 = vadd.f32 %v2723, %v2915
      %v2917 = vpop.f32.mrb[0].mxu0
      %v2918 = vadd.f32 %v2725, %v2917
      %2919 = vmatprep.mubr.bf16.mxu0 %v1019
      %2920 = vmatmul.mubr.bf16.gmra.mrb[0].mxu0 %v1018
      %v2921 = vpop.f32.mrb[0].mxu0
      %v2922 = vadd.f32 %v2729, %v2921
      %v2923 = vpop.f32.mrb[0].mxu0
      %v2924 = vadd.f32 %v2731, %v2923
      %v2925 = vpop.f32.mrb[0].mxu0
      %v2926 = vadd.f32 %v2733, %v2925
      %v2927 = vpop.f32.mrb[0].mxu0
      %v2928 = vadd.f32 %v2735, %v2927
      %2929 = vmatprep.mubr.bf16.mxu0 %v1027
      %2930 = vmatmul.mubr.bf16.gmra.mrb[0].mxu0 %v1026
      %v2931 = vpop.f32.mrb[0].mxu0
      %v2932 = vadd.f32 %v2739, %v2931
      %v2933 = vpop.f32.mrb[0].mxu0
      %v2934 = vadd.f32 %v2741, %v2933
      %v2935 = vpop.f32.mrb[0].mxu0
      %v2936 = vadd.f32 %v2743, %v2935
      %v2937 = vpop.f32.mrb[0].mxu0
      %v2938 = vadd.f32 %v2745, %v2937
      %2939 = vmatprep.mubr.bf16.mxu0 %v1035
      %2940 = vmatmul.mubr.bf16.gmra.mrb[0].mxu0 %v1034
      %v2941 = vpop.f32.mrb[0].mxu0
      %v2942 = vadd.f32 %v2749, %v2941
      %v2943 = vpop.f32.mrb[0].mxu0
      %v2944 = vadd.f32 %v2751, %v2943
      %v2945 = vpop.f32.mrb[0].mxu0
      %v2946 = vadd.f32 %v2753, %v2945
      %v2947 = vpop.f32.mrb[0].mxu0
      %v2948 = vadd.f32 %v2755, %v2947
      %2949 = vmatprep.mubr.bf16.mxu0 %v1043
      %2950 = vmatmul.mubr.bf16.gmra.mrb[0].mxu0 %v1042
      %v2951 = vpop.f32.mrb[0].mxu0
      %v2952 = vadd.f32 %v2759, %v2951
      %v2953 = vpop.f32.mrb[0].mxu0
      %v2954 = vadd.f32 %v2761, %v2953
      %v2955 = vpop.f32.mrb[0].mxu0
      %v2956 = vadd.f32 %v2763, %v2955
      %v2957 = vpop.f32.mrb[0].mxu0
      %v2958 = vadd.f32 %v2765, %v2957
      %2959 = vmatprep.mubr.bf16.mxu0 %v1051
      %2960 = vmatmul.mubr.bf16.gmra.mrb[0].mxu0 %v1050
      %v2961 = vpop.f32.mrb[0].mxu0
      %v2962 = vadd.f32 %v2769, %v2961
      %v2963 = vpop.f32.mrb[0].mxu0
      %v2964 = vadd.f32 %v2771, %v2963
      %v2965 = vpop.f32.mrb[0].mxu0
      %v2966 = vadd.f32 %v2773, %v2965
      %v2967 = vpop.f32.mrb[0].mxu0
      %v2968 = vadd.f32 %v2775, %v2967
      %2969 = vmatprep.mubr.bf16.mxu0 %v1059
      %2970 = vmatmul.mubr.bf16.gmra.mrb[0].mxu0 %v1058
      %v2971 = vpop.f32.mrb[0].mxu0
      %v2972 = vadd.f32 %v2779, %v2971
      %v2973 = vpop.f32.mrb[0].mxu0
      %v2974 = vadd.f32 %v2781, %v2973
      %v2975 = vpop.f32.mrb[0].mxu0
      %v2976 = vadd.f32 %v2783, %v2975
      %v2977 = vpop.f32.mrb[0].mxu0
      %v2978 = vadd.f32 %v2785, %v2977
      %2979 = vmatprep.mubr.bf16.mxu0 %v1067
      %2980 = vmatmul.mubr.bf16.gmra.mrb[0].mxu0 %v1066
      %v2981 = vpop.f32.mrb[0].mxu0
      %v2982 = vadd.f32 %v2789, %v2981
      %v2983 = vpop.f32.mrb[0].mxu0
      %v2984 = vadd.f32 %v2791, %v2983
      %v2985 = vpop.f32.mrb[0].mxu0
      %v2986 = vadd.f32 %v2793, %v2985
      %v2987 = vpop.f32.mrb[0].mxu0
      %v2988 = vadd.f32 %v2795, %v2987
      %2989 = vmatprep.mubr.bf16.mxu0 %v1075
      %2990 = vmatmul.mubr.bf16.gmra.mrb[0].mxu0 %v1074
      %v2991 = vpop.f32.mrb[0].mxu0
      %v2992 = vadd.f32 %v2799, %v2991
      %v2993 = vpop.f32.mrb[0].mxu0
      %v2994 = vadd.f32 %v2801, %v2993
      %v2995 = vpop.f32.mrb[0].mxu0
      %v2996 = vadd.f32 %v2803, %v2995
      %v2997 = vpop.f32.mrb[0].mxu0
      %v2998 = vadd.f32 %v2805, %v2997
      %2999 = vdwg.mxu0
      %3000 = vmatprep.subr.bf16.mxu0 0
      %3001 = vmatpush1.bf16.msra.mxu0 %v1846
      %3002 = vmatprep.subr.bf16.mxu0 0
      %3003 = vmatpush1.bf16.msra.mxu0 %v1849
      %3004 = vmatprep.subr.bf16.mxu0 0
      %3005 = vmatpush1.bf16.msra.mxu0 %v1852
      %3006 = vmatprep.subr.bf16.mxu0 0
      %3007 = vmatpush1.bf16.msra.mxu0 %v1855
      %3008 = vmatprep.subr.bf16.mxu0 0
      %3009 = vmatpush1.bf16.msra.mxu0 %v1858
      %3010 = vmatprep.subr.bf16.mxu0 0
      %3011 = vmatpush1.bf16.msra.mxu0 %v1861
      %3012 = vmatprep.subr.bf16.mxu0 0
      %3013 = vmatpush1.bf16.msra.mxu0 %v1864
      %3014 = vmatprep.subr.bf16.mxu0 0
      %3015 = vmatpush1.bf16.msra.mxu0 %v1867
      %3016 = vmatprep.subr.bf16.mxu0 0
      %3017 = vmatpush1.bf16.msra.mxu0 %v1870
      %3018 = vmatprep.subr.bf16.mxu0 0
      %3019 = vmatpush1.bf16.msra.mxu0 %v1873
      %3020 = vmatprep.subr.bf16.mxu0 0
      %3021 = vmatpush1.bf16.msra.mxu0 %v1876
      %3022 = vmatprep.subr.bf16.mxu0 0
      %3023 = vmatpush1.bf16.msra.mxu0 %v1879
      %3024 = vmatprep.subr.bf16.mxu0 0
      %3025 = vmatpush1.bf16.msra.mxu0 %v1882
      %3026 = vmatprep.subr.bf16.mxu0 0
      %3027 = vmatpush1.bf16.msra.mxu0 %v1885
      %3028 = vmatprep.subr.bf16.mxu0 0
      %3029 = vmatpush1.bf16.msra.mxu0 %v1888
      %3030 = vmatprep.subr.bf16.mxu0 0
      %3031 = vmatpush1.bf16.msra.mxu0 %v1891
      %3032 = vmatprep.mubr.bf16.mxu0 %v949
      %3033 = vmatmul.mubr.bf16.gmra.mrb[0].mxu0 %v948
      %v3034 = vpop.f32.mrb[0].mxu0
      %v3035 = vadd.f32 0.0, %v3034
      %v3036 = vpop.f32.mrb[0].mxu0
      %v3037 = vpop.f32.mrb[0].mxu0
      %v3038 = vadd.f32 0.0, %v3037
      %v3039 = vpop.f32.mrb[0].mxu0
      %3040 = vmatprep.mubr.bf16.mxu0 %v957
      %3041 = vmatmul.mubr.bf16.gmra.mrb[0].mxu0 %v956
      %v3042 = vpop.f32.mrb[0].mxu0
      %v3043 = vadd.f32 0.0, %v3042
      %v3044 = vpop.f32.mrb[0].mxu0
      %v3045 = vpop.f32.mrb[0].mxu0
      %v3046 = vadd.f32 0.0, %v3045
      %v3047 = vpop.f32.mrb[0].mxu0
      %3048 = vmatprep.mubr.bf16.mxu0 %v965
      %3049 = vmatmul.mubr.bf16.gmra.mrb[0].mxu0 %v964
      %v3050 = vpop.f32.mrb[0].mxu0
      %v3051 = vadd.f32 0.0, %v3050
      %v3052 = vpop.f32.mrb[0].mxu0
      %v3053 = vpop.f32.mrb[0].mxu0
      %v3054 = vadd.f32 0.0, %v3053
      %v3055 = vpop.f32.mrb[0].mxu0
      %3056 = vmatprep.mubr.bf16.mxu0 %v973
      %3057 = vmatmul.mubr.bf16.gmra.mrb[0].mxu0 %v972
      %v3058 = vpop.f32.mrb[0].mxu0
      %v3059 = vadd.f32 0.0, %v3058
      %v3060 = vpop.f32.mrb[0].mxu0
      %v3061 = vpop.f32.mrb[0].mxu0
      %v3062 = vadd.f32 0.0, %v3061
      %v3063 = vpop.f32.mrb[0].mxu0
      %3064 = vmatprep.mubr.bf16.mxu0 %v981
      %3065 = vmatmul.mubr.bf16.gmra.mrb[0].mxu0 %v980
      %v3066 = vpop.f32.mrb[0].mxu0
      %v3067 = vadd.f32 0.0, %v3066
      %v3068 = vpop.f32.mrb[0].mxu0
      %v3069 = vpop.f32.mrb[0].mxu0
      %v3070 = vadd.f32 0.0, %v3069
      %v3071 = vpop.f32.mrb[0].mxu0
      %3072 = vmatprep.mubr.bf16.mxu0 %v989
      %3073 = vmatmul.mubr.bf16.gmra.mrb[0].mxu0 %v988
      %v3074 = vpop.f32.mrb[0].mxu0
      %v3075 = vadd.f32 0.0, %v3074
      %v3076 = vpop.f32.mrb[0].mxu0
      %v3077 = vpop.f32.mrb[0].mxu0
      %v3078 = vadd.f32 0.0, %v3077
      %v3079 = vpop.f32.mrb[0].mxu0
      %3080 = vmatprep.mubr.bf16.mxu0 %v997
      %3081 = vmatmul.mubr.bf16.gmra.mrb[0].mxu0 %v996
      %v3082 = vpop.f32.mrb[0].mxu0
      %v3083 = vadd.f32 0.0, %v3082
      %v3084 = vpop.f32.mrb[0].mxu0
      %v3085 = vpop.f32.mrb[0].mxu0
      %v3086 = vadd.f32 0.0, %v3085
      %v3087 = vpop.f32.mrb[0].mxu0
      %3088 = vmatprep.mubr.bf16.mxu0 %v1005
      %3089 = vmatmul.mubr.bf16.gmra.mrb[0].mxu0 %v1004
      %v3090 = vpop.f32.mrb[0].mxu0
      %v3091 = vadd.f32 0.0, %v3090
      %v3092 = vpop.f32.mrb[0].mxu0
      %v3093 = vpop.f32.mrb[0].mxu0
      %v3094 = vadd.f32 0.0, %v3093
      %v3095 = vpop.f32.mrb[0].mxu0
      %3096 = vmatprep.mubr.bf16.mxu0 %v1013
      %3097 = vmatmul.mubr.bf16.gmra.mrb[0].mxu0 %v1012
      %v3098 = vpop.f32.mrb[0].mxu0
      %v3099 = vadd.f32 0.0, %v3098
      %v3100 = vpop.f32.mrb[0].mxu0
      %v3101 = vpop.f32.mrb[0].mxu0
      %v3102 = vadd.f32 0.0, %v3101
      %v3103 = vpop.f32.mrb[0].mxu0
      %3104 = vmatprep.mubr.bf16.mxu0 %v1021
      %3105 = vmatmul.mubr.bf16.gmra.mrb[0].mxu0 %v1020
      %v3106 = vpop.f32.mrb[0].mxu0
      %v3107 = vadd.f32 0.0, %v3106
      %v3108 = vpop.f32.mrb[0].mxu0
      %v3109 = vpop.f32.mrb[0].mxu0
      %v3110 = vadd.f32 0.0, %v3109
      %v3111 = vpop.f32.mrb[0].mxu0
      %3112 = vmatprep.mubr.bf16.mxu0 %v1029
      %3113 = vmatmul.mubr.bf16.gmra.mrb[0].mxu0 %v1028
      %v3114 = vpop.f32.mrb[0].mxu0
      %v3115 = vadd.f32 0.0, %v3114
      %v3116 = vpop.f32.mrb[0].mxu0
      %v3117 = vpop.f32.mrb[0].mxu0
      %v3118 = vadd.f32 0.0, %v3117
      %v3119 = vpop.f32.mrb[0].mxu0
      %3120 = vmatprep.mubr.bf16.mxu0 %v1037
      %3121 = vmatmul.mubr.bf16.gmra.mrb[0].mxu0 %v1036
      %v3122 = vpop.f32.mrb[0].mxu0
      %v3123 = vadd.f32 0.0, %v3122
      %v3124 = vpop.f32.mrb[0].mxu0
      %v3125 = vpop.f32.mrb[0].mxu0
      %v3126 = vadd.f32 0.0, %v3125
      %v3127 = vpop.f32.mrb[0].mxu0
      %3128 = vmatprep.mubr.bf16.mxu0 %v1045
      %3129 = vmatmul.mubr.bf16.gmra.mrb[0].mxu0 %v1044
      %v3130 = vpop.f32.mrb[0].mxu0
      %v3131 = vadd.f32 0.0, %v3130
      %v3132 = vpop.f32.mrb[0].mxu0
      %v3133 = vpop.f32.mrb[0].mxu0
      %v3134 = vadd.f32 0.0, %v3133
      %v3135 = vpop.f32.mrb[0].mxu0
      %3136 = vmatprep.mubr.bf16.mxu0 %v1053
      %3137 = vmatmul.mubr.bf16.gmra.mrb[0].mxu0 %v1052
      %v3138 = vpop.f32.mrb[0].mxu0
      %v3139 = vadd.f32 0.0, %v3138
      %v3140 = vpop.f32.mrb[0].mxu0
      %v3141 = vpop.f32.mrb[0].mxu0
      %v3142 = vadd.f32 0.0, %v3141
      %v3143 = vpop.f32.mrb[0].mxu0
      %3144 = vmatprep.mubr.bf16.mxu0 %v1061
      %3145 = vmatmul.mubr.bf16.gmra.mrb[0].mxu0 %v1060
      %v3146 = vpop.f32.mrb[0].mxu0
      %v3147 = vadd.f32 0.0, %v3146
      %v3148 = vpop.f32.mrb[0].mxu0
      %v3149 = vpop.f32.mrb[0].mxu0
      %v3150 = vadd.f32 0.0, %v3149
      %v3151 = vpop.f32.mrb[0].mxu0
      %3152 = vmatprep.mubr.bf16.mxu0 %v1069
      %3153 = vmatmul.mubr.bf16.gmra.mrb[0].mxu0 %v1068
      %v3154 = vpop.f32.mrb[0].mxu0
      %v3155 = vadd.f32 0.0, %v3154
      %v3156 = vpop.f32.mrb[0].mxu0
      %v3157 = vpop.f32.mrb[0].mxu0
      %v3158 = vadd.f32 0.0, %v3157
      %v3159 = vpop.f32.mrb[0].mxu0
      %3160 = vdwg.mxu0
      %3161 = vmatprep.subr.bf16.mxu0 0
      %3162 = vmatpush1.bf16.msra.mxu0 %v1894
      %3163 = vmatprep.subr.bf16.mxu0 0
      %3164 = vmatpush1.bf16.msra.mxu0 %v1897
      %3165 = vmatprep.subr.bf16.mxu0 0
      %3166 = vmatpush1.bf16.msra.mxu0 %v1900
      %3167 = vmatprep.subr.bf16.mxu0 0
      %3168 = vmatpush1.bf16.msra.mxu0 %v1903
      %3169 = vmatprep.subr.bf16.mxu0 0
      %3170 = vmatpush1.bf16.msra.mxu0 %v1906
      %3171 = vmatprep.subr.bf16.mxu0 0
      %3172 = vmatpush1.bf16.msra.mxu0 %v1909
      %3173 = vmatprep.subr.bf16.mxu0 0
      %3174 = vmatpush1.bf16.msra.mxu0 %v1912
      %3175 = vmatprep.subr.bf16.mxu0 0
      %3176 = vmatpush1.bf16.msra.mxu0 %v1915
      %3177 = vmatprep.subr.bf16.mxu0 0
      %3178 = vmatpush1.bf16.msra.mxu0 %v1918
      %3179 = vmatprep.subr.bf16.mxu0 0
      %3180 = vmatpush1.bf16.msra.mxu0 %v1921
      %3181 = vmatprep.subr.bf16.mxu0 0
      %3182 = vmatpush1.bf16.msra.mxu0 %v1924
      %3183 = vmatprep.subr.bf16.mxu0 0
      %3184 = vmatpush1.bf16.msra.mxu0 %v1927
      %3185 = vmatprep.subr.bf16.mxu0 0
      %3186 = vmatpush1.bf16.msra.mxu0 %v1930
      %3187 = vmatprep.subr.bf16.mxu0 0
      %3188 = vmatpush1.bf16.msra.mxu0 %v1933
      %3189 = vmatprep.subr.bf16.mxu0 0
      %3190 = vmatpush1.bf16.msra.mxu0 %v1936
      %3191 = vmatprep.subr.bf16.mxu0 0
      %3192 = vmatpush1.bf16.msra.mxu0 %v1939
      %3193 = vmatprep.mubr.bf16.mxu0 %v951
      %3194 = vmatmul.mubr.bf16.gmra.mrb[0].mxu0 %v950
      %v3195 = vpop.f32.mrb[0].mxu0
      %v3196 = vadd.f32 %v3035, %v3195
      %v3197 = vpop.f32.mrb[0].mxu0
      %v3198 = vpop.f32.mrb[0].mxu0
      %v3199 = vadd.f32 %v3038, %v3198
      %v3200 = vpop.f32.mrb[0].mxu0
      %3201 = vmatprep.mubr.bf16.mxu0 %v959
      %3202 = vmatmul.mubr.bf16.gmra.mrb[0].mxu0 %v958
      %v3203 = vpop.f32.mrb[0].mxu0
      %v3204 = vadd.f32 %v3043, %v3203
      %v3205 = vpop.f32.mrb[0].mxu0
      %v3206 = vpop.f32.mrb[0].mxu0
      %v3207 = vadd.f32 %v3046, %v3206
      %v3208 = vpop.f32.mrb[0].mxu0
      %3209 = vmatprep.mubr.bf16.mxu0 %v967
      %3210 = vmatmul.mubr.bf16.gmra.mrb[0].mxu0 %v966
      %v3211 = vpop.f32.mrb[0].mxu0
      %v3212 = vadd.f32 %v3051, %v3211
      %v3213 = vpop.f32.mrb[0].mxu0
      %v3214 = vpop.f32.mrb[0].mxu0
      %v3215 = vadd.f32 %v3054, %v3214
      %v3216 = vpop.f32.mrb[0].mxu0
      %3217 = vmatprep.mubr.bf16.mxu0 %v975
      %3218 = vmatmul.mubr.bf16.gmra.mrb[0].mxu0 %v974
      %v3219 = vpop.f32.mrb[0].mxu0
      %v3220 = vadd.f32 %v3059, %v3219
      %v3221 = vpop.f32.mrb[0].mxu0
      %v3222 = vpop.f32.mrb[0].mxu0
      %v3223 = vadd.f32 %v3062, %v3222
      %v3224 = vpop.f32.mrb[0].mxu0
      %3225 = vmatprep.mubr.bf16.mxu0 %v983
      %3226 = vmatmul.mubr.bf16.gmra.mrb[0].mxu0 %v982
      %v3227 = vpop.f32.mrb[0].mxu0
      %v3228 = vadd.f32 %v3067, %v3227
      %v3229 = vpop.f32.mrb[0].mxu0
      %v3230 = vpop.f32.mrb[0].mxu0
      %v3231 = vadd.f32 %v3070, %v3230
      %v3232 = vpop.f32.mrb[0].mxu0
      %3233 = vmatprep.mubr.bf16.mxu0 %v991
      %3234 = vmatmul.mubr.bf16.gmra.mrb[0].mxu0 %v990
      %v3235 = vpop.f32.mrb[0].mxu0
      %v3236 = vadd.f32 %v3075, %v3235
      %v3237 = vpop.f32.mrb[0].mxu0
      %v3238 = vpop.f32.mrb[0].mxu0
      %v3239 = vadd.f32 %v3078, %v3238
      %v3240 = vpop.f32.mrb[0].mxu0
      %3241 = vmatprep.mubr.bf16.mxu0 %v999
      %3242 = vmatmul.mubr.bf16.gmra.mrb[0].mxu0 %v998
      %v3243 = vpop.f32.mrb[0].mxu0
      %v3244 = vadd.f32 %v3083, %v3243
      %v3245 = vpop.f32.mrb[0].mxu0
      %v3246 = vpop.f32.mrb[0].mxu0
      %v3247 = vadd.f32 %v3086, %v3246
      %v3248 = vpop.f32.mrb[0].mxu0
      %3249 = vmatprep.mubr.bf16.mxu0 %v1007
      %3250 = vmatmul.mubr.bf16.gmra.mrb[0].mxu0 %v1006
      %v3251 = vpop.f32.mrb[0].mxu0
      %v3252 = vadd.f32 %v3091, %v3251
      %v3253 = vpop.f32.mrb[0].mxu0
      %v3254 = vpop.f32.mrb[0].mxu0
      %v3255 = vadd.f32 %v3094, %v3254
      %v3256 = vpop.f32.mrb[0].mxu0
      %3257 = vmatprep.mubr.bf16.mxu0 %v1015
      %3258 = vmatmul.mubr.bf16.gmra.mrb[0].mxu0 %v1014
      %v3259 = vpop.f32.mrb[0].mxu0
      %v3260 = vadd.f32 %v3099, %v3259
      %v3261 = vpop.f32.mrb[0].mxu0
      %v3262 = vpop.f32.mrb[0].mxu0
      %v3263 = vadd.f32 %v3102, %v3262
      %v3264 = vpop.f32.mrb[0].mxu0
      %3265 = vmatprep.mubr.bf16.mxu0 %v1023
      %3266 = vmatmul.mubr.bf16.gmra.mrb[0].mxu0 %v1022
      %v3267 = vpop.f32.mrb[0].mxu0
      %v3268 = vadd.f32 %v3107, %v3267
      %v3269 = vpop.f32.mrb[0].mxu0
      %v3270 = vpop.f32.mrb[0].mxu0
      %v3271 = vadd.f32 %v3110, %v3270
      %v3272 = vpop.f32.mrb[0].mxu0
      %3273 = vmatprep.mubr.bf16.mxu0 %v1031
      %3274 = vmatmul.mubr.bf16.gmra.mrb[0].mxu0 %v1030
      %v3275 = vpop.f32.mrb[0].mxu0
      %v3276 = vadd.f32 %v3115, %v3275
      %v3277 = vpop.f32.mrb[0].mxu0
      %v3278 = vpop.f32.mrb[0].mxu0
      %v3279 = vadd.f32 %v3118, %v3278
      %v3280 = vpop.f32.mrb[0].mxu0
      %3281 = vmatprep.mubr.bf16.mxu0 %v1039
      %3282 = vmatmul.mubr.bf16.gmra.mrb[0].mxu0 %v1038
      %v3283 = vpop.f32.mrb[0].mxu0
      %v3284 = vadd.f32 %v3123, %v3283
      %v3285 = vpop.f32.mrb[0].mxu0
      %v3286 = vpop.f32.mrb[0].mxu0
      %v3287 = vadd.f32 %v3126, %v3286
      %v3288 = vpop.f32.mrb[0].mxu0
      %3289 = vmatprep.mubr.bf16.mxu0 %v1047
      %3290 = vmatmul.mubr.bf16.gmra.mrb[0].mxu0 %v1046
      %v3291 = vpop.f32.mrb[0].mxu0
      %v3292 = vadd.f32 %v3131, %v3291
      %v3293 = vpop.f32.mrb[0].mxu0
      %v3294 = vpop.f32.mrb[0].mxu0
      %v3295 = vadd.f32 %v3134, %v3294
      %v3296 = vpop.f32.mrb[0].mxu0
      %3297 = vmatprep.mubr.bf16.mxu0 %v1055
      %3298 = vmatmul.mubr.bf16.gmra.mrb[0].mxu0 %v1054
      %v3299 = vpop.f32.mrb[0].mxu0
      %v3300 = vadd.f32 %v3139, %v3299
      %v3301 = vpop.f32.mrb[0].mxu0
      %v3302 = vpop.f32.mrb[0].mxu0
      %v3303 = vadd.f32 %v3142, %v3302
      %v3304 = vpop.f32.mrb[0].mxu0
      %3305 = vmatprep.mubr.bf16.mxu0 %v1063
      %3306 = vmatmul.mubr.bf16.gmra.mrb[0].mxu0 %v1062
      %v3307 = vpop.f32.mrb[0].mxu0
      %v3308 = vadd.f32 %v3147, %v3307
      %v3309 = vpop.f32.mrb[0].mxu0
      %v3310 = vpop.f32.mrb[0].mxu0
      %v3311 = vadd.f32 %v3150, %v3310
      %v3312 = vpop.f32.mrb[0].mxu0
      %3313 = vmatprep.mubr.bf16.mxu0 %v1071
      %3314 = vmatmul.mubr.bf16.gmra.mrb[0].mxu0 %v1070
      %v3315 = vpop.f32.mrb[0].mxu0
      %v3316 = vadd.f32 %v3155, %v3315
      %v3317 = vpop.f32.mrb[0].mxu0
      %v3318 = vpop.f32.mrb[0].mxu0
      %v3319 = vadd.f32 %v3158, %v3318
      %v3320 = vpop.f32.mrb[0].mxu0
      %3321 = vdwg.mxu0
      %3322 = vmatprep.subr.bf16.mxu0 0
      %3323 = vmatpush1.bf16.msra.mxu0 %v1942
      %3324 = vmatprep.subr.bf16.mxu0 0
      %3325 = vmatpush1.bf16.msra.mxu0 %v1945
      %3326 = vmatprep.subr.bf16.mxu0 0
      %3327 = vmatpush1.bf16.msra.mxu0 %v1948
      %3328 = vmatprep.subr.bf16.mxu0 0
      %3329 = vmatpush1.bf16.msra.mxu0 %v1951
      %3330 = vmatprep.subr.bf16.mxu0 0
      %3331 = vmatpush1.bf16.msra.mxu0 %v1954
      %3332 = vmatprep.subr.bf16.mxu0 0
      %3333 = vmatpush1.bf16.msra.mxu0 %v1957
      %3334 = vmatprep.subr.bf16.mxu0 0
      %3335 = vmatpush1.bf16.msra.mxu0 %v1960
      %3336 = vmatprep.subr.bf16.mxu0 0
      %3337 = vmatpush1.bf16.msra.mxu0 %v1963
      %3338 = vmatprep.subr.bf16.mxu0 0
      %3339 = vmatpush1.bf16.msra.mxu0 %v1966
      %3340 = vmatprep.subr.bf16.mxu0 0
      %3341 = vmatpush1.bf16.msra.mxu0 %v1969
      %3342 = vmatprep.subr.bf16.mxu0 0
      %3343 = vmatpush1.bf16.msra.mxu0 %v1972
      %3344 = vmatprep.subr.bf16.mxu0 0
      %3345 = vmatpush1.bf16.msra.mxu0 %v1975
      %3346 = vmatprep.subr.bf16.mxu0 0
      %3347 = vmatpush1.bf16.msra.mxu0 %v1978
      %3348 = vmatprep.subr.bf16.mxu0 0
      %3349 = vmatpush1.bf16.msra.mxu0 %v1981
      %3350 = vmatprep.subr.bf16.mxu0 0
      %3351 = vmatpush1.bf16.msra.mxu0 %v1984
      %3352 = vmatprep.subr.bf16.mxu0 0
      %3353 = vmatpush1.bf16.msra.mxu0 %v1987
      %3354 = vmatprep.mubr.bf16.mxu0 %v953
      %3355 = vmatmul.mubr.bf16.gmra.mrb[0].mxu0 %v952
      %v3356 = vpop.f32.mrb[0].mxu0
      %v3357 = vadd.f32 %v3196, %v3356
      %v3358 = vpop.f32.mrb[0].mxu0
      %v3359 = vpop.f32.mrb[0].mxu0
      %v3360 = vadd.f32 %v3199, %v3359
      %v3361 = vpop.f32.mrb[0].mxu0
      %3362 = vmatprep.mubr.bf16.mxu0 %v961
      %3363 = vmatmul.mubr.bf16.gmra.mrb[0].mxu0 %v960
      %v3364 = vpop.f32.mrb[0].mxu0
      %v3365 = vadd.f32 %v3204, %v3364
      %v3366 = vpop.f32.mrb[0].mxu0
      %v3367 = vpop.f32.mrb[0].mxu0
      %v3368 = vadd.f32 %v3207, %v3367
      %v3369 = vpop.f32.mrb[0].mxu0
      %3370 = vmatprep.mubr.bf16.mxu0 %v969
      %3371 = vmatmul.mubr.bf16.gmra.mrb[0].mxu0 %v968
      %v3372 = vpop.f32.mrb[0].mxu0
      %v3373 = vadd.f32 %v3212, %v3372
      %v3374 = vpop.f32.mrb[0].mxu0
      %v3375 = vpop.f32.mrb[0].mxu0
      %v3376 = vadd.f32 %v3215, %v3375
      %v3377 = vpop.f32.mrb[0].mxu0
      %3378 = vmatprep.mubr.bf16.mxu0 %v977
      %3379 = vmatmul.mubr.bf16.gmra.mrb[0].mxu0 %v976
      %v3380 = vpop.f32.mrb[0].mxu0
      %v3381 = vadd.f32 %v3220, %v3380
      %v3382 = vpop.f32.mrb[0].mxu0
      %v3383 = vpop.f32.mrb[0].mxu0
      %v3384 = vadd.f32 %v3223, %v3383
      %v3385 = vpop.f32.mrb[0].mxu0
      %3386 = vmatprep.mubr.bf16.mxu0 %v985
      %3387 = vmatmul.mubr.bf16.gmra.mrb[0].mxu0 %v984
      %v3388 = vpop.f32.mrb[0].mxu0
      %v3389 = vadd.f32 %v3228, %v3388
      %v3390 = vpop.f32.mrb[0].mxu0
      %v3391 = vpop.f32.mrb[0].mxu0
      %v3392 = vadd.f32 %v3231, %v3391
      %v3393 = vpop.f32.mrb[0].mxu0
      %3394 = vmatprep.mubr.bf16.mxu0 %v993
      %3395 = vmatmul.mubr.bf16.gmra.mrb[0].mxu0 %v992
      %v3396 = vpop.f32.mrb[0].mxu0
      %v3397 = vadd.f32 %v3236, %v3396
      %v3398 = vpop.f32.mrb[0].mxu0
      %v3399 = vpop.f32.mrb[0].mxu0
      %v3400 = vadd.f32 %v3239, %v3399
      %v3401 = vpop.f32.mrb[0].mxu0
      %3402 = vmatprep.mubr.bf16.mxu0 %v1001
      %3403 = vmatmul.mubr.bf16.gmra.mrb[0].mxu0 %v1000
      %v3404 = vpop.f32.mrb[0].mxu0
      %v3405 = vadd.f32 %v3244, %v3404
      %v3406 = vpop.f32.mrb[0].mxu0
      %v3407 = vpop.f32.mrb[0].mxu0
      %v3408 = vadd.f32 %v3247, %v3407
      %v3409 = vpop.f32.mrb[0].mxu0
      %3410 = vmatprep.mubr.bf16.mxu0 %v1009
      %3411 = vmatmul.mubr.bf16.gmra.mrb[0].mxu0 %v1008
      %v3412 = vpop.f32.mrb[0].mxu0
      %v3413 = vadd.f32 %v3252, %v3412
      %v3414 = vpop.f32.mrb[0].mxu0
      %v3415 = vpop.f32.mrb[0].mxu0
      %v3416 = vadd.f32 %v3255, %v3415
      %v3417 = vpop.f32.mrb[0].mxu0
      %3418 = vmatprep.mubr.bf16.mxu0 %v1017
      %3419 = vmatmul.mubr.bf16.gmra.mrb[0].mxu0 %v1016
      %v3420 = vpop.f32.mrb[0].mxu0
      %v3421 = vadd.f32 %v3260, %v3420
      %v3422 = vpop.f32.mrb[0].mxu0
      %v3423 = vpop.f32.mrb[0].mxu0
      %v3424 = vadd.f32 %v3263, %v3423
      %v3425 = vpop.f32.mrb[0].mxu0
      %3426 = vmatprep.mubr.bf16.mxu0 %v1025
      %3427 = vmatmul.mubr.bf16.gmra.mrb[0].mxu0 %v1024
      %v3428 = vpop.f32.mrb[0].mxu0
      %v3429 = vadd.f32 %v3268, %v3428
      %v3430 = vpop.f32.mrb[0].mxu0
      %v3431 = vpop.f32.mrb[0].mxu0
      %v3432 = vadd.f32 %v3271, %v3431
      %v3433 = vpop.f32.mrb[0].mxu0
      %3434 = vmatprep.mubr.bf16.mxu0 %v1033
      %3435 = vmatmul.mubr.bf16.gmra.mrb[0].mxu0 %v1032
      %v3436 = vpop.f32.mrb[0].mxu0
      %v3437 = vadd.f32 %v3276, %v3436
      %v3438 = vpop.f32.mrb[0].mxu0
      %v3439 = vpop.f32.mrb[0].mxu0
      %v3440 = vadd.f32 %v3279, %v3439
      %v3441 = vpop.f32.mrb[0].mxu0
      %3442 = vmatprep.mubr.bf16.mxu0 %v1041
      %3443 = vmatmul.mubr.bf16.gmra.mrb[0].mxu0 %v1040
      %v3444 = vpop.f32.mrb[0].mxu0
      %v3445 = vadd.f32 %v3284, %v3444
      %v3446 = vpop.f32.mrb[0].mxu0
      %v3447 = vpop.f32.mrb[0].mxu0
      %v3448 = vadd.f32 %v3287, %v3447
      %v3449 = vpop.f32.mrb[0].mxu0
      %3450 = vmatprep.mubr.bf16.mxu0 %v1049
      %3451 = vmatmul.mubr.bf16.gmra.mrb[0].mxu0 %v1048
      %v3452 = vpop.f32.mrb[0].mxu0
      %v3453 = vadd.f32 %v3292, %v3452
      %v3454 = vpop.f32.mrb[0].mxu0
      %v3455 = vpop.f32.mrb[0].mxu0
      %v3456 = vadd.f32 %v3295, %v3455
      %v3457 = vpop.f32.mrb[0].mxu0
      %3458 = vmatprep.mubr.bf16.mxu0 %v1057
      %3459 = vmatmul.mubr.bf16.gmra.mrb[0].mxu0 %v1056
      %v3460 = vpop.f32.mrb[0].mxu0
      %v3461 = vadd.f32 %v3300, %v3460
      %v3462 = vpop.f32.mrb[0].mxu0
      %v3463 = vpop.f32.mrb[0].mxu0
      %v3464 = vadd.f32 %v3303, %v3463
      %v3465 = vpop.f32.mrb[0].mxu0
      %3466 = vmatprep.mubr.bf16.mxu0 %v1065
      %3467 = vmatmul.mubr.bf16.gmra.mrb[0].mxu0 %v1064
      %v3468 = vpop.f32.mrb[0].mxu0
      %v3469 = vadd.f32 %v3308, %v3468
      %v3470 = vpop.f32.mrb[0].mxu0
      %v3471 = vpop.f32.mrb[0].mxu0
      %v3472 = vadd.f32 %v3311, %v3471
      %v3473 = vpop.f32.mrb[0].mxu0
      %3474 = vmatprep.mubr.bf16.mxu0 %v1073
      %3475 = vmatmul.mubr.bf16.gmra.mrb[0].mxu0 %v1072
      %v3476 = vpop.f32.mrb[0].mxu0
      %v3477 = vadd.f32 %v3316, %v3476
      %v3478 = vpop.f32.mrb[0].mxu0
      %v3479 = vpop.f32.mrb[0].mxu0
      %v3480 = vadd.f32 %v3319, %v3479
      %v3481 = vpop.f32.mrb[0].mxu0
      %3482 = vdwg.mxu0
      %3483 = vmatprep.subr.bf16.mxu0 0
      %3484 = vmatpush1.bf16.msra.mxu0 %v1990
      %3485 = vmatprep.subr.bf16.mxu0 0
      %3486 = vmatpush1.bf16.msra.mxu0 %v1993
      %3487 = vmatprep.subr.bf16.mxu0 0
      %3488 = vmatpush1.bf16.msra.mxu0 %v1996
      %3489 = vmatprep.subr.bf16.mxu0 0
      %3490 = vmatpush1.bf16.msra.mxu0 %v1999
      %3491 = vmatprep.subr.bf16.mxu0 0
      %3492 = vmatpush1.bf16.msra.mxu0 %v2002
      %3493 = vmatprep.subr.bf16.mxu0 0
      %3494 = vmatpush1.bf16.msra.mxu0 %v2005
      %3495 = vmatprep.subr.bf16.mxu0 0
      %3496 = vmatpush1.bf16.msra.mxu0 %v2008
      %3497 = vmatprep.subr.bf16.mxu0 0
      %3498 = vmatpush1.bf16.msra.mxu0 %v2011
      %3499 = vmatprep.subr.bf16.mxu0 0
      %3500 = vmatpush1.bf16.msra.mxu0 %v2014
      %3501 = vmatprep.subr.bf16.mxu0 0
      %3502 = vmatpush1.bf16.msra.mxu0 %v2017
      %3503 = vmatprep.subr.bf16.mxu0 0
      %3504 = vmatpush1.bf16.msra.mxu0 %v2020
      %3505 = vmatprep.subr.bf16.mxu0 0
      %3506 = vmatpush1.bf16.msra.mxu0 %v2023
      %3507 = vmatprep.subr.bf16.mxu0 0
      %3508 = vmatpush1.bf16.msra.mxu0 %v2026
      %3509 = vmatprep.subr.bf16.mxu0 0
      %3510 = vmatpush1.bf16.msra.mxu0 %v2029
      %3511 = vmatprep.subr.bf16.mxu0 0
      %3512 = vmatpush1.bf16.msra.mxu0 %v2032
      %3513 = vmatprep.subr.bf16.mxu0 0
      %3514 = vmatpush1.bf16.msra.mxu0 %v2035
      %3515 = vmatprep.mubr.bf16.mxu0 %v955
      %3516 = vmatmul.mubr.bf16.gmra.mrb[0].mxu0 %v954
      %v3517 = vpop.f32.mrb[0].mxu0
      %v3518 = vadd.f32 %v3357, %v3517
      %v3519 = vpop.f32.mrb[0].mxu0
      %v3520 = vpop.f32.mrb[0].mxu0
      %v3521 = vadd.f32 %v3360, %v3520
      %v3522 = vpop.f32.mrb[0].mxu0
      %3523 = vmatprep.mubr.bf16.mxu0 %v963
      %3524 = vmatmul.mubr.bf16.gmra.mrb[0].mxu0 %v962
      %v3525 = vpop.f32.mrb[0].mxu0
      %v3526 = vadd.f32 %v3365, %v3525
      %v3527 = vpop.f32.mrb[0].mxu0
      %v3528 = vpop.f32.mrb[0].mxu0
      %v3529 = vadd.f32 %v3368, %v3528
      %v3530 = vpop.f32.mrb[0].mxu0
      %3531 = vmatprep.mubr.bf16.mxu0 %v971
      %3532 = vmatmul.mubr.bf16.gmra.mrb[0].mxu0 %v970
      %v3533 = vpop.f32.mrb[0].mxu0
      %v3534 = vadd.f32 %v3373, %v3533
      %v3535 = vpop.f32.mrb[0].mxu0
      %v3536 = vpop.f32.mrb[0].mxu0
      %v3537 = vadd.f32 %v3376, %v3536
      %v3538 = vpop.f32.mrb[0].mxu0
      %3539 = vmatprep.mubr.bf16.mxu0 %v979
      %3540 = vmatmul.mubr.bf16.gmra.mrb[0].mxu0 %v978
      %v3541 = vpop.f32.mrb[0].mxu0
      %v3542 = vadd.f32 %v3381, %v3541
      %v3543 = vpop.f32.mrb[0].mxu0
      %v3544 = vpop.f32.mrb[0].mxu0
      %v3545 = vadd.f32 %v3384, %v3544
      %v3546 = vpop.f32.mrb[0].mxu0
      %3547 = vmatprep.mubr.bf16.mxu0 %v987
      %3548 = vmatmul.mubr.bf16.gmra.mrb[0].mxu0 %v986
      %v3549 = vpop.f32.mrb[0].mxu0
      %v3550 = vadd.f32 %v3389, %v3549
      %v3551 = vpop.f32.mrb[0].mxu0
      %v3552 = vpop.f32.mrb[0].mxu0
      %v3553 = vadd.f32 %v3392, %v3552
      %v3554 = vpop.f32.mrb[0].mxu0
      %3555 = vmatprep.mubr.bf16.mxu0 %v995
      %3556 = vmatmul.mubr.bf16.gmra.mrb[0].mxu0 %v994
      %v3557 = vpop.f32.mrb[0].mxu0
      %v3558 = vadd.f32 %v3397, %v3557
      %v3559 = vpop.f32.mrb[0].mxu0
      %v3560 = vpop.f32.mrb[0].mxu0
      %v3561 = vadd.f32 %v3400, %v3560
      %v3562 = vpop.f32.mrb[0].mxu0
      %3563 = vmatprep.mubr.bf16.mxu0 %v1003
      %3564 = vmatmul.mubr.bf16.gmra.mrb[0].mxu0 %v1002
      %v3565 = vpop.f32.mrb[0].mxu0
      %v3566 = vadd.f32 %v3405, %v3565
      %v3567 = vpop.f32.mrb[0].mxu0
      %v3568 = vpop.f32.mrb[0].mxu0
      %v3569 = vadd.f32 %v3408, %v3568
      %v3570 = vpop.f32.mrb[0].mxu0
      %3571 = vmatprep.mubr.bf16.mxu0 %v1011
      %3572 = vmatmul.mubr.bf16.gmra.mrb[0].mxu0 %v1010
      %v3573 = vpop.f32.mrb[0].mxu0
      %v3574 = vadd.f32 %v3413, %v3573
      %v3575 = vpop.f32.mrb[0].mxu0
      %v3576 = vpop.f32.mrb[0].mxu0
      %v3577 = vadd.f32 %v3416, %v3576
      %v3578 = vpop.f32.mrb[0].mxu0
      %3579 = vmatprep.mubr.bf16.mxu0 %v1019
      %3580 = vmatmul.mubr.bf16.gmra.mrb[0].mxu0 %v1018
      %v3581 = vpop.f32.mrb[0].mxu0
      %v3582 = vadd.f32 %v3421, %v3581
      %v3583 = vpop.f32.mrb[0].mxu0
      %v3584 = vpop.f32.mrb[0].mxu0
      %v3585 = vadd.f32 %v3424, %v3584
      %v3586 = vpop.f32.mrb[0].mxu0
      %3587 = vmatprep.mubr.bf16.mxu0 %v1027
      %3588 = vmatmul.mubr.bf16.gmra.mrb[0].mxu0 %v1026
      %v3589 = vpop.f32.mrb[0].mxu0
      %v3590 = vadd.f32 %v3429, %v3589
      %v3591 = vpop.f32.mrb[0].mxu0
      %v3592 = vpop.f32.mrb[0].mxu0
      %v3593 = vadd.f32 %v3432, %v3592
      %v3594 = vpop.f32.mrb[0].mxu0
      %3595 = vmatprep.mubr.bf16.mxu0 %v1035
      %3596 = vmatmul.mubr.bf16.gmra.mrb[0].mxu0 %v1034
      %v3597 = vpop.f32.mrb[0].mxu0
      %v3598 = vadd.f32 %v3437, %v3597
      %v3599 = vpop.f32.mrb[0].mxu0
      %v3600 = vpop.f32.mrb[0].mxu0
      %v3601 = vadd.f32 %v3440, %v3600
      %v3602 = vpop.f32.mrb[0].mxu0
      %3603 = vmatprep.mubr.bf16.mxu0 %v1043
      %3604 = vmatmul.mubr.bf16.gmra.mrb[0].mxu0 %v1042
      %v3605 = vpop.f32.mrb[0].mxu0
      %v3606 = vadd.f32 %v3445, %v3605
      %v3607 = vpop.f32.mrb[0].mxu0
      %v3608 = vpop.f32.mrb[0].mxu0
      %v3609 = vadd.f32 %v3448, %v3608
      %v3610 = vpop.f32.mrb[0].mxu0
      %3611 = vmatprep.mubr.bf16.mxu0 %v1051
      %3612 = vmatmul.mubr.bf16.gmra.mrb[0].mxu0 %v1050
      %v3613 = vpop.f32.mrb[0].mxu0
      %v3614 = vadd.f32 %v3453, %v3613
      %v3615 = vpop.f32.mrb[0].mxu0
      %v3616 = vpop.f32.mrb[0].mxu0
      %v3617 = vadd.f32 %v3456, %v3616
      %v3618 = vpop.f32.mrb[0].mxu0
      %3619 = vmatprep.mubr.bf16.mxu0 %v1059
      %3620 = vmatmul.mubr.bf16.gmra.mrb[0].mxu0 %v1058
      %v3621 = vpop.f32.mrb[0].mxu0
      %v3622 = vadd.f32 %v3461, %v3621
      %v3623 = vpop.f32.mrb[0].mxu0
      %v3624 = vpop.f32.mrb[0].mxu0
      %v3625 = vadd.f32 %v3464, %v3624
      %v3626 = vpop.f32.mrb[0].mxu0
      %3627 = vmatprep.mubr.bf16.mxu0 %v1067
      %3628 = vmatmul.mubr.bf16.gmra.mrb[0].mxu0 %v1066
      %v3629 = vpop.f32.mrb[0].mxu0
      %v3630 = vadd.f32 %v3469, %v3629
      %v3631 = vpop.f32.mrb[0].mxu0
      %v3632 = vpop.f32.mrb[0].mxu0
      %v3633 = vadd.f32 %v3472, %v3632
      %v3634 = vpop.f32.mrb[0].mxu0
      %3635 = vmatprep.mubr.bf16.mxu0 %v1075
      %3636 = vmatmul.mubr.bf16.gmra.mrb[0].mxu0 %v1074
      %v3637 = vpop.f32.mrb[0].mxu0
      %v3638 = vadd.f32 %v3477, %v3637
      %v3639 = vpop.f32.mrb[0].mxu0
      %v3640 = vpop.f32.mrb[0].mxu0
      %v3641 = vadd.f32 %v3480, %v3640
      %v3642 = vpop.f32.mrb[0].mxu0
      %3643 = vdwg.mxu0
      %v3644 = vld [vmem:[%s2] sm:$0xff]
      %v3645 = vld [vmem:[%s2 + $0x10] sm:$0xff]
      %v3646 = vld [vmem:[%s2 + $0x20] sm:$0xff]
      %v3647 = vld [vmem:[%s2 + $0x30] sm:$0xff]
      %v3648 = vld [vmem:[%s2 + $0x40] sm:$0xff]
      %v3649 = vld [vmem:[%s2 + $0x50] sm:$0xff]
      %v3650 = vld [vmem:[%s2 + $0x60] sm:$0xff]
      %v3651 = vld [vmem:[%s2 + $0x70] sm:$0xff]
      %v3652 = vld [vmem:[%s2 + $0x80] sm:$0xff]
      %v3653 = vld [vmem:[%s2 + $0x90] sm:$0xff]
      %v3654 = vld [vmem:[%s2 + $0xa0] sm:$0xff]
      %v3655 = vld [vmem:[%s2 + $0xb0] sm:$0xff]
      %v3656 = vld [vmem:[%s2 + $0xc0] sm:$0xff]
      %v3657 = vld [vmem:[%s2 + $0xd0] sm:$0xff]
      %v3658 = vld [vmem:[%s2 + $0xe0] sm:$0xff]
      %v3659 = vld [vmem:[%s2 + $0xf0] sm:$0xff]
      %v3660 = vld [vmem:[%s2 + $0x8] sm:$0xff]
      %v3661 = vld [vmem:[%s2 + $0x18] sm:$0xff]
      %v3662 = vld [vmem:[%s2 + $0x28] sm:$0xff]
      %v3663 = vld [vmem:[%s2 + $0x38] sm:$0xff]
      %v3664 = vld [vmem:[%s2 + $0x48] sm:$0xff]
      %v3665 = vld [vmem:[%s2 + $0x58] sm:$0xff]
      %v3666 = vld [vmem:[%s2 + $0x68] sm:$0xff]
      %v3667 = vld [vmem:[%s2 + $0x78] sm:$0xff]
      %v3668 = vld [vmem:[%s2 + $0x88] sm:$0xff]
      %v3669 = vld [vmem:[%s2 + $0x98] sm:$0xff]
      %v3670 = vld [vmem:[%s2 + $0xa8] sm:$0xff]
      %v3671 = vld [vmem:[%s2 + $0xb8] sm:$0xff]
      %v3672 = vld [vmem:[%s2 + $0xc8] sm:$0xff]
      %v3673 = vld [vmem:[%s2 + $0xd8] sm:$0xff]
      %v3674 = vld [vmem:[%s2 + $0xe8] sm:$0xff]
      %v3675 = vld [vmem:[%s2 + $0xf8] sm:$0xff]
      %v3676 = vpack.c.bf16 %v3521, %v3518
      %v3677 = vpack.c.bf16 %v3529, %v3526
      %v3678 = vpack.c.bf16 %v3537, %v3534
      %v3679 = vpack.c.bf16 %v3545, %v3542
      %v3680 = vpack.c.bf16 %v3553, %v3550
      %v3681 = vpack.c.bf16 %v3561, %v3558
      %v3682 = vpack.c.bf16 %v3569, %v3566
      %v3683 = vpack.c.bf16 %v3577, %v3574
      %v3684 = vpack.c.bf16 %v3585, %v3582
      %v3685 = vpack.c.bf16 %v3593, %v3590
      %v3686 = vpack.c.bf16 %v3601, %v3598
      %v3687 = vpack.c.bf16 %v3609, %v3606
      %v3688 = vpack.c.bf16 %v3617, %v3614
      %v3689 = vpack.c.bf16 %v3625, %v3622
      %v3690 = vpack.c.bf16 %v3633, %v3630
      %v3691 = vpack.c.bf16 %v3641, %v3638
      %v3692 = vmul.f32 %v2842, %v3644
      %v3693 = vmul.f32 %v2846, %v3645
      %v3694 = vmul.f32 %v2852, %v3646
      %v3695 = vmul.f32 %v2856, %v3647
      %v3696 = vmul.f32 %v2862, %v3648
      %v3697 = vmul.f32 %v2866, %v3649
      %v3698 = vmul.f32 %v2872, %v3650
      %v3699 = vmul.f32 %v2876, %v3651
      %v3700 = vmul.f32 %v2882, %v3652
      %v3701 = vmul.f32 %v2886, %v3653
      %v3702 = vmul.f32 %v2892, %v3654
      %v3703 = vmul.f32 %v2896, %v3655
      %v3704 = vmul.f32 %v2902, %v3656
      %v3705 = vmul.f32 %v2906, %v3657
      %v3706 = vmul.f32 %v2912, %v3658
      %v3707 = vmul.f32 %v2916, %v3659
      %v3708 = vmul.f32 %v2922, %v3644
      %v3709 = vmul.f32 %v2926, %v3645
      %v3710 = vmul.f32 %v2932, %v3646
      %v3711 = vmul.f32 %v2936, %v3647
      %v3712 = vmul.f32 %v2942, %v3648
      %v3713 = vmul.f32 %v2946, %v3649
      %v3714 = vmul.f32 %v2952, %v3650
      %v3715 = vmul.f32 %v2956, %v3651
      %v3716 = vmul.f32 %v2962, %v3652
      %v3717 = vmul.f32 %v2966, %v3653
      %v3718 = vmul.f32 %v2972, %v3654
      %v3719 = vmul.f32 %v2976, %v3655
      %v3720 = vmul.f32 %v2982, %v3656
      %v3721 = vmul.f32 %v2986, %v3657
      %v3722 = vmul.f32 %v2992, %v3658
      %v3723 = vmul.f32 %v2996, %v3659
      %v3724 = vmul.f32 %v2844, %v3660
      %v3725 = vmul.f32 %v2848, %v3661
      %v3726 = vmul.f32 %v2854, %v3662
      %v3727 = vmul.f32 %v2858, %v3663
      %v3728 = vmul.f32 %v2864, %v3664
      %v3729 = vmul.f32 %v2868, %v3665
      %v3730 = vmul.f32 %v2874, %v3666
      %v3731 = vmul.f32 %v2878, %v3667
      %v3732 = vmul.f32 %v2884, %v3668
      %v3733 = vmul.f32 %v2888, %v3669
      %v3734 = vmul.f32 %v2894, %v3670
      %v3735 = vmul.f32 %v2898, %v3671
      %v3736 = vmul.f32 %v2904, %v3672
      %v3737 = vmul.f32 %v2908, %v3673
      %v3738 = vmul.f32 %v2914, %v3674
      %v3739 = vmul.f32 %v2918, %v3675
      %v3740 = vmul.f32 %v2924, %v3660
      %v3741 = vmul.f32 %v2928, %v3661
      %v3742 = vmul.f32 %v2934, %v3662
      %v3743 = vmul.f32 %v2938, %v3663
      %v3744 = vmul.f32 %v2944, %v3664
      %v3745 = vmul.f32 %v2948, %v3665
      %v3746 = vmul.f32 %v2954, %v3666
      %v3747 = vmul.f32 %v2958, %v3667
      %v3748 = vmul.f32 %v2964, %v3668
      %v3749 = vmul.f32 %v2968, %v3669
      %v3750 = vmul.f32 %v2974, %v3670
      %v3751 = vmul.f32 %v2978, %v3671
      %v3752 = vmul.f32 %v2984, %v3672
      %v3753 = vmul.f32 %v2988, %v3673
      %v3754 = vmul.f32 %v2994, %v3674
      %v3755 = vmul.f32 %v2998, %v3675
      %v3756 = vadd.f32 %v3692, %v3724
      %v3757 = vadd.f32 %v3693, %v3725
      %v3758 = vadd.f32 %v3694, %v3726
      %v3759 = vadd.f32 %v3695, %v3727
      %v3760 = vadd.f32 %v3696, %v3728
      %v3761 = vadd.f32 %v3697, %v3729
      %v3762 = vadd.f32 %v3698, %v3730
      %v3763 = vadd.f32 %v3699, %v3731
      %v3764 = vadd.f32 %v3700, %v3732
      %v3765 = vadd.f32 %v3701, %v3733
      %v3766 = vadd.f32 %v3702, %v3734
      %v3767 = vadd.f32 %v3703, %v3735
      %v3768 = vadd.f32 %v3704, %v3736
      %v3769 = vadd.f32 %v3705, %v3737
      %v3770 = vadd.f32 %v3706, %v3738
      %v3771 = vadd.f32 %v3707, %v3739
      %v3772 = vadd.f32 %v3708, %v3740
      %v3773 = vadd.f32 %v3709, %v3741
      %v3774 = vadd.f32 %v3710, %v3742
      %v3775 = vadd.f32 %v3711, %v3743
      %v3776 = vadd.f32 %v3712, %v3744
      %v3777 = vadd.f32 %v3713, %v3745
      %v3778 = vadd.f32 %v3714, %v3746
      %v3779 = vadd.f32 %v3715, %v3747
      %v3780 = vadd.f32 %v3716, %v3748
      %v3781 = vadd.f32 %v3717, %v3749
      %v3782 = vadd.f32 %v3718, %v3750
      %v3783 = vadd.f32 %v3719, %v3751
      %v3784 = vadd.f32 %v3720, %v3752
      %v3785 = vadd.f32 %v3721, %v3753
      %v3786 = vadd.f32 %v3722, %v3754
      %v3787 = vadd.f32 %v3723, %v3755
      %v3788 = vpack.c.bf16 %v3757, %v3756
      %v3789 = vpack.c.bf16 %v3759, %v3758
      %v3790 = vpack.c.bf16 %v3761, %v3760
      %v3791 = vpack.c.bf16 %v3763, %v3762
      %v3792 = vpack.c.bf16 %v3765, %v3764
      %v3793 = vpack.c.bf16 %v3767, %v3766
      %v3794 = vpack.c.bf16 %v3769, %v3768
      %v3795 = vpack.c.bf16 %v3771, %v3770
      %v3796 = vpack.c.bf16 %v3773, %v3772
      %v3797 = vpack.c.bf16 %v3775, %v3774
      %v3798 = vpack.c.bf16 %v3777, %v3776
      %v3799 = vpack.c.bf16 %v3779, %v3778
      %v3800 = vpack.c.bf16 %v3781, %v3780
      %v3801 = vpack.c.bf16 %v3783, %v3782
      %v3802 = vpack.c.bf16 %v3785, %v3784
      %v3803 = vpack.c.bf16 %v3787, %v3786
      %3812 = vrot.lane.b32.xlu0 %v3788, 64
      %v3813 = vpop.permute.xlu0 %3812
      %3814 = vrot.lane.b32.xlu0 %v3789, 64
      %v3815 = vpop.permute.xlu0 %3814
      %3816 = vrot.lane.b32.xlu0 %v3790, 64
      %v3817 = vpop.permute.xlu0 %3816
      %3818 = vrot.lane.b32.xlu0 %v3791, 64
      %v3819 = vpop.permute.xlu0 %3818
      %3820 = vrot.lane.b32.xlu0 %v3792, 64
      %v3821 = vpop.permute.xlu0 %3820
      %3822 = vrot.lane.b32.xlu0 %v3793, 64
      %v3823 = vpop.permute.xlu0 %3822
      %3824 = vrot.lane.b32.xlu0 %v3794, 64
      %v3825 = vpop.permute.xlu0 %3824
      %3826 = vrot.lane.b32.xlu0 %v3795, 64
      %v3827 = vpop.permute.xlu0 %3826
      %vm3828 = vcmask 523264
      %v3830 = vsel %vm3828, %v3788, 0
      %v3833 = vsel %vm3828, %v3789, 0
      %v3836 = vsel %vm3828, %v3790, 0
      %v3839 = vsel %vm3828, %v3791, 0
      %v3842 = vsel %vm3828, %v3792, 0
      %v3845 = vsel %vm3828, %v3793, 0
      %v3848 = vsel %vm3828, %v3794, 0
      %v3851 = vsel %vm3828, %v3795, 0
      %v3854 = vsel %vm3828, %v3813, 0
      %v3857 = vsel %vm3828, %v3815, 0
      %v3860 = vsel %vm3828, %v3817, 0
      %v3863 = vsel %vm3828, %v3819, 0
      %v3866 = vsel %vm3828, %v3821, 0
      %v3869 = vsel %vm3828, %v3823, 0
      %v3872 = vsel %vm3828, %v3825, 0
      %v3875 = vsel %vm3828, %v3827, 0
      %3877 = vmatprep.subr.bf16.mxu0 0
      %3878 = vmatpush1.bf16.xpose.msra.mxu0 %v3854
      %3879 = vmatprep.subr.bf16.mxu0 0
      %3880 = vmatpush1.bf16.xpose.msra.mxu0 %v3857
      %3881 = vmatprep.subr.bf16.mxu0 0
      %3882 = vmatpush1.bf16.xpose.msra.mxu0 %v3860
      %3883 = vmatprep.subr.bf16.mxu0 0
      %3884 = vmatpush1.bf16.xpose.msra.mxu0 %v3863
      %3885 = vmatprep.subr.bf16.mxu0 0
      %3886 = vmatpush1.bf16.xpose.msra.mxu0 %v3866
      %3887 = vmatprep.subr.bf16.mxu0 0
      %3888 = vmatpush1.bf16.xpose.msra.mxu0 %v3869
      %3889 = vmatprep.subr.bf16.mxu0 0
      %3890 = vmatpush1.bf16.xpose.msra.mxu0 %v3872
      %3891 = vmatprep.subr.bf16.mxu0 0
      %3892 = vmatpush1.bf16.xpose.msra.mxu0 %v3875
      %3893 = vmatprep.subr.bf16.mxu0 0
      %3894 = vmatpush1.bf16.xpose.msra.mxu0 0
      %3895 = vmatprep.subr.bf16.mxu0 0
      %3896 = vmatpush1.bf16.xpose.msra.mxu0 0
      %3897 = vmatprep.subr.bf16.mxu0 0
      %3898 = vmatpush1.bf16.xpose.msra.mxu0 0
      %3899 = vmatprep.subr.bf16.mxu0 0
      %3900 = vmatpush1.bf16.xpose.msra.mxu0 0
      %3901 = vmatprep.subr.bf16.mxu0 0
      %3902 = vmatpush1.bf16.xpose.msra.mxu0 0
      %3903 = vmatprep.subr.bf16.mxu0 0
      %3904 = vmatpush1.bf16.xpose.msra.mxu0 0
      %3905 = vmatprep.subr.bf16.mxu0 0
      %3906 = vmatpush1.bf16.xpose.msra.mxu0 0
      %3907 = vmatprep.subr.bf16.mxu0 0
      %3908 = vmatpush1.bf16.xpose.msra.mxu0 0
      %3909 = vmatprep.mubr.bf16.mxu0 0
      %3910 = vmatmul.mubr.bf16.gmra.mrb[0].mxu0 %v3830
      %v3911 = vpop.f32.mrb[0].mxu0
      %v3912 = vadd.f32 0.0, %v3911
      %v3913 = vpop.f32.mrb[0].mxu0
      %v3914 = vpop.f32.mrb[0].mxu0
      %v3915 = vadd.f32 0.0, %v3914
      %v3916 = vpop.f32.mrb[0].mxu0
      %3917 = vmatprep.mubr.bf16.mxu0 0
      %3918 = vmatmul.mubr.bf16.gmra.mrb[0].mxu0 %v3833
      %v3919 = vpop.f32.mrb[0].mxu0
      %v3920 = vadd.f32 0.0, %v3919
      %v3921 = vpop.f32.mrb[0].mxu0
      %v3922 = vpop.f32.mrb[0].mxu0
      %v3923 = vadd.f32 0.0, %v3922
      %v3924 = vpop.f32.mrb[0].mxu0
      %3925 = vmatprep.mubr.bf16.mxu0 0
      %3926 = vmatmul.mubr.bf16.gmra.mrb[0].mxu0 %v3836
      %v3927 = vpop.f32.mrb[0].mxu0
      %v3928 = vadd.f32 0.0, %v3927
      %v3929 = vpop.f32.mrb[0].mxu0
      %v3930 = vpop.f32.mrb[0].mxu0
      %v3931 = vadd.f32 0.0, %v3930
      %v3932 = vpop.f32.mrb[0].mxu0
      %3933 = vmatprep.mubr.bf16.mxu0 0
      %3934 = vmatmul.mubr.bf16.gmra.mrb[0].mxu0 %v3839
      %v3935 = vpop.f32.mrb[0].mxu0
      %v3936 = vadd.f32 0.0, %v3935
      %v3937 = vpop.f32.mrb[0].mxu0
      %v3938 = vpop.f32.mrb[0].mxu0
      %v3939 = vadd.f32 0.0, %v3938
      %v3940 = vpop.f32.mrb[0].mxu0
      %3941 = vmatprep.mubr.bf16.mxu0 0
      %3942 = vmatmul.mubr.bf16.gmra.mrb[0].mxu0 %v3842
      %v3943 = vpop.f32.mrb[0].mxu0
      %v3944 = vadd.f32 0.0, %v3943
      %v3945 = vpop.f32.mrb[0].mxu0
      %v3946 = vpop.f32.mrb[0].mxu0
      %v3947 = vadd.f32 0.0, %v3946
      %v3948 = vpop.f32.mrb[0].mxu0
      %3949 = vmatprep.mubr.bf16.mxu0 0
      %3950 = vmatmul.mubr.bf16.gmra.mrb[0].mxu0 %v3845
      %v3951 = vpop.f32.mrb[0].mxu0
      %v3952 = vadd.f32 0.0, %v3951
      %v3953 = vpop.f32.mrb[0].mxu0
      %v3954 = vpop.f32.mrb[0].mxu0
      %v3955 = vadd.f32 0.0, %v3954
      %v3956 = vpop.f32.mrb[0].mxu0
      %3957 = vmatprep.mubr.bf16.mxu0 0
      %3958 = vmatmul.mubr.bf16.gmra.mrb[0].mxu0 %v3848
      %v3959 = vpop.f32.mrb[0].mxu0
      %v3960 = vadd.f32 0.0, %v3959
      %v3961 = vpop.f32.mrb[0].mxu0
      %v3962 = vpop.f32.mrb[0].mxu0
      %v3963 = vadd.f32 0.0, %v3962
      %v3964 = vpop.f32.mrb[0].mxu0
      %3965 = vmatprep.mubr.bf16.mxu0 0
      %3966 = vmatmul.mubr.bf16.gmra.mrb[0].mxu0 %v3851
      %v3967 = vpop.f32.mrb[0].mxu0
      %v3968 = vadd.f32 0.0, %v3967
      %v3969 = vpop.f32.mrb[0].mxu0
      %v3970 = vpop.f32.mrb[0].mxu0
      %v3971 = vadd.f32 0.0, %v3970
      %v3972 = vpop.f32.mrb[0].mxu0
      %3973 = vdwg.mxu0
      %3982 = vrot.lane.b32.xlu0 %v3796, 64
      %v3983 = vpop.permute.xlu0 %3982
      %3984 = vrot.lane.b32.xlu0 %v3797, 64
      %v3985 = vpop.permute.xlu0 %3984
      %3986 = vrot.lane.b32.xlu0 %v3798, 64
      %v3987 = vpop.permute.xlu0 %3986
      %3988 = vrot.lane.b32.xlu0 %v3799, 64
      %v3989 = vpop.permute.xlu0 %3988
      %3990 = vrot.lane.b32.xlu0 %v3800, 64
      %v3991 = vpop.permute.xlu0 %3990
      %3992 = vrot.lane.b32.xlu0 %v3801, 64
      %v3993 = vpop.permute.xlu0 %3992
      %3994 = vrot.lane.b32.xlu0 %v3802, 64
      %v3995 = vpop.permute.xlu0 %3994
      %3996 = vrot.lane.b32.xlu0 %v3803, 64
      %v3997 = vpop.permute.xlu0 %3996
      %v3999 = vsel %vm3828, %v3796, 0
      %v4002 = vsel %vm3828, %v3797, 0
      %v4005 = vsel %vm3828, %v3798, 0
      %v4008 = vsel %vm3828, %v3799, 0
      %v4011 = vsel %vm3828, %v3800, 0
      %v4014 = vsel %vm3828, %v3801, 0
      %v4017 = vsel %vm3828, %v3802, 0
      %v4020 = vsel %vm3828, %v3803, 0
      %v4023 = vsel %vm3828, %v3983, 0
      %v4026 = vsel %vm3828, %v3985, 0
      %v4029 = vsel %vm3828, %v3987, 0
      %v4032 = vsel %vm3828, %v3989, 0
      %v4035 = vsel %vm3828, %v3991, 0
      %v4038 = vsel %vm3828, %v3993, 0
      %v4041 = vsel %vm3828, %v3995, 0
      %v4044 = vsel %vm3828, %v3997, 0
      %4046 = vmatprep.subr.bf16.mxu0 0
      %4047 = vmatpush1.bf16.xpose.msra.mxu0 %v4023
      %4048 = vmatprep.subr.bf16.mxu0 0
      %4049 = vmatpush1.bf16.xpose.msra.mxu0 %v4026
      %4050 = vmatprep.subr.bf16.mxu0 0
      %4051 = vmatpush1.bf16.xpose.msra.mxu0 %v4029
      %4052 = vmatprep.subr.bf16.mxu0 0
      %4053 = vmatpush1.bf16.xpose.msra.mxu0 %v4032
      %4054 = vmatprep.subr.bf16.mxu0 0
      %4055 = vmatpush1.bf16.xpose.msra.mxu0 %v4035
      %4056 = vmatprep.subr.bf16.mxu0 0
      %4057 = vmatpush1.bf16.xpose.msra.mxu0 %v4038
      %4058 = vmatprep.subr.bf16.mxu0 0
      %4059 = vmatpush1.bf16.xpose.msra.mxu0 %v4041
      %4060 = vmatprep.subr.bf16.mxu0 0
      %4061 = vmatpush1.bf16.xpose.msra.mxu0 %v4044
      %4062 = vmatprep.subr.bf16.mxu0 0
      %4063 = vmatpush1.bf16.xpose.msra.mxu0 0
      %4064 = vmatprep.subr.bf16.mxu0 0
      %4065 = vmatpush1.bf16.xpose.msra.mxu0 0
      %4066 = vmatprep.subr.bf16.mxu0 0
      %4067 = vmatpush1.bf16.xpose.msra.mxu0 0
      %4068 = vmatprep.subr.bf16.mxu0 0
      %4069 = vmatpush1.bf16.xpose.msra.mxu0 0
      %4070 = vmatprep.subr.bf16.mxu0 0
      %4071 = vmatpush1.bf16.xpose.msra.mxu0 0
      %4072 = vmatprep.subr.bf16.mxu0 0
      %4073 = vmatpush1.bf16.xpose.msra.mxu0 0
      %4074 = vmatprep.subr.bf16.mxu0 0
      %4075 = vmatpush1.bf16.xpose.msra.mxu0 0
      %4076 = vmatprep.subr.bf16.mxu0 0
      %4077 = vmatpush1.bf16.xpose.msra.mxu0 0
      %4078 = vmatprep.mubr.bf16.mxu0 0
      %4079 = vmatmul.mubr.bf16.gmra.mrb[0].mxu0 %v3999
      %v4080 = vpop.f32.mrb[0].mxu0
      %v4081 = vadd.f32 0.0, %v4080
      %v4082 = vpop.f32.mrb[0].mxu0
      %v4083 = vpop.f32.mrb[0].mxu0
      %v4084 = vadd.f32 0.0, %v4083
      %v4085 = vpop.f32.mrb[0].mxu0
      %4086 = vmatprep.mubr.bf16.mxu0 0
      %4087 = vmatmul.mubr.bf16.gmra.mrb[0].mxu0 %v4002
      %v4088 = vpop.f32.mrb[0].mxu0
      %v4089 = vadd.f32 0.0, %v4088
      %v4090 = vpop.f32.mrb[0].mxu0
      %v4091 = vpop.f32.mrb[0].mxu0
      %v4092 = vadd.f32 0.0, %v4091
      %v4093 = vpop.f32.mrb[0].mxu0
      %4094 = vmatprep.mubr.bf16.mxu0 0
      %4095 = vmatmul.mubr.bf16.gmra.mrb[0].mxu0 %v4005
      %v4096 = vpop.f32.mrb[0].mxu0
      %v4097 = vadd.f32 0.0, %v4096
      %v4098 = vpop.f32.mrb[0].mxu0
      %v4099 = vpop.f32.mrb[0].mxu0
      %v4100 = vadd.f32 0.0, %v4099
      %v4101 = vpop.f32.mrb[0].mxu0
      %4102 = vmatprep.mubr.bf16.mxu0 0
      %4103 = vmatmul.mubr.bf16.gmra.mrb[0].mxu0 %v4008
      %v4104 = vpop.f32.mrb[0].mxu0
      %v4105 = vadd.f32 0.0, %v4104
      %v4106 = vpop.f32.mrb[0].mxu0
      %v4107 = vpop.f32.mrb[0].mxu0
      %v4108 = vadd.f32 0.0, %v4107
      %v4109 = vpop.f32.mrb[0].mxu0
      %4110 = vmatprep.mubr.bf16.mxu0 0
      %4111 = vmatmul.mubr.bf16.gmra.mrb[0].mxu0 %v4011
      %v4112 = vpop.f32.mrb[0].mxu0
      %v4113 = vadd.f32 0.0, %v4112
      %v4114 = vpop.f32.mrb[0].mxu0
      %v4115 = vpop.f32.mrb[0].mxu0
      %v4116 = vadd.f32 0.0, %v4115
      %v4117 = vpop.f32.mrb[0].mxu0
      %4118 = vmatprep.mubr.bf16.mxu0 0
      %4119 = vmatmul.mubr.bf16.gmra.mrb[0].mxu0 %v4014
      %v4120 = vpop.f32.mrb[0].mxu0
      %v4121 = vadd.f32 0.0, %v4120
      %v4122 = vpop.f32.mrb[0].mxu0
      %v4123 = vpop.f32.mrb[0].mxu0
      %v4124 = vadd.f32 0.0, %v4123
      %v4125 = vpop.f32.mrb[0].mxu0
      %4126 = vmatprep.mubr.bf16.mxu0 0
      %4127 = vmatmul.mubr.bf16.gmra.mrb[0].mxu0 %v4017
      %v4128 = vpop.f32.mrb[0].mxu0
      %v4129 = vadd.f32 0.0, %v4128
      %v4130 = vpop.f32.mrb[0].mxu0
      %v4131 = vpop.f32.mrb[0].mxu0
      %v4132 = vadd.f32 0.0, %v4131
      %v4133 = vpop.f32.mrb[0].mxu0
      %4134 = vmatprep.mubr.bf16.mxu0 0
      %4135 = vmatmul.mubr.bf16.gmra.mrb[0].mxu0 %v4020
      %v4136 = vpop.f32.mrb[0].mxu0
      %v4137 = vadd.f32 0.0, %v4136
      %v4138 = vpop.f32.mrb[0].mxu0
      %v4139 = vpop.f32.mrb[0].mxu0
      %v4140 = vadd.f32 0.0, %v4139
      %v4141 = vpop.f32.mrb[0].mxu0
      %4142 = vdwg.mxu0
      %v4143 = vlaneseq
      %v4144 = vshrl.u32 %v4143, 7
      %v4145 = vadd.s32 %v4144, 8
      %v4146 = vadd.s32 %v4144, 16
      %v4147 = vadd.s32 %v4144, 24
      %v4148 = vadd.s32 %v4144, 32
      %v4149 = vadd.s32 %v4144, 40
      %v4150 = vadd.s32 %v4144, 48
      %v4151 = vadd.s32 %v4144, 56
      %v4152 = vadd.s32 %v4144, 64
      %v4153 = vadd.s32 %v4144, 72
      %v4154 = vadd.s32 %v4144, 80
      %v4155 = vadd.s32 %v4144, 88
      %v4156 = vadd.s32 %v4144, 96
      %v4157 = vadd.s32 %v4144, 104
      %v4158 = vadd.s32 %v4144, 112
      %v4159 = vadd.s32 %v4144, 120
      %v4160 = vlaneseq
      %v4161 = vand.u32 %v4160, 127
      %vm4162 = vcmp.le.s32.totalorder %v4161, %v4144
      %vm4163 = vcmp.le.s32.totalorder %v4161, %v4145
      %vm4164 = vcmp.le.s32.totalorder %v4161, %v4146
      %vm4165 = vcmp.le.s32.totalorder %v4161, %v4147
      %vm4166 = vcmp.le.s32.totalorder %v4161, %v4148
      %vm4167 = vcmp.le.s32.totalorder %v4161, %v4149
      %vm4168 = vcmp.le.s32.totalorder %v4161, %v4150
      %vm4169 = vcmp.le.s32.totalorder %v4161, %v4151
      %vm4170 = vcmp.le.s32.totalorder %v4161, %v4152
      %vm4171 = vcmp.le.s32.totalorder %v4161, %v4153
      %vm4172 = vcmp.le.s32.totalorder %v4161, %v4154
      %vm4173 = vcmp.le.s32.totalorder %v4161, %v4155
      %vm4174 = vcmp.le.s32.totalorder %v4161, %v4156
      %vm4175 = vcmp.le.s32.totalorder %v4161, %v4157
      %vm4176 = vcmp.le.s32.totalorder %v4161, %v4158
      %vm4177 = vcmp.le.s32.totalorder %v4161, %v4159
      %v4178 = vsel %vm4162, %v3912, -inf
      %v4179 = vsel %vm4163, %v3915, -inf
      %v4180 = vsel %vm4164, %v3920, -inf
      %v4181 = vsel %vm4165, %v3923, -inf
      %v4182 = vsel %vm4166, %v3928, -inf
      %v4183 = vsel %vm4167, %v3931, -inf
      %v4184 = vsel %vm4168, %v3936, -inf
      %v4185 = vsel %vm4169, %v3939, -inf
      %v4186 = vsel %vm4170, %v3944, -inf
      %v4187 = vsel %vm4171, %v3947, -inf
      %v4188 = vsel %vm4172, %v3952, -inf
      %v4189 = vsel %vm4173, %v3955, -inf
      %v4190 = vsel %vm4174, %v3960, -inf
      %v4191 = vsel %vm4175, %v3963, -inf
      %v4192 = vsel %vm4176, %v3968, -inf
      %v4193 = vsel %vm4177, %v3971, -inf
      %v4194 = vsel %vm4162, %v4081, -inf
      %v4195 = vsel %vm4163, %v4084, -inf
      %v4196 = vsel %vm4164, %v4089, -inf
      %v4197 = vsel %vm4165, %v4092, -inf
      %v4198 = vsel %vm4166, %v4097, -inf
      %v4199 = vsel %vm4167, %v4100, -inf
      %v4200 = vsel %vm4168, %v4105, -inf
      %v4201 = vsel %vm4169, %v4108, -inf
      %v4202 = vsel %vm4170, %v4113, -inf
      %v4203 = vsel %vm4171, %v4116, -inf
      %v4204 = vsel %vm4172, %v4121, -inf
      %v4205 = vsel %vm4173, %v4124, -inf
      %v4206 = vsel %vm4174, %v4129, -inf
      %v4207 = vsel %vm4175, %v4132, -inf
      %v4208 = vsel %vm4176, %v4137, -inf
      %v4209 = vsel %vm4177, %v4140, -inf
      %4210 = vmax.xlane.f32.xlu0 %v4178
      %v4211 = vpop.xlane.xlu0 %4210
      %4212 = vmax.xlane.f32.xlu0 %v4179
      %v4213 = vpop.xlane.xlu0 %4212
      %4214 = vmax.xlane.f32.xlu0 %v4180
      %v4215 = vpop.xlane.xlu0 %4214
      %4216 = vmax.xlane.f32.xlu0 %v4181
      %v4217 = vpop.xlane.xlu0 %4216
      %4218 = vmax.xlane.f32.xlu0 %v4182
      %v4219 = vpop.xlane.xlu0 %4218
      %4220 = vmax.xlane.f32.xlu0 %v4183
      %v4221 = vpop.xlane.xlu0 %4220
      %4222 = vmax.xlane.f32.xlu0 %v4184
      %v4223 = vpop.xlane.xlu0 %4222
      %4224 = vmax.xlane.f32.xlu0 %v4185
      %v4225 = vpop.xlane.xlu0 %4224
      %4226 = vmax.xlane.f32.xlu0 %v4186
      %v4227 = vpop.xlane.xlu0 %4226
      %4228 = vmax.xlane.f32.xlu0 %v4187
      %v4229 = vpop.xlane.xlu0 %4228
      %4230 = vmax.xlane.f32.xlu0 %v4188
      %v4231 = vpop.xlane.xlu0 %4230
      %4232 = vmax.xlane.f32.xlu0 %v4189
      %v4233 = vpop.xlane.xlu0 %4232
      %4234 = vmax.xlane.f32.xlu0 %v4190
      %v4235 = vpop.xlane.xlu0 %4234
      %4236 = vmax.xlane.f32.xlu0 %v4191
      %v4237 = vpop.xlane.xlu0 %4236
      %4238 = vmax.xlane.f32.xlu0 %v4192
      %v4239 = vpop.xlane.xlu0 %4238
      %4240 = vmax.xlane.f32.xlu0 %v4193
      %v4241 = vpop.xlane.xlu0 %4240
      %4242 = vmax.xlane.f32.xlu0 %v4194
      %v4243 = vpop.xlane.xlu0 %4242
      %4244 = vmax.xlane.f32.xlu0 %v4195
      %v4245 = vpop.xlane.xlu0 %4244
      %4246 = vmax.xlane.f32.xlu0 %v4196
      %v4247 = vpop.xlane.xlu0 %4246
      %4248 = vmax.xlane.f32.xlu0 %v4197
      %v4249 = vpop.xlane.xlu0 %4248
      %4250 = vmax.xlane.f32.xlu0 %v4198
      %v4251 = vpop.xlane.xlu0 %4250
      %4252 = vmax.xlane.f32.xlu0 %v4199
      %v4253 = vpop.xlane.xlu0 %4252
      %4254 = vmax.xlane.f32.xlu0 %v4200
      %v4255 = vpop.xlane.xlu0 %4254
      %4256 = vmax.xlane.f32.xlu0 %v4201
      %v4257 = vpop.xlane.xlu0 %4256
      %4258 = vmax.xlane.f32.xlu0 %v4202
      %v4259 = vpop.xlane.xlu0 %4258
      %4260 = vmax.xlane.f32.xlu0 %v4203
      %v4261 = vpop.xlane.xlu0 %4260
      %4262 = vmax.xlane.f32.xlu0 %v4204
      %v4263 = vpop.xlane.xlu0 %4262
      %4264 = vmax.xlane.f32.xlu0 %v4205
      %v4265 = vpop.xlane.xlu0 %4264
      %4266 = vmax.xlane.f32.xlu0 %v4206
      %v4267 = vpop.xlane.xlu0 %4266
      %4268 = vmax.xlane.f32.xlu0 %v4207
      %v4269 = vpop.xlane.xlu0 %4268
      %4270 = vmax.xlane.f32.xlu0 %v4208
      %v4271 = vpop.xlane.xlu0 %4270
      %4272 = vmax.xlane.f32.xlu0 %v4209
      %v4273 = vpop.xlane.xlu0 %4272
      %v4274 = vsub.f32 %v4178, %v4211
      %v4275 = vsub.f32 %v4179, %v4213
      %v4276 = vsub.f32 %v4180, %v4215
      %v4277 = vsub.f32 %v4181, %v4217
      %v4278 = vsub.f32 %v4182, %v4219
      %v4279 = vsub.f32 %v4183, %v4221
      %v4280 = vsub.f32 %v4184, %v4223
      %v4281 = vsub.f32 %v4185, %v4225
      %v4282 = vsub.f32 %v4186, %v4227
      %v4283 = vsub.f32 %v4187, %v4229
      %v4284 = vsub.f32 %v4188, %v4231
      %v4285 = vsub.f32 %v4189, %v4233
      %v4286 = vsub.f32 %v4190, %v4235
      %v4287 = vsub.f32 %v4191, %v4237
      %v4288 = vsub.f32 %v4192, %v4239
      %v4289 = vsub.f32 %v4193, %v4241
      %v4290 = vsub.f32 %v4194, %v4243
      %v4291 = vsub.f32 %v4195, %v4245
      %v4292 = vsub.f32 %v4196, %v4247
      %v4293 = vsub.f32 %v4197, %v4249
      %v4294 = vsub.f32 %v4198, %v4251
      %v4295 = vsub.f32 %v4199, %v4253
      %v4296 = vsub.f32 %v4200, %v4255
      %v4297 = vsub.f32 %v4201, %v4257
      %v4298 = vsub.f32 %v4202, %v4259
      %v4299 = vsub.f32 %v4203, %v4261
      %v4300 = vsub.f32 %v4204, %v4263
      %v4301 = vsub.f32 %v4205, %v4265
      %v4302 = vsub.f32 %v4206, %v4267
      %v4303 = vsub.f32 %v4207, %v4269
      %v4304 = vsub.f32 %v4208, %v4271
      %v4305 = vsub.f32 %v4209, %v4273
      %v4306 = vmul.f32 %v4274, 1.442695
      %v4307 = vpow.pop %v4306
      %v4308 = vmul.f32 %v4275, 1.442695
      %v4309 = vpow.pop %v4308
      %v4310 = vmul.f32 %v4276, 1.442695
      %v4311 = vpow.pop %v4310
      %v4312 = vmul.f32 %v4277, 1.442695
      %v4313 = vpow.pop %v4312
      %v4314 = vmul.f32 %v4278, 1.442695
      %v4315 = vpow.pop %v4314
      %v4316 = vmul.f32 %v4279, 1.442695
      %v4317 = vpow.pop %v4316
      %v4318 = vmul.f32 %v4280, 1.442695
      %v4319 = vpow.pop %v4318
      %v4320 = vmul.f32 %v4281, 1.442695
      %v4321 = vpow.pop %v4320
      %v4322 = vmul.f32 %v4282, 1.442695
      %v4323 = vpow.pop %v4322
      %v4324 = vmul.f32 %v4283, 1.442695
      %v4325 = vpow.pop %v4324
      %v4326 = vmul.f32 %v4284, 1.442695
      %v4327 = vpow.pop %v4326
      %v4328 = vmul.f32 %v4285, 1.442695
      %v4329 = vpow.pop %v4328
      %v4330 = vmul.f32 %v4286, 1.442695
      %v4331 = vpow.pop %v4330
      %v4332 = vmul.f32 %v4287, 1.442695
      %v4333 = vpow.pop %v4332
      %v4334 = vmul.f32 %v4288, 1.442695
      %v4335 = vpow.pop %v4334
      %v4336 = vmul.f32 %v4289, 1.442695
      %v4337 = vpow.pop %v4336
      %v4338 = vmul.f32 %v4290, 1.442695
      %v4339 = vpow.pop %v4338
      %v4340 = vmul.f32 %v4291, 1.442695
      %v4341 = vpow.pop %v4340
      %v4342 = vmul.f32 %v4292, 1.442695
      %v4343 = vpow.pop %v4342
      %v4344 = vmul.f32 %v4293, 1.442695
      %v4345 = vpow.pop %v4344
      %v4346 = vmul.f32 %v4294, 1.442695
      %v4347 = vpow.pop %v4346
      %v4348 = vmul.f32 %v4295, 1.442695
      %v4349 = vpow.pop %v4348
      %v4350 = vmul.f32 %v4296, 1.442695
      %v4351 = vpow.pop %v4350
      %v4352 = vmul.f32 %v4297, 1.442695
      %v4353 = vpow.pop %v4352
      %v4354 = vmul.f32 %v4298, 1.442695
      %v4355 = vpow.pop %v4354
      %v4356 = vmul.f32 %v4299, 1.442695
      %v4357 = vpow.pop %v4356
      %v4358 = vmul.f32 %v4300, 1.442695
      %v4359 = vpow.pop %v4358
      %v4360 = vmul.f32 %v4301, 1.442695
      %v4361 = vpow.pop %v4360
      %v4362 = vmul.f32 %v4302, 1.442695
      %v4363 = vpow.pop %v4362
      %v4364 = vmul.f32 %v4303, 1.442695
      %v4365 = vpow.pop %v4364
      %v4366 = vmul.f32 %v4304, 1.442695
      %v4367 = vpow.pop %v4366
      %v4368 = vmul.f32 %v4305, 1.442695
      %v4369 = vpow.pop %v4368
      %4370 = vadd.xlane.f32.xlu0 %v4307
      %v4371 = vpop.xlane.xlu0 %4370
      %4372 = vadd.xlane.f32.xlu0 %v4309
      %v4373 = vpop.xlane.xlu0 %4372
      %4374 = vadd.xlane.f32.xlu0 %v4311
      %v4375 = vpop.xlane.xlu0 %4374
      %4376 = vadd.xlane.f32.xlu0 %v4313
      %v4377 = vpop.xlane.xlu0 %4376
      %4378 = vadd.xlane.f32.xlu0 %v4315
      %v4379 = vpop.xlane.xlu0 %4378
      %4380 = vadd.xlane.f32.xlu0 %v4317
      %v4381 = vpop.xlane.xlu0 %4380
      %4382 = vadd.xlane.f32.xlu0 %v4319
      %v4383 = vpop.xlane.xlu0 %4382
      %4384 = vadd.xlane.f32.xlu0 %v4321
      %v4385 = vpop.xlane.xlu0 %4384
      %4386 = vadd.xlane.f32.xlu0 %v4323
      %v4387 = vpop.xlane.xlu0 %4386
      %4388 = vadd.xlane.f32.xlu0 %v4325
      %v4389 = vpop.xlane.xlu0 %4388
      %4390 = vadd.xlane.f32.xlu0 %v4327
      %v4391 = vpop.xlane.xlu0 %4390
      %4392 = vadd.xlane.f32.xlu0 %v4329
      %v4393 = vpop.xlane.xlu0 %4392
      %4394 = vadd.xlane.f32.xlu0 %v4331
      %v4395 = vpop.xlane.xlu0 %4394
      %4396 = vadd.xlane.f32.xlu0 %v4333
      %v4397 = vpop.xlane.xlu0 %4396
      %4398 = vadd.xlane.f32.xlu0 %v4335
      %v4399 = vpop.xlane.xlu0 %4398
      %4400 = vadd.xlane.f32.xlu0 %v4337
      %v4401 = vpop.xlane.xlu0 %4400
      %4402 = vadd.xlane.f32.xlu0 %v4339
      %v4403 = vpop.xlane.xlu0 %4402
      %4404 = vadd.xlane.f32.xlu0 %v4341
      %v4405 = vpop.xlane.xlu0 %4404
      %4406 = vadd.xlane.f32.xlu0 %v4343
      %v4407 = vpop.xlane.xlu0 %4406
      %4408 = vadd.xlane.f32.xlu0 %v4345
      %v4409 = vpop.xlane.xlu0 %4408
      %4410 = vadd.xlane.f32.xlu0 %v4347
      %v4411 = vpop.xlane.xlu0 %4410
      %4412 = vadd.xlane.f32.xlu0 %v4349
      %v4413 = vpop.xlane.xlu0 %4412
      %4414 = vadd.xlane.f32.xlu0 %v4351
      %v4415 = vpop.xlane.xlu0 %4414
      %4416 = vadd.xlane.f32.xlu0 %v4353
      %v4417 = vpop.xlane.xlu0 %4416
      %4418 = vadd.xlane.f32.xlu0 %v4355
      %v4419 = vpop.xlane.xlu0 %4418
      %4420 = vadd.xlane.f32.xlu0 %v4357
      %v4421 = vpop.xlane.xlu0 %4420
      %4422 = vadd.xlane.f32.xlu0 %v4359
      %v4423 = vpop.xlane.xlu0 %4422
      %4424 = vadd.xlane.f32.xlu0 %v4361
      %v4425 = vpop.xlane.xlu0 %4424
      %4426 = vadd.xlane.f32.xlu0 %v4363
      %v4427 = vpop.xlane.xlu0 %4426
      %4428 = vadd.xlane.f32.xlu0 %v4365
      %v4429 = vpop.xlane.xlu0 %4428
      %4430 = vadd.xlane.f32.xlu0 %v4367
      %v4431 = vpop.xlane.xlu0 %4430
      %4432 = vadd.xlane.f32.xlu0 %v4369
      %v4433 = vpop.xlane.xlu0 %4432
      %v4434 = vpack.c.bf16 %v4309, %v4307
      %v4435 = vpack.c.bf16 %v4313, %v4311
      %v4436 = vpack.c.bf16 %v4317, %v4315
      %v4437 = vpack.c.bf16 %v4321, %v4319
      %v4438 = vpack.c.bf16 %v4325, %v4323
      %v4439 = vpack.c.bf16 %v4329, %v4327
      %v4440 = vpack.c.bf16 %v4333, %v4331
      %v4441 = vpack.c.bf16 %v4337, %v4335
      %v4442 = vpack.c.bf16 %v4341, %v4339
      %v4443 = vpack.c.bf16 %v4345, %v4343
      %v4444 = vpack.c.bf16 %v4349, %v4347
      %v4445 = vpack.c.bf16 %v4353, %v4351
      %v4446 = vpack.c.bf16 %v4357, %v4355
      %v4447 = vpack.c.bf16 %v4361, %v4359
      %v4448 = vpack.c.bf16 %v4365, %v4363
      %v4449 = vpack.c.bf16 %v4369, %v4367
      %4450 = vmatprep.subr.bf16.mxu0 0
      %4451 = vmatpush1.bf16.msra.mxu0 %v3676
      %4452 = vmatprep.subr.bf16.mxu0 0
      %4453 = vmatpush1.bf16.msra.mxu0 %v3677
      %4454 = vmatprep.subr.bf16.mxu0 0
      %4455 = vmatpush1.bf16.msra.mxu0 %v3678
      %4456 = vmatprep.subr.bf16.mxu0 0
      %4457 = vmatpush1.bf16.msra.mxu0 %v3679
      %4458 = vmatprep.subr.bf16.mxu0 0
      %4459 = vmatpush1.bf16.msra.mxu0 %v3680
      %4460 = vmatprep.subr.bf16.mxu0 0
      %4461 = vmatpush1.bf16.msra.mxu0 %v3681
      %4462 = vmatprep.subr.bf16.mxu0 0
      %4463 = vmatpush1.bf16.msra.mxu0 %v3682
      %4464 = vmatprep.subr.bf16.mxu0 0
      %4465 = vmatpush1.bf16.msra.mxu0 %v3683
      %4466 = vmatprep.subr.bf16.mxu0 0
      %4467 = vmatpush1.bf16.msra.mxu0 0
      %4468 = vmatprep.subr.bf16.mxu0 0
      %4469 = vmatpush1.bf16.msra.mxu0 0
      %4470 = vmatprep.subr.bf16.mxu0 0
      %4471 = vmatpush1.bf16.msra.mxu0 0
      %4472 = vmatprep.subr.bf16.mxu0 0
      %4473 = vmatpush1.bf16.msra.mxu0 0
      %4474 = vmatprep.subr.bf16.mxu0 0
      %4475 = vmatpush1.bf16.msra.mxu0 0
      %4476 = vmatprep.subr.bf16.mxu0 0
      %4477 = vmatpush1.bf16.msra.mxu0 0
      %4478 = vmatprep.subr.bf16.mxu0 0
      %4479 = vmatpush1.bf16.msra.mxu0 0
      %4480 = vmatprep.subr.bf16.mxu0 0
      %4481 = vmatpush1.bf16.msra.mxu0 0
      %4482 = vmatprep.mubr.bf16.mxu0 0
      %4483 = vmatmul.mubr.bf16.gmra.mrb[0].mxu0 %v4434
      %v4484 = vpop.f32.mrb[0].mxu0
      %v4485 = vadd.f32 0.0, %v4484
      %v4486 = vpop.f32.mrb[0].mxu0
      %v4487 = vpop.f32.mrb[0].mxu0
      %v4488 = vadd.f32 0.0, %v4487
      %v4489 = vpop.f32.mrb[0].mxu0
      %4490 = vmatprep.mubr.bf16.mxu0 0
      %4491 = vmatmul.mubr.bf16.gmra.mrb[0].mxu0 %v4435
      %v4492 = vpop.f32.mrb[0].mxu0
      %v4493 = vadd.f32 0.0, %v4492
      %v4494 = vpop.f32.mrb[0].mxu0
      %v4495 = vpop.f32.mrb[0].mxu0
      %v4496 = vadd.f32 0.0, %v4495
      %v4497 = vpop.f32.mrb[0].mxu0
      %4498 = vmatprep.mubr.bf16.mxu0 0
      %4499 = vmatmul.mubr.bf16.gmra.mrb[0].mxu0 %v4436
      %v4500 = vpop.f32.mrb[0].mxu0
      %v4501 = vadd.f32 0.0, %v4500
      %v4502 = vpop.f32.mrb[0].mxu0
      %v4503 = vpop.f32.mrb[0].mxu0
      %v4504 = vadd.f32 0.0, %v4503
      %v4505 = vpop.f32.mrb[0].mxu0
      %4506 = vmatprep.mubr.bf16.mxu0 0
      %4507 = vmatmul.mubr.bf16.gmra.mrb[0].mxu0 %v4437
      %v4508 = vpop.f32.mrb[0].mxu0
      %v4509 = vadd.f32 0.0, %v4508
      %v4510 = vpop.f32.mrb[0].mxu0
      %v4511 = vpop.f32.mrb[0].mxu0
      %v4512 = vadd.f32 0.0, %v4511
      %v4513 = vpop.f32.mrb[0].mxu0
      %4514 = vmatprep.mubr.bf16.mxu0 0
      %4515 = vmatmul.mubr.bf16.gmra.mrb[0].mxu0 %v4438
      %v4516 = vpop.f32.mrb[0].mxu0
      %v4517 = vadd.f32 0.0, %v4516
      %v4518 = vpop.f32.mrb[0].mxu0
      %v4519 = vpop.f32.mrb[0].mxu0
      %v4520 = vadd.f32 0.0, %v4519
      %v4521 = vpop.f32.mrb[0].mxu0
      %4522 = vmatprep.mubr.bf16.mxu0 0
      %4523 = vmatmul.mubr.bf16.gmra.mrb[0].mxu0 %v4439
      %v4524 = vpop.f32.mrb[0].mxu0
      %v4525 = vadd.f32 0.0, %v4524
      %v4526 = vpop.f32.mrb[0].mxu0
      %v4527 = vpop.f32.mrb[0].mxu0
      %v4528 = vadd.f32 0.0, %v4527
      %v4529 = vpop.f32.mrb[0].mxu0
      %4530 = vmatprep.mubr.bf16.mxu0 0
      %4531 = vmatmul.mubr.bf16.gmra.mrb[0].mxu0 %v4440
      %v4532 = vpop.f32.mrb[0].mxu0
      %v4533 = vadd.f32 0.0, %v4532
      %v4534 = vpop.f32.mrb[0].mxu0
      %v4535 = vpop.f32.mrb[0].mxu0
      %v4536 = vadd.f32 0.0, %v4535
      %v4537 = vpop.f32.mrb[0].mxu0
      %4538 = vmatprep.mubr.bf16.mxu0 0
      %4539 = vmatmul.mubr.bf16.gmra.mrb[0].mxu0 %v4441
      %v4540 = vpop.f32.mrb[0].mxu0
      %v4541 = vadd.f32 0.0, %v4540
      %v4542 = vpop.f32.mrb[0].mxu0
      %v4543 = vpop.f32.mrb[0].mxu0
      %v4544 = vadd.f32 0.0, %v4543
      %v4545 = vpop.f32.mrb[0].mxu0
      %4546 = vdwg.mxu0
      %4547 = vmatprep.subr.bf16.mxu0 0
      %4548 = vmatpush1.bf16.msra.mxu0 %v3684
      %4549 = vmatprep.subr.bf16.mxu0 0
      %4550 = vmatpush1.bf16.msra.mxu0 %v3685
      %4551 = vmatprep.subr.bf16.mxu0 0
      %4552 = vmatpush1.bf16.msra.mxu0 %v3686
      %4553 = vmatprep.subr.bf16.mxu0 0
      %4554 = vmatpush1.bf16.msra.mxu0 %v3687
      %4555 = vmatprep.subr.bf16.mxu0 0
      %4556 = vmatpush1.bf16.msra.mxu0 %v3688
      %4557 = vmatprep.subr.bf16.mxu0 0
      %4558 = vmatpush1.bf16.msra.mxu0 %v3689
      %4559 = vmatprep.subr.bf16.mxu0 0
      %4560 = vmatpush1.bf16.msra.mxu0 %v3690
      %4561 = vmatprep.subr.bf16.mxu0 0
      %4562 = vmatpush1.bf16.msra.mxu0 %v3691
      %4563 = vmatprep.subr.bf16.mxu0 0
      %4564 = vmatpush1.bf16.msra.mxu0 0
      %4565 = vmatprep.subr.bf16.mxu0 0
      %4566 = vmatpush1.bf16.msra.mxu0 0
      %4567 = vmatprep.subr.bf16.mxu0 0
      %4568 = vmatpush1.bf16.msra.mxu0 0
      %4569 = vmatprep.subr.bf16.mxu0 0
      %4570 = vmatpush1.bf16.msra.mxu0 0
      %4571 = vmatprep.subr.bf16.mxu0 0
      %4572 = vmatpush1.bf16.msra.mxu0 0
      %4573 = vmatprep.subr.bf16.mxu0 0
      %4574 = vmatpush1.bf16.msra.mxu0 0
      %4575 = vmatprep.subr.bf16.mxu0 0
      %4576 = vmatpush1.bf16.msra.mxu0 0
      %4577 = vmatprep.subr.bf16.mxu0 0
      %4578 = vmatpush1.bf16.msra.mxu0 0
      %4579 = vmatprep.mubr.bf16.mxu0 0
      %4580 = vmatmul.mubr.bf16.gmra.mrb[0].mxu0 %v4442
      %v4581 = vpop.f32.mrb[0].mxu0
      %v4582 = vadd.f32 0.0, %v4581
      %v4583 = vpop.f32.mrb[0].mxu0
      %v4584 = vpop.f32.mrb[0].mxu0
      %v4585 = vadd.f32 0.0, %v4584
      %v4586 = vpop.f32.mrb[0].mxu0
      %4587 = vmatprep.mubr.bf16.mxu0 0
      %4588 = vmatmul.mubr.bf16.gmra.mrb[0].mxu0 %v4443
      %v4589 = vpop.f32.mrb[0].mxu0
      %v4590 = vadd.f32 0.0, %v4589
      %v4591 = vpop.f32.mrb[0].mxu0
      %v4592 = vpop.f32.mrb[0].mxu0
      %v4593 = vadd.f32 0.0, %v4592
      %v4594 = vpop.f32.mrb[0].mxu0
      %4595 = vmatprep.mubr.bf16.mxu0 0
      %4596 = vmatmul.mubr.bf16.gmra.mrb[0].mxu0 %v4444
      %v4597 = vpop.f32.mrb[0].mxu0
      %v4598 = vadd.f32 0.0, %v4597
      %v4599 = vpop.f32.mrb[0].mxu0
      %v4600 = vpop.f32.mrb[0].mxu0
      %v4601 = vadd.f32 0.0, %v4600
      %v4602 = vpop.f32.mrb[0].mxu0
      %4603 = vmatprep.mubr.bf16.mxu0 0
      %4604 = vmatmul.mubr.bf16.gmra.mrb[0].mxu0 %v4445
      %v4605 = vpop.f32.mrb[0].mxu0
      %v4606 = vadd.f32 0.0, %v4605
      %v4607 = vpop.f32.mrb[0].mxu0
      %v4608 = vpop.f32.mrb[0].mxu0
      %v4609 = vadd.f32 0.0, %v4608
      %v4610 = vpop.f32.mrb[0].mxu0
      %4611 = vmatprep.mubr.bf16.mxu0 0
      %4612 = vmatmul.mubr.bf16.gmra.mrb[0].mxu0 %v4446
      %v4613 = vpop.f32.mrb[0].mxu0
      %v4614 = vadd.f32 0.0, %v4613
      %v4615 = vpop.f32.mrb[0].mxu0
      %v4616 = vpop.f32.mrb[0].mxu0
      %v4617 = vadd.f32 0.0, %v4616
      %v4618 = vpop.f32.mrb[0].mxu0
      %4619 = vmatprep.mubr.bf16.mxu0 0
      %4620 = vmatmul.mubr.bf16.gmra.mrb[0].mxu0 %v4447
      %v4621 = vpop.f32.mrb[0].mxu0
      %v4622 = vadd.f32 0.0, %v4621
      %v4623 = vpop.f32.mrb[0].mxu0
      %v4624 = vpop.f32.mrb[0].mxu0
      %v4625 = vadd.f32 0.0, %v4624
      %v4626 = vpop.f32.mrb[0].mxu0
      %4627 = vmatprep.mubr.bf16.mxu0 0
      %4628 = vmatmul.mubr.bf16.gmra.mrb[0].mxu0 %v4448
      %v4629 = vpop.f32.mrb[0].mxu0
      %v4630 = vadd.f32 0.0, %v4629
      %v4631 = vpop.f32.mrb[0].mxu0
      %v4632 = vpop.f32.mrb[0].mxu0
      %v4633 = vadd.f32 0.0, %v4632
      %v4634 = vpop.f32.mrb[0].mxu0
      %4635 = vmatprep.mubr.bf16.mxu0 0
      %4636 = vmatmul.mubr.bf16.gmra.mrb[0].mxu0 %v4449
      %v4637 = vpop.f32.mrb[0].mxu0
      %v4638 = vadd.f32 0.0, %v4637
      %v4639 = vpop.f32.mrb[0].mxu0
      %v4640 = vpop.f32.mrb[0].mxu0
      %v4641 = vadd.f32 0.0, %v4640
      %v4642 = vpop.f32.mrb[0].mxu0
      %4643 = vdwg.mxu0
      %v4644 = vrcp.pop %v4371
      %v4645 = vrcp.pop %v4373
      %v4646 = vrcp.pop %v4375
      %v4647 = vrcp.pop %v4377
      %v4648 = vrcp.pop %v4379
      %v4649 = vrcp.pop %v4381
      %v4650 = vrcp.pop %v4383
      %v4651 = vrcp.pop %v4385
      %v4652 = vrcp.pop %v4387
      %v4653 = vrcp.pop %v4389
      %v4654 = vrcp.pop %v4391
      %v4655 = vrcp.pop %v4393
      %v4656 = vrcp.pop %v4395
      %v4657 = vrcp.pop %v4397
      %v4658 = vrcp.pop %v4399
      %v4659 = vrcp.pop %v4401
      %v4660 = vrcp.pop %v4403
      %v4661 = vrcp.pop %v4405
      %v4662 = vrcp.pop %v4407
      %v4663 = vrcp.pop %v4409
      %v4664 = vrcp.pop %v4411
      %v4665 = vrcp.pop %v4413
      %v4666 = vrcp.pop %v4415
      %v4667 = vrcp.pop %v4417
      %v4668 = vrcp.pop %v4419
      %v4669 = vrcp.pop %v4421
      %v4670 = vrcp.pop %v4423
      %v4671 = vrcp.pop %v4425
      %v4672 = vrcp.pop %v4427
      %v4673 = vrcp.pop %v4429
      %v4674 = vrcp.pop %v4431
      %v4675 = vrcp.pop %v4433
      %v4676 = vmul.f32 %v4485, %v4644
      %v4677 = vmul.f32 %v4488, %v4645
      %v4678 = vmul.f32 %v4493, %v4646
      %v4679 = vmul.f32 %v4496, %v4647
      %v4680 = vmul.f32 %v4501, %v4648
      %v4681 = vmul.f32 %v4504, %v4649
      %v4682 = vmul.f32 %v4509, %v4650
      %v4683 = vmul.f32 %v4512, %v4651
      %v4684 = vmul.f32 %v4517, %v4652
      %v4685 = vmul.f32 %v4520, %v4653
      %v4686 = vmul.f32 %v4525, %v4654
      %v4687 = vmul.f32 %v4528, %v4655
      %v4688 = vmul.f32 %v4533, %v4656
      %v4689 = vmul.f32 %v4536, %v4657
      %v4690 = vmul.f32 %v4541, %v4658
      %v4691 = vmul.f32 %v4544, %v4659
      %v4692 = vmul.f32 %v4582, %v4660
      %v4693 = vmul.f32 %v4585, %v4661
      %v4694 = vmul.f32 %v4590, %v4662
      %v4695 = vmul.f32 %v4593, %v4663
      %v4696 = vmul.f32 %v4598, %v4664
      %v4697 = vmul.f32 %v4601, %v4665
      %v4698 = vmul.f32 %v4606, %v4666
      %v4699 = vmul.f32 %v4609, %v4667
      %v4700 = vmul.f32 %v4614, %v4668
      %v4701 = vmul.f32 %v4617, %v4669
      %v4702 = vmul.f32 %v4622, %v4670
      %v4703 = vmul.f32 %v4625, %v4671
      %v4704 = vmul.f32 %v4630, %v4672
      %v4705 = vmul.f32 %v4633, %v4673
      %v4706 = vmul.f32 %v4638, %v4674
      %v4707 = vmul.f32 %v4641, %v4675
      %v4708 = vpack.c.bf16 %v4677, %v4676
      %v4709 = vpack.c.bf16 %v4679, %v4678
      %v4710 = vpack.c.bf16 %v4681, %v4680
      %v4711 = vpack.c.bf16 %v4683, %v4682
      %v4712 = vpack.c.bf16 %v4685, %v4684
      %v4713 = vpack.c.bf16 %v4687, %v4686
      %v4714 = vpack.c.bf16 %v4689, %v4688
      %v4715 = vpack.c.bf16 %v4691, %v4690
      %v4716 = vpack.c.bf16 %v4693, %v4692
      %v4717 = vpack.c.bf16 %v4695, %v4694
      %v4718 = vpack.c.bf16 %v4697, %v4696
      %v4719 = vpack.c.bf16 %v4699, %v4698
      %v4720 = vpack.c.bf16 %v4701, %v4700
      %v4721 = vpack.c.bf16 %v4703, %v4702
      %v4722 = vpack.c.bf16 %v4705, %v4704
      %v4723 = vpack.c.bf16 %v4707, %v4706
      %v4740 = vunpack.c.l.b16 %v4708
      %v4741 = vunpack.c.h.b16 %v4708
      %v4742 = vunpack.c.l.b16 %v4709
      %v4743 = vunpack.c.h.b16 %v4709
      %v4744 = vunpack.c.l.b16 %v4710
      %v4745 = vunpack.c.h.b16 %v4710
      %v4746 = vunpack.c.l.b16 %v4711
      %v4747 = vunpack.c.h.b16 %v4711
      %v4748 = vunpack.c.l.b16 %v4712
      %v4749 = vunpack.c.h.b16 %v4712
      %v4750 = vunpack.c.l.b16 %v4713
      %v4751 = vunpack.c.h.b16 %v4713
      %v4752 = vunpack.c.l.b16 %v4714
      %v4753 = vunpack.c.h.b16 %v4714
      %v4754 = vunpack.c.l.b16 %v4715
      %v4755 = vunpack.c.h.b16 %v4715
      %v4756 = vunpack.c.l.b16 %v4716
      %v4757 = vunpack.c.h.b16 %v4716
      %v4758 = vunpack.c.l.b16 %v4717
      %v4759 = vunpack.c.h.b16 %v4717
      %v4760 = vunpack.c.l.b16 %v4718
      %v4761 = vunpack.c.h.b16 %v4718
      %v4762 = vunpack.c.l.b16 %v4719
      %v4763 = vunpack.c.h.b16 %v4719
      %v4764 = vunpack.c.l.b16 %v4720
      %v4765 = vunpack.c.h.b16 %v4720
      %v4766 = vunpack.c.l.b16 %v4721
      %v4767 = vunpack.c.h.b16 %v4721
      %v4768 = vunpack.c.l.b16 %v4722
      %v4769 = vunpack.c.h.b16 %v4722
      %v4770 = vunpack.c.l.b16 %v4723
      %v4771 = vunpack.c.h.b16 %v4723
      %v4772 = vpack.c.b16 %v4740, %v4740
      %v4773 = vpack.c.b16 %v4741, %v4741
      %v4774 = vpack.c.b16 %v4742, %v4742
      %v4775 = vpack.c.b16 %v4743, %v4743
      %v4776 = vpack.c.b16 %v4744, %v4744
      %v4777 = vpack.c.b16 %v4745, %v4745
      %v4778 = vpack.c.b16 %v4746, %v4746
      %v4779 = vpack.c.b16 %v4747, %v4747
      %v4780 = vpack.c.b16 %v4748, %v4748
      %v4781 = vpack.c.b16 %v4749, %v4749
      %v4782 = vpack.c.b16 %v4750, %v4750
      %v4783 = vpack.c.b16 %v4751, %v4751
      %v4784 = vpack.c.b16 %v4752, %v4752
      %v4785 = vpack.c.b16 %v4753, %v4753
      %v4786 = vpack.c.b16 %v4754, %v4754
      %v4787 = vpack.c.b16 %v4755, %v4755
      %v4788 = vpack.c.b16 %v4756, %v4756
      %v4789 = vpack.c.b16 %v4757, %v4757
      %v4790 = vpack.c.b16 %v4758, %v4758
      %v4791 = vpack.c.b16 %v4759, %v4759
      %v4792 = vpack.c.b16 %v4760, %v4760
      %v4793 = vpack.c.b16 %v4761, %v4761
      %v4794 = vpack.c.b16 %v4762, %v4762
      %v4795 = vpack.c.b16 %v4763, %v4763
      %v4796 = vpack.c.b16 %v4764, %v4764
      %v4797 = vpack.c.b16 %v4765, %v4765
      %v4798 = vpack.c.b16 %v4766, %v4766
      %v4799 = vpack.c.b16 %v4767, %v4767
      %v4800 = vpack.c.b16 %v4768, %v4768
      %v4801 = vpack.c.b16 %v4769, %v4769
      %v4802 = vpack.c.b16 %v4770, %v4770
      %v4803 = vpack.c.b16 %v4771, %v4771
      %vm4836 = vcmask 519168
      %4837 = vst.msk [vmem:[%s177] sm:$0xf] %vm4836, %v4772
      %4838 = vst.msk [vmem:[%s177 + $0x4] sm:$0xf] %vm4836, %v4773
      %4839 = vst.msk [vmem:[%s177 + $0x8] sm:$0xf] %vm4836, %v4774
      %4840 = vst.msk [vmem:[%s177 + $0xc] sm:$0xf] %vm4836, %v4775
      %4841 = vst.msk [vmem:[%s177 + $0x10] sm:$0xf] %vm4836, %v4776
      %4842 = vst.msk [vmem:[%s177 + $0x14] sm:$0xf] %vm4836, %v4777
      %4843 = vst.msk [vmem:[%s177 + $0x18] sm:$0xf] %vm4836, %v4778
      %4844 = vst.msk [vmem:[%s177 + $0x1c] sm:$0xf] %vm4836, %v4779
      %4845 = vst.msk [vmem:[%s177 + $0x20] sm:$0xf] %vm4836, %v4780
      %4846 = vst.msk [vmem:[%s177 + $0x24] sm:$0xf] %vm4836, %v4781
      %4847 = vst.msk [vmem:[%s177 + $0x28] sm:$0xf] %vm4836, %v4782
      %4848 = vst.msk [vmem:[%s177 + $0x2c] sm:$0xf] %vm4836, %v4783
      %4849 = vst.msk [vmem:[%s177 + $0x30] sm:$0xf] %vm4836, %v4784
      %4850 = vst.msk [vmem:[%s177 + $0x34] sm:$0xf] %vm4836, %v4785
      %4851 = vst.msk [vmem:[%s177 + $0x38] sm:$0xf] %vm4836, %v4786
      %4852 = vst.msk [vmem:[%s177 + $0x3c] sm:$0xf] %vm4836, %v4787
      %4853 = vst.msk [vmem:[%s177 + $0x40] sm:$0xf] %vm4836, %v4788
      %4854 = vst.msk [vmem:[%s177 + $0x44] sm:$0xf] %vm4836, %v4789
      %4855 = vst.msk [vmem:[%s177 + $0x48] sm:$0xf] %vm4836, %v4790
      %4856 = vst.msk [vmem:[%s177 + $0x4c] sm:$0xf] %vm4836, %v4791
      %4857 = vst.msk [vmem:[%s177 + $0x50] sm:$0xf] %vm4836, %v4792
      %4858 = vst.msk [vmem:[%s177 + $0x54] sm:$0xf] %vm4836, %v4793
      %4859 = vst.msk [vmem:[%s177 + $0x58] sm:$0xf] %vm4836, %v4794
      %4860 = vst.msk [vmem:[%s177 + $0x5c] sm:$0xf] %vm4836, %v4795
      %4861 = vst.msk [vmem:[%s177 + $0x60] sm:$0xf] %vm4836, %v4796
      %4862 = vst.msk [vmem:[%s177 + $0x64] sm:$0xf] %vm4836, %v4797
      %4863 = vst.msk [vmem:[%s177 + $0x68] sm:$0xf] %vm4836, %v4798
      %4864 = vst.msk [vmem:[%s177 + $0x6c] sm:$0xf] %vm4836, %v4799
      %4865 = vst.msk [vmem:[%s177 + $0x70] sm:$0xf] %vm4836, %v4800
      %4866 = vst.msk [vmem:[%s177 + $0x74] sm:$0xf] %vm4836, %v4801
      %4867 = vst.msk [vmem:[%s177 + $0x78] sm:$0xf] %vm4836, %v4802
      %4868 = vst.msk [vmem:[%s177 + $0x7c] sm:$0xf] %vm4836, %v4803
      %s4869 = smul.u32 2, %s14
      %p4870 = scmp.lt.s32.totalorder %s4869, 3
      %s4871 = scalar_select %p4870, %s4869, 3
      %s4872 = smul.addr %s4871, 16
      %s4873 = smul.addr %s4872, 4
      %s4874 = scalar_lea.vmem %s3, %s4873
      // Predicated region
      $region33: #{tpu_custom_call.1} parent=31 // pred_check
        %p4875 = pneg %p100
      $region34: #{tpu_custom_call.1} parent=31 // pred_check_branch
        %4877 = sbr.rel (%p4875) target = $region36
      $region35: #{tpu_custom_call.1} parent=31 // pred_region
        %s4878 = smul.u32 2, %s14
      $region36: #{tpu_custom_call.1} parent=31 // pred_fallthru
        _
    $region32: #{tpu_custom_call.1} parent=5 // pred_fallthru
      _
    %p4879 = scmp.le.s32.totalorder 2, %s9
    // Predicated region
    $region37: #{tpu_custom_call.1} parent=5 // pred_check
      %p4880 = pneg %p4879
    $region38: #{tpu_custom_call.1} parent=5 // pred_check_branch
      %4882 = sbr.rel (%p4880) target = $region40
    $region39: #{tpu_custom_call.1} parent=5 // pred_region
      %s4883 = ssub.s32 %s9, 2
      // Predicated region
      $region41: #{tpu_custom_call.1} parent=39 // pred_check
        %p4884 = pneg %p106
      $region42: #{tpu_custom_call.1} parent=39 // pred_check_branch
        %4886 = sbr.rel (%p4884) target = $region44
      $region43: #{tpu_custom_call.1} parent=39 // pred_region
        %s4887 = smul.u32 2, %s15
        %p4888 = scmp.lt.s32.totalorder %s4887, 3
        %s4889 = scalar_select %p4888, %s4887, 3
        %s4890 = smul.addr %s4889, 16
        %s4891 = smul.addr %s4890, 4
        %s4892 = scalar_lea.vmem %s3, %s4891
      $region44: #{tpu_custom_call.1} parent=39 // pred_fallthru
        _
    $region40: #{tpu_custom_call.1} parent=5 // pred_fallthru
      _
  $region6: #{tpu_custom_call.1} parent=0 // loop_footer
    %s13 = sadd.s32 1, %s9
  $region7: #{tpu_custom_call.1} parent=0 // loop_footer_branch
    %8 = sbr.rel target = $region3
  $region8: #{tpu_custom_call.1} parent=0 // loop_exit
    _

</llo_original>
